<compile_context>
chip_gen: v6e
topology: v6e:2x2x1
jax: 0.10.0
libtpu: 0.0.40
codegen_flags: <defaults>
</compile_context>

<pallas_src>
import math

import jax
import jax.numpy as jnp
from jax.experimental import pallas as pl
from jax.experimental.pallas import tpu as pltpu

IN_DIM = 784
HID = 800
OUT_DIM = 10
OUT_PAD = 128   # lane-dense padded fc3 width
MAX_TM = 512    # batch-tile cap (VMEM stays ~10 MiB with single-buffered weights)


def _mlp_kernel(x_ref, w1_ref, b1_ref, w2_ref, b2_ref, w3_ref, b3_ref, o_ref):
    # x_ref and all weights are bf16; accumulate in f32, bias/ReLU in f32.
    h1 = jnp.dot(x_ref[...], w1_ref[...], preferred_element_type=jnp.float32)
    h1 = jnp.maximum(h1 + b1_ref[...], 0.0)                      # fc1 + ReLU

    h2 = jnp.dot(h1.astype(jnp.bfloat16), w2_ref[...],
                 preferred_element_type=jnp.float32)
    h2 = jnp.maximum(h2 + b2_ref[...], 0.0)                      # fc2 + ReLU

    out = jnp.dot(h2.astype(jnp.bfloat16), w3_ref[...],
                  preferred_element_type=jnp.float32)
    o_ref[...] = (out + b3_ref[...]).astype(o_ref.dtype)         # fc3 (bf16 store)


def _round_up(x, m):
    return (x + m - 1) // m * m


def _cdiv(a, b):
    return (a + b - 1) // b


def pack_params(params):
    """One-time prep: bf16 weights, f32 biases, fc3 zero-padded to 128 lanes."""
    w1, b1, w2, b2, w3, b3 = params
    w3p = jnp.zeros((HID, OUT_PAD), jnp.float32).at[:, :OUT_DIM].set(w3)
    b3p = jnp.zeros((1, OUT_PAD), jnp.float32).at[:, :OUT_DIM].set(b3)
    return (w1.astype(jnp.bfloat16), b1.astype(jnp.float32),
            w2.astype(jnp.bfloat16), b2.astype(jnp.float32),
            w3p.astype(jnp.bfloat16), b3p.astype(jnp.float32))


def _choose_tm(n):
    """Batch tile: multiple of 8 (16 when tiled), capped, and split so the grid
    has >= 2 steps whenever the batch allows (keeps v7x's 2nd TC busy)."""
    n8 = _round_up(n, 8)
    if n8 <= 8:
        return 8
    return min(MAX_TM, _round_up(_cdiv(n8, 2), 16))


def _forward_impl(x, packed_params):
    """x: (N, 1, 28, 28) or (N, 784).  Returns (N, 10) float32."""
    w1, b1, w2, b2, w3, b3 = packed_params
    n = x.shape[0]
    # torch.flatten(x, 1) + bf16 cast; fuses inside this jitted region, so the
    # kernel's only per-step HBM input stream is half-width.
    x2d = x.reshape(n, -1).astype(jnp.bfloat16)
    assert x2d.shape[1] == IN_DIM, x2d.shape

    tm = _choose_tm(n)
    n_pad = _round_up(n, tm)
    if n_pad != n:
        x2d = jnp.pad(x2d, ((0, n_pad - n), (0, 0)))

    # Weights/biases: constant index_map -> VMEM-resident across grid steps;
    # single-buffered (the block never changes, so the 2nd buffer is waste).
    resident = lambda shape: pl.BlockSpec(shape, lambda i: (0, 0),
                                          pipeline_mode=pl.Buffered(1))

    out = pl.pallas_call(
        _mlp_kernel,
        out_shape=jax.ShapeDtypeStruct((n_pad, OUT_PAD), jnp.bfloat16),
        grid=(n_pad // tm,),
        in_specs=[
            pl.BlockSpec((tm, IN_DIM), lambda i: (i, 0)),
            resident((IN_DIM, HID)), resident((1, HID)),
            resident((HID, HID)),    resident((1, HID)),
            resident((HID, OUT_PAD)), resident((1, OUT_PAD)),
        ],
        out_specs=pl.BlockSpec((tm, OUT_PAD), lambda i: (i, 0)),
        compiler_params=pltpu.CompilerParams(
            dimension_semantics=("parallel",)),
    )(x2d, w1, b1, w2, b2, w3, b3)

    # Slice off padded rows / lanes and return f32 like the PyTorch module;
    # this fuses with the bf16 kernel output inside the same jit.
    return out[:n, :OUT_DIM].astype(jnp.float32)


fc_net2_forward = jax.jit(_forward_impl)


def init_params(key):
    """PyTorch nn.Linear default init (uniform +/- 1/sqrt(fan_in)), f32,
    weights stored as (in, out)."""
    def linear(k, fan_in, fan_out):
        kw, kb = jax.random.split(k)
        bound = 1.0 / math.sqrt(fan_in)
        w = jax.random.uniform(kw, (fan_in, fan_out), jnp.float32, -bound, bound)
        b = jax.random.uniform(kb, (1, fan_out), jnp.float32, -bound, bound)
        return w, b

    k1, k2, k3 = jax.random.split(key, 3)
    w1, b1 = linear(k1, IN_DIM, HID)
    w2, b2 = linear(k2, HID, HID)
    w3, b3 = linear(k3, HID, OUT_DIM)
    return w1, b1, w2, b2, w3, b3


def _reference_f32(x, params):
    w1, b1, w2, b2, w3, b3 = params
    x2d = x.reshape(x.shape[0], -1)
    h1 = jnp.maximum(x2d @ w1 + b1, 0.0)
    h2 = jnp.maximum(h1 @ w2 + b2, 0.0)
    return h2 @ w3 + b3


def _reference_bf16(x, packed_params):
    """Same bf16-input / f32-accumulate / bf16-output math as the kernel."""
    w1, b1, w2, b2, w3, b3 = packed_params
    x2d = x.reshape(x.shape[0], -1).astype(jnp.bfloat16)
    h1 = jnp.maximum(
        jnp.dot(x2d, w1, preferred_element_type=jnp.float32) + b1, 0.0)
    h2 = jnp.maximum(
        jnp.dot(h1.astype(jnp.bfloat16), w2,
                preferred_element_type=jnp.float32) + b2, 0.0)
    out = jnp.dot(h2.astype(jnp.bfloat16), w3,
                  preferred_element_type=jnp.float32) + b3
    out = out.astype(jnp.bfloat16).astype(jnp.float32)   # kernel stores bf16
    return out[:, :OUT_DIM]


if __name__ == "__main__":
    key = jax.random.PRNGKey(0)
    k_params, k_x1, k_x2 = jax.random.split(key, 3)

    params = init_params(k_params)
    packed = pack_params(params)

    # MNIST-like input: batch=8, NCHW (8, 1, 28, 28) -> flattened 784 features.
    x = jax.random.normal(k_x1, (8, 1, 28, 28), dtype=jnp.float32)
    out = jax.block_until_ready(fc_net2_forward(x, packed))
    assert out.shape == (8, OUT_DIM) and out.dtype == jnp.float32

    # Exact-math check against a bf16-matched reference (same precision path).
    ref_bf16 = _reference_bf16(x, packed)
    assert jnp.allclose(out, ref_bf16, atol=2e-2, rtol=2e-2), \
        float(jnp.max(jnp.abs(out - ref_bf16)))
    # Looser sanity check vs the full-f32 reference (bf16 is an intentional
    # precision trade).
    ref_f32 = _reference_f32(x, params)
    assert jnp.allclose(out, ref_f32, atol=1e-1, rtol=1e-1), \
        float(jnp.max(jnp.abs(out - ref_f32)))

    # Second case exercises the multi-step grid (>=2 tiles) + row padding path.
    x2 = jax.random.normal(k_x2, (40, 1, 28, 28), dtype=jnp.float32)
    out2 = jax.block_until_ready(fc_net2_forward(x2, packed))
    assert out2.shape == (40, OUT_DIM) and out2.dtype == jnp.float32
    ref2 = _reference_bf16(x2, packed)
    assert jnp.allclose(out2, ref2, atol=2e-2, rtol=2e-2), \
        float(jnp.max(jnp.abs(out2 - ref2)))

    print("KERNEL_OK")
</pallas_src>

<mosaic_0001>
module attributes {stable_mosaic.version = 11 : i64} {
  func.func @_mlp_kernel(%arg0: i32, %arg1: memref<8x784xbf16, #tpu.memory_space<vmem>>, %arg2: memref<784x800xbf16, #tpu.memory_space<vmem>>, %arg3: memref<1x800xf32, #tpu.memory_space<vmem>>, %arg4: memref<800x800xbf16, #tpu.memory_space<vmem>>, %arg5: memref<1x800xf32, #tpu.memory_space<vmem>>, %arg6: memref<800x128xbf16, #tpu.memory_space<vmem>>, %arg7: memref<1x128xf32, #tpu.memory_space<vmem>>, %arg8: memref<8x128xbf16, #tpu.memory_space<vmem>>) attributes {dimension_semantics = [#tpu.dimension_semantics<parallel>], iteration_bounds = array<i64: 1>, scalar_prefetch = 0 : i64, scratch_operands = 0 : i64, tpu.core_type = #tpu.core_type<tc>, window_params = [{transform_indices = @transform_0, window_bounds = array<i64: 8, 784>}, {pipeline_mode = #tpu.pipeline_mode<synchronous>, transform_indices = @transform_1, window_bounds = array<i64: 784, 800>}, {pipeline_mode = #tpu.pipeline_mode<synchronous>, transform_indices = @transform_2, window_bounds = array<i64: 1, 800>}, {pipeline_mode = #tpu.pipeline_mode<synchronous>, transform_indices = @transform_3, window_bounds = array<i64: 800, 800>}, {pipeline_mode = #tpu.pipeline_mode<synchronous>, transform_indices = @transform_4, window_bounds = array<i64: 1, 800>}, {pipeline_mode = #tpu.pipeline_mode<synchronous>, transform_indices = @transform_5, window_bounds = array<i64: 800, 128>}, {pipeline_mode = #tpu.pipeline_mode<synchronous>, transform_indices = @transform_6, window_bounds = array<i64: 1, 128>}, {transform_indices = @transform_7, window_bounds = array<i64: 8, 128>}]} {
    %c0 = arith.constant 0 : index
    %c0_0 = arith.constant 0 : index
    %0 = vector.load %arg1[%c0, %c0_0] : memref<8x784xbf16, #tpu.memory_space<vmem>>, vector<8x784xbf16>
    %c0_1 = arith.constant 0 : index
    %c0_2 = arith.constant 0 : index
    %1 = vector.load %arg2[%c0_1, %c0_2] : memref<784x800xbf16, #tpu.memory_space<vmem>>, vector<784x800xbf16>
    %cst = arith.constant dense<0.000000e+00> : vector<8x800xf32>
    %2 = tpu.matmul %0, %1, %cst {dimension_numbers = #tpu.dot_dimension_numbers<[1], [0], [0], [1], [0, 0, 1, 1], [], []>} : vector<8x784xbf16>, vector<784x800xbf16>, vector<8x800xf32> -> vector<8x800xf32>
    %c0_3 = arith.constant 0 : index
    %c0_4 = arith.constant 0 : index
    %3 = vector.load %arg3[%c0_3, %c0_4] : memref<1x800xf32, #tpu.memory_space<vmem>>, vector<1x800xf32>
    %4 = vector.broadcast %3 : vector<1x800xf32> to vector<8x800xf32>
    %5 = arith.addf %2, %4 : vector<8x800xf32>
    %cst_5 = arith.constant 0.000000e+00 : f32
    %6 = vector.broadcast %cst_5 : f32 to vector<8x800xf32>
    %7 = arith.maximumf %5, %6 : vector<8x800xf32>
    %8 = arith.truncf %7 : vector<8x800xf32> to vector<8x800xbf16>
    %c0_6 = arith.constant 0 : index
    %c0_7 = arith.constant 0 : index
    %9 = vector.load %arg4[%c0_6, %c0_7] : memref<800x800xbf16, #tpu.memory_space<vmem>>, vector<800x800xbf16>
    %cst_8 = arith.constant dense<0.000000e+00> : vector<8x800xf32>
    %10 = tpu.matmul %8, %9, %cst_8 {dimension_numbers = #tpu.dot_dimension_numbers<[1], [0], [0], [1], [0, 0, 1, 1], [], []>} : vector<8x800xbf16>, vector<800x800xbf16>, vector<8x800xf32> -> vector<8x800xf32>
    %c0_9 = arith.constant 0 : index
    %c0_10 = arith.constant 0 : index
    %11 = vector.load %arg5[%c0_9, %c0_10] : memref<1x800xf32, #tpu.memory_space<vmem>>, vector<1x800xf32>
    %12 = vector.broadcast %11 : vector<1x800xf32> to vector<8x800xf32>
    %13 = arith.addf %10, %12 : vector<8x800xf32>
    %cst_11 = arith.constant 0.000000e+00 : f32
    %14 = vector.broadcast %cst_11 : f32 to vector<8x800xf32>
    %15 = arith.maximumf %13, %14 : vector<8x800xf32>
    %16 = arith.truncf %15 : vector<8x800xf32> to vector<8x800xbf16>
    %c0_12 = arith.constant 0 : index
    %c0_13 = arith.constant 0 : index
    %17 = vector.load %arg6[%c0_12, %c0_13] : memref<800x128xbf16, #tpu.memory_space<vmem>>, vector<800x128xbf16>
    %cst_14 = arith.constant dense<0.000000e+00> : vector<8x128xf32>
    %18 = tpu.matmul %16, %17, %cst_14 {dimension_numbers = #tpu.dot_dimension_numbers<[1], [0], [0], [1], [0, 0, 1, 1], [], []>} : vector<8x800xbf16>, vector<800x128xbf16>, vector<8x128xf32> -> vector<8x128xf32>
    %c0_15 = arith.constant 0 : index
    %c0_16 = arith.constant 0 : index
    %19 = vector.load %arg7[%c0_15, %c0_16] : memref<1x128xf32, #tpu.memory_space<vmem>>, vector<1x128xf32>
    %20 = vector.broadcast %19 : vector<1x128xf32> to vector<8x128xf32>
    %21 = arith.addf %18, %20 : vector<8x128xf32>
    %22 = arith.truncf %21 : vector<8x128xf32> to vector<8x128xbf16>
    %c0_17 = arith.constant 0 : index
    %c0_18 = arith.constant 0 : index
    %23 = vector.load %arg8[%c0_17, %c0_18] : memref<8x128xbf16, #tpu.memory_space<vmem>>, vector<8x128xbf16>
    tpu.vector_store %arg8[%c0_17, %c0_18], %22 {strides = array<i32>} : memref<8x128xbf16, #tpu.memory_space<vmem>>, vector<8x128xbf16>,
    return
  }
  func.func @transform_0(%arg0: i32) -> (i32, i32) {
    %c0_i32 = arith.constant 0 : i32
    %c0_i32_0 = arith.constant 0 : i32
    return %arg0, %c0_i32 : i32, i32
  }
  func.func @transform_1(%arg0: i32) -> (i32, i32) {
    %c0_i32 = arith.constant 0 : i32
    %c0_i32_0 = arith.constant 0 : i32
    %c0_i32_1 = arith.constant 0 : i32
    return %c0_i32, %c0_i32_0 : i32, i32
  }
  func.func @transform_2(%arg0: i32) -> (i32, i32) {
    %c0_i32 = arith.constant 0 : i32
    %c0_i32_0 = arith.constant 0 : i32
    %c0_i32_1 = arith.constant 0 : i32
    return %c0_i32, %c0_i32_0 : i32, i32
  }
  func.func @transform_3(%arg0: i32) -> (i32, i32) {
    %c0_i32 = arith.constant 0 : i32
    %c0_i32_0 = arith.constant 0 : i32
    %c0_i32_1 = arith.constant 0 : i32
    return %c0_i32, %c0_i32_0 : i32, i32
  }
  func.func @transform_4(%arg0: i32) -> (i32, i32) {
    %c0_i32 = arith.constant 0 : i32
    %c0_i32_0 = arith.constant 0 : i32
    %c0_i32_1 = arith.constant 0 : i32
    return %c0_i32, %c0_i32_0 : i32, i32
  }
  func.func @transform_5(%arg0: i32) -> (i32, i32) {
    %c0_i32 = arith.constant 0 : i32
    %c0_i32_0 = arith.constant 0 : i32
    %c0_i32_1 = arith.constant 0 : i32
    return %c0_i32, %c0_i32_0 : i32, i32
  }
  func.func @transform_6(%arg0: i32) -> (i32, i32) {
    %c0_i32 = arith.constant 0 : i32
    %c0_i32_0 = arith.constant 0 : i32
    %c0_i32_1 = arith.constant 0 : i32
    return %c0_i32, %c0_i32_0 : i32, i32
  }
  func.func @transform_7(%arg0: i32) -> (i32, i32) {
    %c0_i32 = arith.constant 0 : i32
    %c0_i32_0 = arith.constant 0 : i32
    return %arg0, %c0_i32 : i32, i32
  }
}

</mosaic_0001>

<llo_original>
// kernel: _forward_impl.1
$region0: #{_forward_impl.1}
  #allocation0 [shape = 'u32[]', space=smem, size = 0x4, offset = 0x4, fixed_abs, tag = 'smem constant byte address 0x4 - core index']
  #allocation1 [shape = 'u32[144,128]{1,0:T(1,128)}', space=vmem, size = 0x12000, scoped, tag = 'internal scratch']
  %s0 = inlined_call_operand.vmem [shape: bf16[8,784], index: 0, kind: input, shape index: {}]
  %s1 = inlined_call_operand.hbm [shape: bf16[784,800], index: 1, kind: input, shape index: {}]
  %s2 = inlined_call_operand.hbm [shape: f32[1,800], index: 2, kind: input, shape index: {}]
  %s3 = inlined_call_operand.hbm [shape: bf16[800,800], index: 3, kind: input, shape index: {}]
  %s4 = inlined_call_operand.hbm [shape: f32[1,800], index: 4, kind: input, shape index: {}]
  %s5 = inlined_call_operand.hbm [shape: bf16[800,128], index: 5, kind: input, shape index: {}]
  %s6 = inlined_call_operand.hbm [shape: f32[1,128], index: 6, kind: input, shape index: {}]
  %s7 = inlined_call_operand.vmem [shape: bf16[8,128], index: 7, kind: output, shape index: {}]
  %s8 = sld [smem:[#allocation0]]
  $region62: #{_forward_impl.1} parent=0
    _
  %s10 = ssub.s32 1, %s8
  %s11 = scalar_select 0, %s10, %s8
  $region1: #{_forward_impl.1} parent=0
    #allocation2 [shape = 'u8[1404928]{0}', space=vmem, size = 0x157000, scoped, tag = 'input window, operand 1, single buffered']
    #allocation3 [shape = 's32[1]{0}', space=sflag, size = 0x4, scoped, tag = 'scoped memory for _forward_impl.1']
    #allocation4 [shape = 'u8[3584]{0}', space=vmem, size = 0x1000, scoped, tag = 'input window, operand 2, single buffered']
    #allocation5 [shape = 's32[1]{0}', space=sflag, size = 0x4, scoped, tag = 'scoped memory for _forward_impl.1']
    #allocation6 [shape = 'u8[1433600]{0}', space=vmem, size = 0x15e000, scoped, tag = 'input window, operand 3, single buffered']
    #allocation7 [shape = 'u8[3584]{0}', space=vmem, size = 0x1000, scoped, tag = 'input window, operand 4, single buffered']
    #allocation8 [shape = 's32[1]{0}', space=sflag, size = 0x4, scoped, tag = 'scoped memory for _forward_impl.1']
    #allocation9 [shape = 'u8[204800]{0}', space=vmem, size = 0x32000, scoped, tag = 'input window, operand 5, single buffered']
    #allocation10 [shape = 'u8[512]{0}', space=vmem, size = 0x400, scoped, tag = 'input window, operand 6, single buffered']
    #allocation11 [shape = 's32[1]{0}', space=sflag, size = 0x4, scoped, tag = 'scoped memory for _forward_impl.1']
    %12 = vsyncpa [#allocation3], 0
    %13 = vsyncpa [#allocation5], 0
    %14 = vsyncpa [#allocation8], 0
    %15 = vsyncpa [#allocation11], 0
    // Predicated region
    $region2: #{_forward_impl.1} parent=1 // pred_check
      _
    $region3: #{_forward_impl.1} parent=1 // pred_check_branch
      %17 = sbr.rel (0) target = $region5
    $region4: #{_forward_impl.1} parent=1 // pred_region
      _
    $region5: #{_forward_impl.1} parent=1 // pred_fallthru
      _
    // Predicated region
    $region6: #{_forward_impl.1} parent=1 // pred_check
      _
    $region7: #{_forward_impl.1} parent=1 // pred_check_branch
      %19 = sbr.rel (0) target = $region9
    $region8: #{_forward_impl.1} parent=1 // pred_region
      %s21 = ssub.s32 43904, 43904
      %22 = vsyncadd [#allocation3], %s21
      %s23 = sshll.u32 [#allocation2], 4
      %s24 = int_to_ptr.vmem [resolvable:$true] %s23
      %29 = dma.hbm_to_vmem [thread:$0]  %s1, 43904, %s24, [#allocation3], 448, 448, 28
    $region9: #{_forward_impl.1} parent=1 // pred_fallthru
      _
    // Predicated region
    $region10: #{_forward_impl.1} parent=1 // pred_check
      _
    $region11: #{_forward_impl.1} parent=1 // pred_check_branch
      %31 = sbr.rel (0) target = $region13
    $region12: #{_forward_impl.1} parent=1 // pred_region
      %s33 = ssub.s32 112, 112
      %34 = vsyncadd [#allocation5], %s33
      %s36 = sshll.u32 [#allocation4], 4
      %s37 = int_to_ptr.vmem [resolvable:$true] %s36
      %39 = dma.hbm_to_vmem [thread:$0]  %s2, 112, %s37, [#allocation5]
    $region13: #{_forward_impl.1} parent=1 // pred_fallthru
      _
    // Predicated region
    $region14: #{_forward_impl.1} parent=1 // pred_check
      _
    $region15: #{_forward_impl.1} parent=1 // pred_check_branch
      %41 = sbr.rel (0) target = $region17
    $region16: #{_forward_impl.1} parent=1 // pred_region
      %s43 = ssub.s32 44800, 44800
      %44 = vsyncadd [#allocation5], %s43
      %s45 = sshll.u32 [#allocation6], 4
      %s46 = int_to_ptr.vmem [resolvable:$true] %s45
      %51 = dma.hbm_to_vmem [thread:$0]  %s3, 44800, %s46, [#allocation5], 448, 448, 28
    $region17: #{_forward_impl.1} parent=1 // pred_fallthru
      _
    // Predicated region
    $region18: #{_forward_impl.1} parent=1 // pred_check
      _
    $region19: #{_forward_impl.1} parent=1 // pred_check_branch
      %53 = sbr.rel (0) target = $region21
    $region20: #{_forward_impl.1} parent=1 // pred_region
      %s55 = ssub.s32 112, 112
      %56 = vsyncadd [#allocation8], %s55
      %s58 = sshll.u32 [#allocation7], 4
      %s59 = int_to_ptr.vmem [resolvable:$true] %s58
      %61 = dma.hbm_to_vmem [thread:$0]  %s4, 112, %s59, [#allocation8]
    $region21: #{_forward_impl.1} parent=1 // pred_fallthru
      _
    // Predicated region
    $region22: #{_forward_impl.1} parent=1 // pred_check
      _
    $region23: #{_forward_impl.1} parent=1 // pred_check_branch
      %63 = sbr.rel (0) target = $region25
    $region24: #{_forward_impl.1} parent=1 // pred_region
      %s65 = ssub.s32 6400, 6400
      %66 = vsyncadd [#allocation8], %s65
      %s67 = sshll.u32 [#allocation9], 4
      %s68 = int_to_ptr.vmem [resolvable:$true] %s67
      %73 = dma.hbm_to_vmem [thread:$0]  %s5, 6400, %s68, [#allocation8], 64, 64, 4
    $region25: #{_forward_impl.1} parent=1 // pred_fallthru
      _
    // Predicated region
    $region26: #{_forward_impl.1} parent=1 // pred_check
      _
    $region27: #{_forward_impl.1} parent=1 // pred_check_branch
      %75 = sbr.rel (0) target = $region29
    $region28: #{_forward_impl.1} parent=1 // pred_region
      %s77 = ssub.s32 16, 16
      %78 = vsyncadd [#allocation11], %s77
      %s80 = sshll.u32 [#allocation10], 4
      %s81 = int_to_ptr.vmem [resolvable:$true] %s80
      %83 = dma.hbm_to_vmem [thread:$0]  %s6, 16, %s81, [#allocation11]
    $region29: #{_forward_impl.1} parent=1 // pred_fallthru
      _
    // Predicated region
    $region30: #{_forward_impl.1} parent=1 // pred_check
      _
    $region31: #{_forward_impl.1} parent=1 // pred_check_branch
      %85 = sbr.rel (0) target = $region33
    $region32: #{_forward_impl.1} parent=1 // pred_region
      %86 = dma.done [#allocation3], 43904
    $region33: #{_forward_impl.1} parent=1 // pred_fallthru
      _
    // Predicated region
    $region34: #{_forward_impl.1} parent=1 // pred_check
      _
    $region35: #{_forward_impl.1} parent=1 // pred_check_branch
      %88 = sbr.rel (0) target = $region37
    $region36: #{_forward_impl.1} parent=1 // pred_region
      %89 = dma.done [#allocation5], 112
    $region37: #{_forward_impl.1} parent=1 // pred_fallthru
      _
    // Predicated region
    $region38: #{_forward_impl.1} parent=1 // pred_check
      _
    $region39: #{_forward_impl.1} parent=1 // pred_check_branch
      %91 = sbr.rel (0) target = $region41
    $region40: #{_forward_impl.1} parent=1 // pred_region
      %92 = dma.done [#allocation5], 44800
    $region41: #{_forward_impl.1} parent=1 // pred_fallthru
      _
    // Predicated region
    $region42: #{_forward_impl.1} parent=1 // pred_check
      _
    $region43: #{_forward_impl.1} parent=1 // pred_check_branch
      %94 = sbr.rel (0) target = $region45
    $region44: #{_forward_impl.1} parent=1 // pred_region
      %95 = dma.done [#allocation8], 112
    $region45: #{_forward_impl.1} parent=1 // pred_fallthru
      _
    // Predicated region
    $region46: #{_forward_impl.1} parent=1 // pred_check
      _
    $region47: #{_forward_impl.1} parent=1 // pred_check_branch
      %97 = sbr.rel (0) target = $region49
    $region48: #{_forward_impl.1} parent=1 // pred_region
      %98 = dma.done [#allocation8], 6400
    $region49: #{_forward_impl.1} parent=1 // pred_fallthru
      _
    // Predicated region
    $region50: #{_forward_impl.1} parent=1 // pred_check
      _
    $region51: #{_forward_impl.1} parent=1 // pred_check_branch
      %100 = sbr.rel (0) target = $region53
    $region52: #{_forward_impl.1} parent=1 // pred_region
      %101 = dma.done [#allocation11], 16
    $region53: #{_forward_impl.1} parent=1 // pred_fallthru
      _
    %v103 = vld [vmem:[%s0] sm:$0xff]
    %v104 = vld [vmem:[%s0 + $0x8] sm:$0xff]
    %v105 = vld [vmem:[%s0 + $0x10] sm:$0xff]
    %v106 = vld [vmem:[%s0 + $0x18] sm:$0xf]
    %v107 = vld [vmem:[#allocation2] sm:$0xff]
    %v108 = vld [vmem:[#allocation2 + $0x8] sm:$0xff]
    %v109 = vld [vmem:[#allocation2 + $0x10] sm:$0xff]
    %v110 = vld [vmem:[#allocation2 + $0x18] sm:$0xf]
    %v111 = vld [vmem:[#allocation2 + $0x1c] sm:$0xff]
    %v112 = vld [vmem:[#allocation2 + $0x24] sm:$0xff]
    %v113 = vld [vmem:[#allocation2 + $0x2c] sm:$0xff]
    %v114 = vld [vmem:[#allocation2 + $0x34] sm:$0xf]
    %v115 = vld [vmem:[#allocation2 + $0x38] sm:$0xff]
    %v116 = vld [vmem:[#allocation2 + $0x40] sm:$0xff]
    %v117 = vld [vmem:[#allocation2 + $0x48] sm:$0xff]
    %v118 = vld [vmem:[#allocation2 + $0x50] sm:$0xf]
    %v119 = vld [vmem:[#allocation2 + $0x54] sm:$0xff]
    %v120 = vld [vmem:[#allocation2 + $0x5c] sm:$0xff]
    %v121 = vld [vmem:[#allocation2 + $0x64] sm:$0xff]
    %v122 = vld [vmem:[#allocation2 + $0x6c] sm:$0xf]
    %v123 = vld [vmem:[#allocation2 + $0x70] sm:$0xff]
    %v124 = vld [vmem:[#allocation2 + $0x78] sm:$0xff]
    %v125 = vld [vmem:[#allocation2 + $0x80] sm:$0xff]
    %v126 = vld [vmem:[#allocation2 + $0x88] sm:$0xf]
    %v127 = vld [vmem:[#allocation2 + $0x8c] sm:$0xff]
    %v128 = vld [vmem:[#allocation2 + $0x94] sm:$0xff]
    %v129 = vld [vmem:[#allocation2 + $0x9c] sm:$0xff]
    %v130 = vld [vmem:[#allocation2 + $0xa4] sm:$0xf]
    %v131 = vld [vmem:[#allocation2 + $0xa8] sm:$0xff]
    %v132 = vld [vmem:[#allocation2 + $0xb0] sm:$0xff]
    %v133 = vld [vmem:[#allocation2 + $0xb8] sm:$0xff]
    %v134 = vld [vmem:[#allocation2 + $0xc0] sm:$0xf]
    %v135 = vld [vmem:[#allocation2 + $0xc4] sm:$0xff]
    %v136 = vld [vmem:[#allocation2 + $0xcc] sm:$0xff]
    %v137 = vld [vmem:[#allocation2 + $0xd4] sm:$0xff]
    %v138 = vld [vmem:[#allocation2 + $0xdc] sm:$0xf]
    %v139 = vld [vmem:[#allocation2 + $0xe0] sm:$0xff]
    %v140 = vld [vmem:[#allocation2 + $0xe8] sm:$0xff]
    %v141 = vld [vmem:[#allocation2 + $0xf0] sm:$0xff]
    %v142 = vld [vmem:[#allocation2 + $0xf8] sm:$0xf]
    %v143 = vld [vmem:[#allocation2 + $0xfc] sm:$0xff]
    %v144 = vld [vmem:[#allocation2 + $0x104] sm:$0xff]
    %v145 = vld [vmem:[#allocation2 + $0x10c] sm:$0xff]
    %v146 = vld [vmem:[#allocation2 + $0x114] sm:$0xf]
    %v147 = vld [vmem:[#allocation2 + $0x118] sm:$0xff]
    %v148 = vld [vmem:[#allocation2 + $0x120] sm:$0xff]
    %v149 = vld [vmem:[#allocation2 + $0x128] sm:$0xff]
    %v150 = vld [vmem:[#allocation2 + $0x130] sm:$0xf]
    %v151 = vld [vmem:[#allocation2 + $0x134] sm:$0xff]
    %v152 = vld [vmem:[#allocation2 + $0x13c] sm:$0xff]
    %v153 = vld [vmem:[#allocation2 + $0x144] sm:$0xff]
    %v154 = vld [vmem:[#allocation2 + $0x14c] sm:$0xf]
    %v155 = vld [vmem:[#allocation2 + $0x150] sm:$0xff]
    %v156 = vld [vmem:[#allocation2 + $0x158] sm:$0xff]
    %v157 = vld [vmem:[#allocation2 + $0x160] sm:$0xff]
    %v158 = vld [vmem:[#allocation2 + $0x168] sm:$0xf]
    %v159 = vld [vmem:[#allocation2 + $0x16c] sm:$0xff]
    %v160 = vld [vmem:[#allocation2 + $0x174] sm:$0xff]
    %v161 = vld [vmem:[#allocation2 + $0x17c] sm:$0xff]
    %v162 = vld [vmem:[#allocation2 + $0x184] sm:$0xf]
    %v163 = vld [vmem:[#allocation2 + $0x188] sm:$0xff]
    %v164 = vld [vmem:[#allocation2 + $0x190] sm:$0xff]
    %v165 = vld [vmem:[#allocation2 + $0x198] sm:$0xff]
    %v166 = vld [vmem:[#allocation2 + $0x1a0] sm:$0xf]
    %v167 = vld [vmem:[#allocation2 + $0x1a4] sm:$0xff]
    %v168 = vld [vmem:[#allocation2 + $0x1ac] sm:$0xff]
    %v169 = vld [vmem:[#allocation2 + $0x1b4] sm:$0xff]
    %v170 = vld [vmem:[#allocation2 + $0x1bc] sm:$0xf]
    %v171 = vld [vmem:[#allocation2 + $0x1c0] sm:$0xff]
    %v172 = vld [vmem:[#allocation2 + $0x1c8] sm:$0xff]
    %v173 = vld [vmem:[#allocation2 + $0x1d0] sm:$0xff]
    %v174 = vld [vmem:[#allocation2 + $0x1d8] sm:$0xf]
    %v175 = vld [vmem:[#allocation2 + $0x1dc] sm:$0xff]
    %v176 = vld [vmem:[#allocation2 + $0x1e4] sm:$0xff]
    %v177 = vld [vmem:[#allocation2 + $0x1ec] sm:$0xff]
    %v178 = vld [vmem:[#allocation2 + $0x1f4] sm:$0xf]
    %v179 = vld [vmem:[#allocation2 + $0x1f8] sm:$0xff]
    %v180 = vld [vmem:[#allocation2 + $0x200] sm:$0xff]
    %v181 = vld [vmem:[#allocation2 + $0x208] sm:$0xff]
    %v182 = vld [vmem:[#allocation2 + $0x210] sm:$0xf]
    %v183 = vld [vmem:[#allocation2 + $0x214] sm:$0xff]
    %v184 = vld [vmem:[#allocation2 + $0x21c] sm:$0xff]
    %v185 = vld [vmem:[#allocation2 + $0x224] sm:$0xff]
    %v186 = vld [vmem:[#allocation2 + $0x22c] sm:$0xf]
    %v187 = vld [vmem:[#allocation2 + $0x230] sm:$0xff]
    %v188 = vld [vmem:[#allocation2 + $0x238] sm:$0xff]
    %v189 = vld [vmem:[#allocation2 + $0x240] sm:$0xff]
    %v190 = vld [vmem:[#allocation2 + $0x248] sm:$0xf]
    %v191 = vld [vmem:[#allocation2 + $0x24c] sm:$0xff]
    %v192 = vld [vmem:[#allocation2 + $0x254] sm:$0xff]
    %v193 = vld [vmem:[#allocation2 + $0x25c] sm:$0xff]
    %v194 = vld [vmem:[#allocation2 + $0x264] sm:$0xf]
    %v195 = vld [vmem:[#allocation2 + $0x268] sm:$0xff]
    %v196 = vld [vmem:[#allocation2 + $0x270] sm:$0xff]
    %v197 = vld [vmem:[#allocation2 + $0x278] sm:$0xff]
    %v198 = vld [vmem:[#allocation2 + $0x280] sm:$0xf]
    %v199 = vld [vmem:[#allocation2 + $0x284] sm:$0xff]
    %v200 = vld [vmem:[#allocation2 + $0x28c] sm:$0xff]
    %v201 = vld [vmem:[#allocation2 + $0x294] sm:$0xff]
    %v202 = vld [vmem:[#allocation2 + $0x29c] sm:$0xf]
    %v203 = vld [vmem:[#allocation2 + $0x2a0] sm:$0xff]
    %v204 = vld [vmem:[#allocation2 + $0x2a8] sm:$0xff]
    %v205 = vld [vmem:[#allocation2 + $0x2b0] sm:$0xff]
    %v206 = vld [vmem:[#allocation2 + $0x2b8] sm:$0xf]
    %v207 = vld [vmem:[#allocation2 + $0x2bc] sm:$0xff]
    %v208 = vld [vmem:[#allocation2 + $0x2c4] sm:$0xff]
    %v209 = vld [vmem:[#allocation2 + $0x2cc] sm:$0xff]
    %v210 = vld [vmem:[#allocation2 + $0x2d4] sm:$0xf]
    %v211 = vld [vmem:[#allocation2 + $0x2d8] sm:$0xff]
    %v212 = vld [vmem:[#allocation2 + $0x2e0] sm:$0xff]
    %v213 = vld [vmem:[#allocation2 + $0x2e8] sm:$0xff]
    %v214 = vld [vmem:[#allocation2 + $0x2f0] sm:$0xf]
    %v215 = vld [vmem:[#allocation2 + $0x2f4] sm:$0xff]
    %v216 = vld [vmem:[#allocation2 + $0x2fc] sm:$0xff]
    %v217 = vld [vmem:[#allocation2 + $0x304] sm:$0xff]
    %v218 = vld [vmem:[#allocation2 + $0x30c] sm:$0xf]
    %v219 = vld [vmem:[#allocation2 + $0x310] sm:$0xff]
    %v220 = vld [vmem:[#allocation2 + $0x318] sm:$0xff]
    %v221 = vld [vmem:[#allocation2 + $0x320] sm:$0xff]
    %v222 = vld [vmem:[#allocation2 + $0x328] sm:$0xf]
    %v223 = vld [vmem:[#allocation2 + $0x32c] sm:$0xff]
    %v224 = vld [vmem:[#allocation2 + $0x334] sm:$0xff]
    %v225 = vld [vmem:[#allocation2 + $0x33c] sm:$0xff]
    %v226 = vld [vmem:[#allocation2 + $0x344] sm:$0xf]
    %v227 = vld [vmem:[#allocation2 + $0x348] sm:$0xff]
    %v228 = vld [vmem:[#allocation2 + $0x350] sm:$0xff]
    %v229 = vld [vmem:[#allocation2 + $0x358] sm:$0xff]
    %v230 = vld [vmem:[#allocation2 + $0x360] sm:$0xf]
    %v231 = vld [vmem:[#allocation2 + $0x364] sm:$0xff]
    %v232 = vld [vmem:[#allocation2 + $0x36c] sm:$0xff]
    %v233 = vld [vmem:[#allocation2 + $0x374] sm:$0xff]
    %v234 = vld [vmem:[#allocation2 + $0x37c] sm:$0xf]
    %v235 = vld [vmem:[#allocation2 + $0x380] sm:$0xff]
    %v236 = vld [vmem:[#allocation2 + $0x388] sm:$0xff]
    %v237 = vld [vmem:[#allocation2 + $0x390] sm:$0xff]
    %v238 = vld [vmem:[#allocation2 + $0x398] sm:$0xf]
    %v239 = vld [vmem:[#allocation2 + $0x39c] sm:$0xff]
    %v240 = vld [vmem:[#allocation2 + $0x3a4] sm:$0xff]
    %v241 = vld [vmem:[#allocation2 + $0x3ac] sm:$0xff]
    %v242 = vld [vmem:[#allocation2 + $0x3b4] sm:$0xf]
    %v243 = vld [vmem:[#allocation2 + $0x3b8] sm:$0xff]
    %v244 = vld [vmem:[#allocation2 + $0x3c0] sm:$0xff]
    %v245 = vld [vmem:[#allocation2 + $0x3c8] sm:$0xff]
    %v246 = vld [vmem:[#allocation2 + $0x3d0] sm:$0xf]
    %v247 = vld [vmem:[#allocation2 + $0x3d4] sm:$0xff]
    %v248 = vld [vmem:[#allocation2 + $0x3dc] sm:$0xff]
    %v249 = vld [vmem:[#allocation2 + $0x3e4] sm:$0xff]
    %v250 = vld [vmem:[#allocation2 + $0x3ec] sm:$0xf]
    %v251 = vld [vmem:[#allocation2 + $0x3f0] sm:$0xff]
    %v252 = vld [vmem:[#allocation2 + $0x3f8] sm:$0xff]
    %v253 = vld [vmem:[#allocation2 + $0x400] sm:$0xff]
    %v254 = vld [vmem:[#allocation2 + $0x408] sm:$0xf]
    %v255 = vld [vmem:[#allocation2 + $0x40c] sm:$0xff]
    %v256 = vld [vmem:[#allocation2 + $0x414] sm:$0xff]
    %v257 = vld [vmem:[#allocation2 + $0x41c] sm:$0xff]
    %v258 = vld [vmem:[#allocation2 + $0x424] sm:$0xf]
    %v259 = vld [vmem:[#allocation2 + $0x428] sm:$0xff]
    %v260 = vld [vmem:[#allocation2 + $0x430] sm:$0xff]
    %v261 = vld [vmem:[#allocation2 + $0x438] sm:$0xff]
    %v262 = vld [vmem:[#allocation2 + $0x440] sm:$0xf]
    %v263 = vld [vmem:[#allocation2 + $0x444] sm:$0xff]
    %v264 = vld [vmem:[#allocation2 + $0x44c] sm:$0xff]
    %v265 = vld [vmem:[#allocation2 + $0x454] sm:$0xff]
    %v266 = vld [vmem:[#allocation2 + $0x45c] sm:$0xf]
    %v267 = vld [vmem:[#allocation2 + $0x460] sm:$0xff]
    %v268 = vld [vmem:[#allocation2 + $0x468] sm:$0xff]
    %v269 = vld [vmem:[#allocation2 + $0x470] sm:$0xff]
    %v270 = vld [vmem:[#allocation2 + $0x478] sm:$0xf]
    %v271 = vld [vmem:[#allocation2 + $0x47c] sm:$0xff]
    %v272 = vld [vmem:[#allocation2 + $0x484] sm:$0xff]
    %v273 = vld [vmem:[#allocation2 + $0x48c] sm:$0xff]
    %v274 = vld [vmem:[#allocation2 + $0x494] sm:$0xf]
    %v275 = vld [vmem:[#allocation2 + $0x498] sm:$0xff]
    %v276 = vld [vmem:[#allocation2 + $0x4a0] sm:$0xff]
    %v277 = vld [vmem:[#allocation2 + $0x4a8] sm:$0xff]
    %v278 = vld [vmem:[#allocation2 + $0x4b0] sm:$0xf]
    %v279 = vld [vmem:[#allocation2 + $0x4b4] sm:$0xff]
    %v280 = vld [vmem:[#allocation2 + $0x4bc] sm:$0xff]
    %v281 = vld [vmem:[#allocation2 + $0x4c4] sm:$0xff]
    %v282 = vld [vmem:[#allocation2 + $0x4cc] sm:$0xf]
    %v283 = vld [vmem:[#allocation2 + $0x4d0] sm:$0xff]
    %v284 = vld [vmem:[#allocation2 + $0x4d8] sm:$0xff]
    %v285 = vld [vmem:[#allocation2 + $0x4e0] sm:$0xff]
    %v286 = vld [vmem:[#allocation2 + $0x4e8] sm:$0xf]
    %v287 = vld [vmem:[#allocation2 + $0x4ec] sm:$0xff]
    %v288 = vld [vmem:[#allocation2 + $0x4f4] sm:$0xff]
    %v289 = vld [vmem:[#allocation2 + $0x4fc] sm:$0xff]
    %v290 = vld [vmem:[#allocation2 + $0x504] sm:$0xf]
    %v291 = vld [vmem:[#allocation2 + $0x508] sm:$0xff]
    %v292 = vld [vmem:[#allocation2 + $0x510] sm:$0xff]
    %v293 = vld [vmem:[#allocation2 + $0x518] sm:$0xff]
    %v294 = vld [vmem:[#allocation2 + $0x520] sm:$0xf]
    %v295 = vld [vmem:[#allocation2 + $0x524] sm:$0xff]
    %v296 = vld [vmem:[#allocation2 + $0x52c] sm:$0xff]
    %v297 = vld [vmem:[#allocation2 + $0x534] sm:$0xff]
    %v298 = vld [vmem:[#allocation2 + $0x53c] sm:$0xf]
    %v299 = vld [vmem:[#allocation2 + $0x540] sm:$0xff]
    %v300 = vld [vmem:[#allocation2 + $0x548] sm:$0xff]
    %v301 = vld [vmem:[#allocation2 + $0x550] sm:$0xff]
    %v302 = vld [vmem:[#allocation2 + $0x558] sm:$0xf]
    %v303 = vld [vmem:[#allocation2 + $0x55c] sm:$0xff]
    %v304 = vld [vmem:[#allocation2 + $0x564] sm:$0xff]
    %v305 = vld [vmem:[#allocation2 + $0x56c] sm:$0xff]
    %v306 = vld [vmem:[#allocation2 + $0x574] sm:$0xf]
    %v307 = vld [vmem:[#allocation2 + $0x578] sm:$0xff]
    %v308 = vld [vmem:[#allocation2 + $0x580] sm:$0xff]
    %v309 = vld [vmem:[#allocation2 + $0x588] sm:$0xff]
    %v310 = vld [vmem:[#allocation2 + $0x590] sm:$0xf]
    %v311 = vld [vmem:[#allocation2 + $0x594] sm:$0xff]
    %v312 = vld [vmem:[#allocation2 + $0x59c] sm:$0xff]
    %v313 = vld [vmem:[#allocation2 + $0x5a4] sm:$0xff]
    %v314 = vld [vmem:[#allocation2 + $0x5ac] sm:$0xf]
    %v315 = vld [vmem:[#allocation2 + $0x5b0] sm:$0xff]
    %v316 = vld [vmem:[#allocation2 + $0x5b8] sm:$0xff]
    %v317 = vld [vmem:[#allocation2 + $0x5c0] sm:$0xff]
    %v318 = vld [vmem:[#allocation2 + $0x5c8] sm:$0xf]
    %v319 = vld [vmem:[#allocation2 + $0x5cc] sm:$0xff]
    %v320 = vld [vmem:[#allocation2 + $0x5d4] sm:$0xff]
    %v321 = vld [vmem:[#allocation2 + $0x5dc] sm:$0xff]
    %v322 = vld [vmem:[#allocation2 + $0x5e4] sm:$0xf]
    %v323 = vld [vmem:[#allocation2 + $0x5e8] sm:$0xff]
    %v324 = vld [vmem:[#allocation2 + $0x5f0] sm:$0xff]
    %v325 = vld [vmem:[#allocation2 + $0x5f8] sm:$0xff]
    %v326 = vld [vmem:[#allocation2 + $0x600] sm:$0xf]
    %v327 = vld [vmem:[#allocation2 + $0x604] sm:$0xff]
    %v328 = vld [vmem:[#allocation2 + $0x60c] sm:$0xff]
    %v329 = vld [vmem:[#allocation2 + $0x614] sm:$0xff]
    %v330 = vld [vmem:[#allocation2 + $0x61c] sm:$0xf]
    %v331 = vld [vmem:[#allocation2 + $0x620] sm:$0xff]
    %v332 = vld [vmem:[#allocation2 + $0x628] sm:$0xff]
    %v333 = vld [vmem:[#allocation2 + $0x630] sm:$0xff]
    %v334 = vld [vmem:[#allocation2 + $0x638] sm:$0xf]
    %v335 = vld [vmem:[#allocation2 + $0x63c] sm:$0xff]
    %v336 = vld [vmem:[#allocation2 + $0x644] sm:$0xff]
    %v337 = vld [vmem:[#allocation2 + $0x64c] sm:$0xff]
    %v338 = vld [vmem:[#allocation2 + $0x654] sm:$0xf]
    %v339 = vld [vmem:[#allocation2 + $0x658] sm:$0xff]
    %v340 = vld [vmem:[#allocation2 + $0x660] sm:$0xff]
    %v341 = vld [vmem:[#allocation2 + $0x668] sm:$0xff]
    %v342 = vld [vmem:[#allocation2 + $0x670] sm:$0xf]
    %v343 = vld [vmem:[#allocation2 + $0x674] sm:$0xff]
    %v344 = vld [vmem:[#allocation2 + $0x67c] sm:$0xff]
    %v345 = vld [vmem:[#allocation2 + $0x684] sm:$0xff]
    %v346 = vld [vmem:[#allocation2 + $0x68c] sm:$0xf]
    %v347 = vld [vmem:[#allocation2 + $0x690] sm:$0xff]
    %v348 = vld [vmem:[#allocation2 + $0x698] sm:$0xff]
    %v349 = vld [vmem:[#allocation2 + $0x6a0] sm:$0xff]
    %v350 = vld [vmem:[#allocation2 + $0x6a8] sm:$0xf]
    %v351 = vld [vmem:[#allocation2 + $0x6ac] sm:$0xff]
    %v352 = vld [vmem:[#allocation2 + $0x6b4] sm:$0xff]
    %v353 = vld [vmem:[#allocation2 + $0x6bc] sm:$0xff]
    %v354 = vld [vmem:[#allocation2 + $0x6c4] sm:$0xf]
    %v355 = vld [vmem:[#allocation2 + $0x6c8] sm:$0xff]
    %v356 = vld [vmem:[#allocation2 + $0x6d0] sm:$0xff]
    %v357 = vld [vmem:[#allocation2 + $0x6d8] sm:$0xff]
    %v358 = vld [vmem:[#allocation2 + $0x6e0] sm:$0xf]
    %v359 = vld [vmem:[#allocation2 + $0x6e4] sm:$0xff]
    %v360 = vld [vmem:[#allocation2 + $0x6ec] sm:$0xff]
    %v361 = vld [vmem:[#allocation2 + $0x6f4] sm:$0xff]
    %v362 = vld [vmem:[#allocation2 + $0x6fc] sm:$0xf]
    %v363 = vld [vmem:[#allocation2 + $0x700] sm:$0xff]
    %v364 = vld [vmem:[#allocation2 + $0x708] sm:$0xff]
    %v365 = vld [vmem:[#allocation2 + $0x710] sm:$0xff]
    %v366 = vld [vmem:[#allocation2 + $0x718] sm:$0xf]
    %v367 = vld [vmem:[#allocation2 + $0x71c] sm:$0xff]
    %v368 = vld [vmem:[#allocation2 + $0x724] sm:$0xff]
    %v369 = vld [vmem:[#allocation2 + $0x72c] sm:$0xff]
    %v370 = vld [vmem:[#allocation2 + $0x734] sm:$0xf]
    %v371 = vld [vmem:[#allocation2 + $0x738] sm:$0xff]
    %v372 = vld [vmem:[#allocation2 + $0x740] sm:$0xff]
    %v373 = vld [vmem:[#allocation2 + $0x748] sm:$0xff]
    %v374 = vld [vmem:[#allocation2 + $0x750] sm:$0xf]
    %v375 = vld [vmem:[#allocation2 + $0x754] sm:$0xff]
    %v376 = vld [vmem:[#allocation2 + $0x75c] sm:$0xff]
    %v377 = vld [vmem:[#allocation2 + $0x764] sm:$0xff]
    %v378 = vld [vmem:[#allocation2 + $0x76c] sm:$0xf]
    %v379 = vld [vmem:[#allocation2 + $0x770] sm:$0xff]
    %v380 = vld [vmem:[#allocation2 + $0x778] sm:$0xff]
    %v381 = vld [vmem:[#allocation2 + $0x780] sm:$0xff]
    %v382 = vld [vmem:[#allocation2 + $0x788] sm:$0xf]
    %v383 = vld [vmem:[#allocation2 + $0x78c] sm:$0xff]
    %v384 = vld [vmem:[#allocation2 + $0x794] sm:$0xff]
    %v385 = vld [vmem:[#allocation2 + $0x79c] sm:$0xff]
    %v386 = vld [vmem:[#allocation2 + $0x7a4] sm:$0xf]
    %v387 = vld [vmem:[#allocation2 + $0x7a8] sm:$0xff]
    %v388 = vld [vmem:[#allocation2 + $0x7b0] sm:$0xff]
    %v389 = vld [vmem:[#allocation2 + $0x7b8] sm:$0xff]
    %v390 = vld [vmem:[#allocation2 + $0x7c0] sm:$0xf]
    %v391 = vld [vmem:[#allocation2 + $0x7c4] sm:$0xff]
    %v392 = vld [vmem:[#allocation2 + $0x7cc] sm:$0xff]
    %v393 = vld [vmem:[#allocation2 + $0x7d4] sm:$0xff]
    %v394 = vld [vmem:[#allocation2 + $0x7dc] sm:$0xf]
    %v395 = vld [vmem:[#allocation2 + $0x7e0] sm:$0xff]
    %v396 = vld [vmem:[#allocation2 + $0x7e8] sm:$0xff]
    %v397 = vld [vmem:[#allocation2 + $0x7f0] sm:$0xff]
    %v398 = vld [vmem:[#allocation2 + $0x7f8] sm:$0xf]
    %v399 = vld [vmem:[#allocation2 + $0x7fc] sm:$0xff]
    %v400 = vld [vmem:[#allocation2 + $0x804] sm:$0xff]
    %v401 = vld [vmem:[#allocation2 + $0x80c] sm:$0xff]
    %v402 = vld [vmem:[#allocation2 + $0x814] sm:$0xf]
    %v403 = vld [vmem:[#allocation2 + $0x818] sm:$0xff]
    %v404 = vld [vmem:[#allocation2 + $0x820] sm:$0xff]
    %v405 = vld [vmem:[#allocation2 + $0x828] sm:$0xff]
    %v406 = vld [vmem:[#allocation2 + $0x830] sm:$0xf]
    %v407 = vld [vmem:[#allocation2 + $0x834] sm:$0xff]
    %v408 = vld [vmem:[#allocation2 + $0x83c] sm:$0xff]
    %v409 = vld [vmem:[#allocation2 + $0x844] sm:$0xff]
    %v410 = vld [vmem:[#allocation2 + $0x84c] sm:$0xf]
    %v411 = vld [vmem:[#allocation2 + $0x850] sm:$0xff]
    %v412 = vld [vmem:[#allocation2 + $0x858] sm:$0xff]
    %v413 = vld [vmem:[#allocation2 + $0x860] sm:$0xff]
    %v414 = vld [vmem:[#allocation2 + $0x868] sm:$0xf]
    %v415 = vld [vmem:[#allocation2 + $0x86c] sm:$0xff]
    %v416 = vld [vmem:[#allocation2 + $0x874] sm:$0xff]
    %v417 = vld [vmem:[#allocation2 + $0x87c] sm:$0xff]
    %v418 = vld [vmem:[#allocation2 + $0x884] sm:$0xf]
    %v419 = vld [vmem:[#allocation2 + $0x888] sm:$0xff]
    %v420 = vld [vmem:[#allocation2 + $0x890] sm:$0xff]
    %v421 = vld [vmem:[#allocation2 + $0x898] sm:$0xff]
    %v422 = vld [vmem:[#allocation2 + $0x8a0] sm:$0xf]
    %v423 = vld [vmem:[#allocation2 + $0x8a4] sm:$0xff]
    %v424 = vld [vmem:[#allocation2 + $0x8ac] sm:$0xff]
    %v425 = vld [vmem:[#allocation2 + $0x8b4] sm:$0xff]
    %v426 = vld [vmem:[#allocation2 + $0x8bc] sm:$0xf]
    %v427 = vld [vmem:[#allocation2 + $0x8c0] sm:$0xff]
    %v428 = vld [vmem:[#allocation2 + $0x8c8] sm:$0xff]
    %v429 = vld [vmem:[#allocation2 + $0x8d0] sm:$0xff]
    %v430 = vld [vmem:[#allocation2 + $0x8d8] sm:$0xf]
    %v431 = vld [vmem:[#allocation2 + $0x8dc] sm:$0xff]
    %v432 = vld [vmem:[#allocation2 + $0x8e4] sm:$0xff]
    %v433 = vld [vmem:[#allocation2 + $0x8ec] sm:$0xff]
    %v434 = vld [vmem:[#allocation2 + $0x8f4] sm:$0xf]
    %v435 = vld [vmem:[#allocation2 + $0x8f8] sm:$0xff]
    %v436 = vld [vmem:[#allocation2 + $0x900] sm:$0xff]
    %v437 = vld [vmem:[#allocation2 + $0x908] sm:$0xff]
    %v438 = vld [vmem:[#allocation2 + $0x910] sm:$0xf]
    %v439 = vld [vmem:[#allocation2 + $0x914] sm:$0xff]
    %v440 = vld [vmem:[#allocation2 + $0x91c] sm:$0xff]
    %v441 = vld [vmem:[#allocation2 + $0x924] sm:$0xff]
    %v442 = vld [vmem:[#allocation2 + $0x92c] sm:$0xf]
    %v443 = vld [vmem:[#allocation2 + $0x930] sm:$0xff]
    %v444 = vld [vmem:[#allocation2 + $0x938] sm:$0xff]
    %v445 = vld [vmem:[#allocation2 + $0x940] sm:$0xff]
    %v446 = vld [vmem:[#allocation2 + $0x948] sm:$0xf]
    %v447 = vld [vmem:[#allocation2 + $0x94c] sm:$0xff]
    %v448 = vld [vmem:[#allocation2 + $0x954] sm:$0xff]
    %v449 = vld [vmem:[#allocation2 + $0x95c] sm:$0xff]
    %v450 = vld [vmem:[#allocation2 + $0x964] sm:$0xf]
    %v451 = vld [vmem:[#allocation2 + $0x968] sm:$0xff]
    %v452 = vld [vmem:[#allocation2 + $0x970] sm:$0xff]
    %v453 = vld [vmem:[#allocation2 + $0x978] sm:$0xff]
    %v454 = vld [vmem:[#allocation2 + $0x980] sm:$0xf]
    %v455 = vld [vmem:[#allocation2 + $0x984] sm:$0xff]
    %v456 = vld [vmem:[#allocation2 + $0x98c] sm:$0xff]
    %v457 = vld [vmem:[#allocation2 + $0x994] sm:$0xff]
    %v458 = vld [vmem:[#allocation2 + $0x99c] sm:$0xf]
    %v459 = vld [vmem:[#allocation2 + $0x9a0] sm:$0xff]
    %v460 = vld [vmem:[#allocation2 + $0x9a8] sm:$0xff]
    %v461 = vld [vmem:[#allocation2 + $0x9b0] sm:$0xff]
    %v462 = vld [vmem:[#allocation2 + $0x9b8] sm:$0xf]
    %v463 = vld [vmem:[#allocation2 + $0x9bc] sm:$0xff]
    %v464 = vld [vmem:[#allocation2 + $0x9c4] sm:$0xff]
    %v465 = vld [vmem:[#allocation2 + $0x9cc] sm:$0xff]
    %v466 = vld [vmem:[#allocation2 + $0x9d4] sm:$0xf]
    %v467 = vld [vmem:[#allocation2 + $0x9d8] sm:$0xff]
    %v468 = vld [vmem:[#allocation2 + $0x9e0] sm:$0xff]
    %v469 = vld [vmem:[#allocation2 + $0x9e8] sm:$0xff]
    %v470 = vld [vmem:[#allocation2 + $0x9f0] sm:$0xf]
    %v471 = vld [vmem:[#allocation2 + $0x9f4] sm:$0xff]
    %v472 = vld [vmem:[#allocation2 + $0x9fc] sm:$0xff]
    %v473 = vld [vmem:[#allocation2 + $0xa04] sm:$0xff]
    %v474 = vld [vmem:[#allocation2 + $0xa0c] sm:$0xf]
    %v475 = vld [vmem:[#allocation2 + $0xa10] sm:$0xff]
    %v476 = vld [vmem:[#allocation2 + $0xa18] sm:$0xff]
    %v477 = vld [vmem:[#allocation2 + $0xa20] sm:$0xff]
    %v478 = vld [vmem:[#allocation2 + $0xa28] sm:$0xf]
    %v479 = vld [vmem:[#allocation2 + $0xa2c] sm:$0xff]
    %v480 = vld [vmem:[#allocation2 + $0xa34] sm:$0xff]
    %v481 = vld [vmem:[#allocation2 + $0xa3c] sm:$0xff]
    %v482 = vld [vmem:[#allocation2 + $0xa44] sm:$0xf]
    %v483 = vld [vmem:[#allocation2 + $0xa48] sm:$0xff]
    %v484 = vld [vmem:[#allocation2 + $0xa50] sm:$0xff]
    %v485 = vld [vmem:[#allocation2 + $0xa58] sm:$0xff]
    %v486 = vld [vmem:[#allocation2 + $0xa60] sm:$0xf]
    %v487 = vld [vmem:[#allocation2 + $0xa64] sm:$0xff]
    %v488 = vld [vmem:[#allocation2 + $0xa6c] sm:$0xff]
    %v489 = vld [vmem:[#allocation2 + $0xa74] sm:$0xff]
    %v490 = vld [vmem:[#allocation2 + $0xa7c] sm:$0xf]
    %v491 = vld [vmem:[#allocation2 + $0xa80] sm:$0xff]
    %v492 = vld [vmem:[#allocation2 + $0xa88] sm:$0xff]
    %v493 = vld [vmem:[#allocation2 + $0xa90] sm:$0xff]
    %v494 = vld [vmem:[#allocation2 + $0xa98] sm:$0xf]
    %v495 = vld [vmem:[#allocation2 + $0xa9c] sm:$0xff]
    %v496 = vld [vmem:[#allocation2 + $0xaa4] sm:$0xff]
    %v497 = vld [vmem:[#allocation2 + $0xaac] sm:$0xff]
    %v498 = vld [vmem:[#allocation2 + $0xab4] sm:$0xf]
    %v499 = vld [vmem:[#allocation4] sm:$0x7f]
    %v501 = vlaneseq
    %v502 = vshrl.u32 %v501, 7
    %v503 = vsub.s32 0, %v502
    %v504 = vrot.slane %v499, %v503
    %v505 = vlaneseq
    %v506 = vshrl.u32 %v505, 7
    %v507 = vsub.s32 1, %v506
    %v508 = vrot.slane %v499, %v507
    %v509 = vlaneseq
    %v510 = vshrl.u32 %v509, 7
    %v511 = vsub.s32 2, %v510
    %v512 = vrot.slane %v499, %v511
    %v513 = vlaneseq
    %v514 = vshrl.u32 %v513, 7
    %v515 = vsub.s32 3, %v514
    %v516 = vrot.slane %v499, %v515
    %v517 = vlaneseq
    %v518 = vshrl.u32 %v517, 7
    %v519 = vsub.s32 4, %v518
    %v520 = vrot.slane %v499, %v519
    %v521 = vlaneseq
    %v522 = vshrl.u32 %v521, 7
    %v523 = vsub.s32 5, %v522
    %v524 = vrot.slane %v499, %v523
    %v525 = vlaneseq
    %v526 = vshrl.u32 %v525, 7
    %v527 = vsub.s32 6, %v526
    %v528 = vrot.slane %v499, %v527
    %v540 = vunpack.c.l.b16 %v103
    %v541 = vunpack.c.h.b16 %v103
    %v542 = vunpack.c.l.b16 %v104
    %v543 = vunpack.c.h.b16 %v104
    %v544 = vunpack.c.l.b16 %v105
    %v545 = vunpack.c.h.b16 %v105
    %v546 = vunpack.c.l.b16 %v106
    %v547 = vpack.c.b16 %v540, %v540
    %v548 = vpack.c.b16 %v541, %v541
    %v549 = vpack.c.b16 %v542, %v542
    %v550 = vpack.c.b16 %v543, %v543
    %v551 = vpack.c.b16 %v544, %v544
    %v552 = vpack.c.b16 %v545, %v545
    %v553 = vpack.c.b16 %v546, %v546
    %v952 = vunpack.c.l.b16 %v107
    %v953 = vunpack.c.h.b16 %v107
    %v954 = vunpack.c.l.b16 %v108
    %v955 = vunpack.c.h.b16 %v108
    %v956 = vunpack.c.l.b16 %v109
    %v957 = vunpack.c.h.b16 %v109
    %v958 = vunpack.c.l.b16 %v110
    %v959 = vunpack.c.l.b16 %v111
    %v960 = vunpack.c.h.b16 %v111
    %v961 = vunpack.c.l.b16 %v112
    %v962 = vunpack.c.h.b16 %v112
    %v963 = vunpack.c.l.b16 %v113
    %v964 = vunpack.c.h.b16 %v113
    %v965 = vunpack.c.l.b16 %v114
    %v966 = vunpack.c.l.b16 %v115
    %v967 = vunpack.c.h.b16 %v115
    %v968 = vunpack.c.l.b16 %v116
    %v969 = vunpack.c.h.b16 %v116
    %v970 = vunpack.c.l.b16 %v117
    %v971 = vunpack.c.h.b16 %v117
    %v972 = vunpack.c.l.b16 %v118
    %v973 = vunpack.c.l.b16 %v119
    %v974 = vunpack.c.h.b16 %v119
    %v975 = vunpack.c.l.b16 %v120
    %v976 = vunpack.c.h.b16 %v120
    %v977 = vunpack.c.l.b16 %v121
    %v978 = vunpack.c.h.b16 %v121
    %v979 = vunpack.c.l.b16 %v122
    %v980 = vunpack.c.l.b16 %v123
    %v981 = vunpack.c.h.b16 %v123
    %v982 = vunpack.c.l.b16 %v124
    %v983 = vunpack.c.h.b16 %v124
    %v984 = vunpack.c.l.b16 %v125
    %v985 = vunpack.c.h.b16 %v125
    %v986 = vunpack.c.l.b16 %v126
    %v987 = vunpack.c.l.b16 %v127
    %v988 = vunpack.c.h.b16 %v127
    %v989 = vunpack.c.l.b16 %v128
    %v990 = vunpack.c.h.b16 %v128
    %v991 = vunpack.c.l.b16 %v129
    %v992 = vunpack.c.h.b16 %v129
    %v993 = vunpack.c.l.b16 %v130
    %v994 = vunpack.c.l.b16 %v131
    %v995 = vunpack.c.h.b16 %v131
    %v996 = vunpack.c.l.b16 %v132
    %v997 = vunpack.c.h.b16 %v132
    %v998 = vunpack.c.l.b16 %v133
    %v999 = vunpack.c.h.b16 %v133
    %v1000 = vunpack.c.l.b16 %v134
    %v1001 = vunpack.c.l.b16 %v135
    %v1002 = vunpack.c.h.b16 %v135
    %v1003 = vunpack.c.l.b16 %v136
    %v1004 = vunpack.c.h.b16 %v136
    %v1005 = vunpack.c.l.b16 %v137
    %v1006 = vunpack.c.h.b16 %v137
    %v1007 = vunpack.c.l.b16 %v138
    %v1008 = vunpack.c.l.b16 %v139
    %v1009 = vunpack.c.h.b16 %v139
    %v1010 = vunpack.c.l.b16 %v140
    %v1011 = vunpack.c.h.b16 %v140
    %v1012 = vunpack.c.l.b16 %v141
    %v1013 = vunpack.c.h.b16 %v141
    %v1014 = vunpack.c.l.b16 %v142
    %v1015 = vunpack.c.l.b16 %v143
    %v1016 = vunpack.c.h.b16 %v143
    %v1017 = vunpack.c.l.b16 %v144
    %v1018 = vunpack.c.h.b16 %v144
    %v1019 = vunpack.c.l.b16 %v145
    %v1020 = vunpack.c.h.b16 %v145
    %v1021 = vunpack.c.l.b16 %v146
    %v1022 = vunpack.c.l.b16 %v147
    %v1023 = vunpack.c.h.b16 %v147
    %v1024 = vunpack.c.l.b16 %v148
    %v1025 = vunpack.c.h.b16 %v148
    %v1026 = vunpack.c.l.b16 %v149
    %v1027 = vunpack.c.h.b16 %v149
    %v1028 = vunpack.c.l.b16 %v150
    %v1029 = vunpack.c.l.b16 %v151
    %v1030 = vunpack.c.h.b16 %v151
    %v1031 = vunpack.c.l.b16 %v152
    %v1032 = vunpack.c.h.b16 %v152
    %v1033 = vunpack.c.l.b16 %v153
    %v1034 = vunpack.c.h.b16 %v153
    %v1035 = vunpack.c.l.b16 %v154
    %v1036 = vunpack.c.l.b16 %v155
    %v1037 = vunpack.c.h.b16 %v155
    %v1038 = vunpack.c.l.b16 %v156
    %v1039 = vunpack.c.h.b16 %v156
    %v1040 = vunpack.c.l.b16 %v157
    %v1041 = vunpack.c.h.b16 %v157
    %v1042 = vunpack.c.l.b16 %v158
    %v1043 = vunpack.c.l.b16 %v159
    %v1044 = vunpack.c.h.b16 %v159
    %v1045 = vunpack.c.l.b16 %v160
    %v1046 = vunpack.c.h.b16 %v160
    %v1047 = vunpack.c.l.b16 %v161
    %v1048 = vunpack.c.h.b16 %v161
    %v1049 = vunpack.c.l.b16 %v162
    %v1050 = vunpack.c.l.b16 %v163
    %v1051 = vunpack.c.h.b16 %v163
    %v1052 = vunpack.c.l.b16 %v164
    %v1053 = vunpack.c.h.b16 %v164
    %v1054 = vunpack.c.l.b16 %v165
    %v1055 = vunpack.c.h.b16 %v165
    %v1056 = vunpack.c.l.b16 %v166
    %v1057 = vunpack.c.l.b16 %v167
    %v1058 = vunpack.c.h.b16 %v167
    %v1059 = vunpack.c.l.b16 %v168
    %v1060 = vunpack.c.h.b16 %v168
    %v1061 = vunpack.c.l.b16 %v169
    %v1062 = vunpack.c.h.b16 %v169
    %v1063 = vunpack.c.l.b16 %v170
    %v1064 = vunpack.c.l.b16 %v171
    %v1065 = vunpack.c.h.b16 %v171
    %v1066 = vunpack.c.l.b16 %v172
    %v1067 = vunpack.c.h.b16 %v172
    %v1068 = vunpack.c.l.b16 %v173
    %v1069 = vunpack.c.h.b16 %v173
    %v1070 = vunpack.c.l.b16 %v174
    %v1071 = vunpack.c.l.b16 %v175
    %v1072 = vunpack.c.h.b16 %v175
    %v1073 = vunpack.c.l.b16 %v176
    %v1074 = vunpack.c.h.b16 %v176
    %v1075 = vunpack.c.l.b16 %v177
    %v1076 = vunpack.c.h.b16 %v177
    %v1077 = vunpack.c.l.b16 %v178
    %v1078 = vunpack.c.l.b16 %v179
    %v1079 = vunpack.c.h.b16 %v179
    %v1080 = vunpack.c.l.b16 %v180
    %v1081 = vunpack.c.h.b16 %v180
    %v1082 = vunpack.c.l.b16 %v181
    %v1083 = vunpack.c.h.b16 %v181
    %v1084 = vunpack.c.l.b16 %v182
    %v1085 = vunpack.c.l.b16 %v183
    %v1086 = vunpack.c.h.b16 %v183
    %v1087 = vunpack.c.l.b16 %v184
    %v1088 = vunpack.c.h.b16 %v184
    %v1089 = vunpack.c.l.b16 %v185
    %v1090 = vunpack.c.h.b16 %v185
    %v1091 = vunpack.c.l.b16 %v186
    %v1092 = vunpack.c.l.b16 %v187
    %v1093 = vunpack.c.h.b16 %v187
    %v1094 = vunpack.c.l.b16 %v188
    %v1095 = vunpack.c.h.b16 %v188
    %v1096 = vunpack.c.l.b16 %v189
    %v1097 = vunpack.c.h.b16 %v189
    %v1098 = vunpack.c.l.b16 %v190
    %v1099 = vunpack.c.l.b16 %v191
    %v1100 = vunpack.c.h.b16 %v191
    %v1101 = vunpack.c.l.b16 %v192
    %v1102 = vunpack.c.h.b16 %v192
    %v1103 = vunpack.c.l.b16 %v193
    %v1104 = vunpack.c.h.b16 %v193
    %v1105 = vunpack.c.l.b16 %v194
    %v1106 = vunpack.c.l.b16 %v195
    %v1107 = vunpack.c.h.b16 %v195
    %v1108 = vunpack.c.l.b16 %v196
    %v1109 = vunpack.c.h.b16 %v196
    %v1110 = vunpack.c.l.b16 %v197
    %v1111 = vunpack.c.h.b16 %v197
    %v1112 = vunpack.c.l.b16 %v198
    %v1113 = vunpack.c.l.b16 %v199
    %v1114 = vunpack.c.h.b16 %v199
    %v1115 = vunpack.c.l.b16 %v200
    %v1116 = vunpack.c.h.b16 %v200
    %v1117 = vunpack.c.l.b16 %v201
    %v1118 = vunpack.c.h.b16 %v201
    %v1119 = vunpack.c.l.b16 %v202
    %v1120 = vunpack.c.l.b16 %v203
    %v1121 = vunpack.c.h.b16 %v203
    %v1122 = vunpack.c.l.b16 %v204
    %v1123 = vunpack.c.h.b16 %v204
    %v1124 = vunpack.c.l.b16 %v205
    %v1125 = vunpack.c.h.b16 %v205
    %v1126 = vunpack.c.l.b16 %v206
    %v1127 = vunpack.c.l.b16 %v207
    %v1128 = vunpack.c.h.b16 %v207
    %v1129 = vunpack.c.l.b16 %v208
    %v1130 = vunpack.c.h.b16 %v208
    %v1131 = vunpack.c.l.b16 %v209
    %v1132 = vunpack.c.h.b16 %v209
    %v1133 = vunpack.c.l.b16 %v210
    %v1134 = vunpack.c.l.b16 %v211
    %v1135 = vunpack.c.h.b16 %v211
    %v1136 = vunpack.c.l.b16 %v212
    %v1137 = vunpack.c.h.b16 %v212
    %v1138 = vunpack.c.l.b16 %v213
    %v1139 = vunpack.c.h.b16 %v213
    %v1140 = vunpack.c.l.b16 %v214
    %v1141 = vunpack.c.l.b16 %v215
    %v1142 = vunpack.c.h.b16 %v215
    %v1143 = vunpack.c.l.b16 %v216
    %v1144 = vunpack.c.h.b16 %v216
    %v1145 = vunpack.c.l.b16 %v217
    %v1146 = vunpack.c.h.b16 %v217
    %v1147 = vunpack.c.l.b16 %v218
    %v1148 = vunpack.c.l.b16 %v219
    %v1149 = vunpack.c.h.b16 %v219
    %v1150 = vunpack.c.l.b16 %v220
    %v1151 = vunpack.c.h.b16 %v220
    %v1152 = vunpack.c.l.b16 %v221
    %v1153 = vunpack.c.h.b16 %v221
    %v1154 = vunpack.c.l.b16 %v222
    %v1155 = vunpack.c.l.b16 %v223
    %v1156 = vunpack.c.h.b16 %v223
    %v1157 = vunpack.c.l.b16 %v224
    %v1158 = vunpack.c.h.b16 %v224
    %v1159 = vunpack.c.l.b16 %v225
    %v1160 = vunpack.c.h.b16 %v225
    %v1161 = vunpack.c.l.b16 %v226
    %v1162 = vunpack.c.l.b16 %v227
    %v1163 = vunpack.c.h.b16 %v227
    %v1164 = vunpack.c.l.b16 %v228
    %v1165 = vunpack.c.h.b16 %v228
    %v1166 = vunpack.c.l.b16 %v229
    %v1167 = vunpack.c.h.b16 %v229
    %v1168 = vunpack.c.l.b16 %v230
    %v1169 = vunpack.c.l.b16 %v231
    %v1170 = vunpack.c.h.b16 %v231
    %v1171 = vunpack.c.l.b16 %v232
    %v1172 = vunpack.c.h.b16 %v232
    %v1173 = vunpack.c.l.b16 %v233
    %v1174 = vunpack.c.h.b16 %v233
    %v1175 = vunpack.c.l.b16 %v234
    %v1176 = vunpack.c.l.b16 %v235
    %v1177 = vunpack.c.h.b16 %v235
    %v1178 = vunpack.c.l.b16 %v236
    %v1179 = vunpack.c.h.b16 %v236
    %v1180 = vunpack.c.l.b16 %v237
    %v1181 = vunpack.c.h.b16 %v237
    %v1182 = vunpack.c.l.b16 %v238
    %v1183 = vunpack.c.l.b16 %v239
    %v1184 = vunpack.c.h.b16 %v239
    %v1185 = vunpack.c.l.b16 %v240
    %v1186 = vunpack.c.h.b16 %v240
    %v1187 = vunpack.c.l.b16 %v241
    %v1188 = vunpack.c.h.b16 %v241
    %v1189 = vunpack.c.l.b16 %v242
    %v1190 = vunpack.c.l.b16 %v243
    %v1191 = vunpack.c.h.b16 %v243
    %v1192 = vunpack.c.l.b16 %v244
    %v1193 = vunpack.c.h.b16 %v244
    %v1194 = vunpack.c.l.b16 %v245
    %v1195 = vunpack.c.h.b16 %v245
    %v1196 = vunpack.c.l.b16 %v246
    %v1197 = vunpack.c.l.b16 %v247
    %v1198 = vunpack.c.h.b16 %v247
    %v1199 = vunpack.c.l.b16 %v248
    %v1200 = vunpack.c.h.b16 %v248
    %v1201 = vunpack.c.l.b16 %v249
    %v1202 = vunpack.c.h.b16 %v249
    %v1203 = vunpack.c.l.b16 %v250
    %v1204 = vunpack.c.l.b16 %v251
    %v1205 = vunpack.c.h.b16 %v251
    %v1206 = vunpack.c.l.b16 %v252
    %v1207 = vunpack.c.h.b16 %v252
    %v1208 = vunpack.c.l.b16 %v253
    %v1209 = vunpack.c.h.b16 %v253
    %v1210 = vunpack.c.l.b16 %v254
    %v1211 = vunpack.c.l.b16 %v255
    %v1212 = vunpack.c.h.b16 %v255
    %v1213 = vunpack.c.l.b16 %v256
    %v1214 = vunpack.c.h.b16 %v256
    %v1215 = vunpack.c.l.b16 %v257
    %v1216 = vunpack.c.h.b16 %v257
    %v1217 = vunpack.c.l.b16 %v258
    %v1218 = vunpack.c.l.b16 %v259
    %v1219 = vunpack.c.h.b16 %v259
    %v1220 = vunpack.c.l.b16 %v260
    %v1221 = vunpack.c.h.b16 %v260
    %v1222 = vunpack.c.l.b16 %v261
    %v1223 = vunpack.c.h.b16 %v261
    %v1224 = vunpack.c.l.b16 %v262
    %v1225 = vunpack.c.l.b16 %v263
    %v1226 = vunpack.c.h.b16 %v263
    %v1227 = vunpack.c.l.b16 %v264
    %v1228 = vunpack.c.h.b16 %v264
    %v1229 = vunpack.c.l.b16 %v265
    %v1230 = vunpack.c.h.b16 %v265
    %v1231 = vunpack.c.l.b16 %v266
    %v1232 = vunpack.c.l.b16 %v267
    %v1233 = vunpack.c.h.b16 %v267
    %v1234 = vunpack.c.l.b16 %v268
    %v1235 = vunpack.c.h.b16 %v268
    %v1236 = vunpack.c.l.b16 %v269
    %v1237 = vunpack.c.h.b16 %v269
    %v1238 = vunpack.c.l.b16 %v270
    %v1239 = vunpack.c.l.b16 %v271
    %v1240 = vunpack.c.h.b16 %v271
    %v1241 = vunpack.c.l.b16 %v272
    %v1242 = vunpack.c.h.b16 %v272
    %v1243 = vunpack.c.l.b16 %v273
    %v1244 = vunpack.c.h.b16 %v273
    %v1245 = vunpack.c.l.b16 %v274
    %v1246 = vunpack.c.l.b16 %v275
    %v1247 = vunpack.c.h.b16 %v275
    %v1248 = vunpack.c.l.b16 %v276
    %v1249 = vunpack.c.h.b16 %v276
    %v1250 = vunpack.c.l.b16 %v277
    %v1251 = vunpack.c.h.b16 %v277
    %v1252 = vunpack.c.l.b16 %v278
    %v1253 = vunpack.c.l.b16 %v279
    %v1254 = vunpack.c.h.b16 %v279
    %v1255 = vunpack.c.l.b16 %v280
    %v1256 = vunpack.c.h.b16 %v280
    %v1257 = vunpack.c.l.b16 %v281
    %v1258 = vunpack.c.h.b16 %v281
    %v1259 = vunpack.c.l.b16 %v282
    %v1260 = vunpack.c.l.b16 %v283
    %v1261 = vunpack.c.h.b16 %v283
    %v1262 = vunpack.c.l.b16 %v284
    %v1263 = vunpack.c.h.b16 %v284
    %v1264 = vunpack.c.l.b16 %v285
    %v1265 = vunpack.c.h.b16 %v285
    %v1266 = vunpack.c.l.b16 %v286
    %v1267 = vunpack.c.l.b16 %v287
    %v1268 = vunpack.c.h.b16 %v287
    %v1269 = vunpack.c.l.b16 %v288
    %v1270 = vunpack.c.h.b16 %v288
    %v1271 = vunpack.c.l.b16 %v289
    %v1272 = vunpack.c.h.b16 %v289
    %v1273 = vunpack.c.l.b16 %v290
    %v1274 = vunpack.c.l.b16 %v291
    %v1275 = vunpack.c.h.b16 %v291
    %v1276 = vunpack.c.l.b16 %v292
    %v1277 = vunpack.c.h.b16 %v292
    %v1278 = vunpack.c.l.b16 %v293
    %v1279 = vunpack.c.h.b16 %v293
    %v1280 = vunpack.c.l.b16 %v294
    %v1281 = vunpack.c.l.b16 %v295
    %v1282 = vunpack.c.h.b16 %v295
    %v1283 = vunpack.c.l.b16 %v296
    %v1284 = vunpack.c.h.b16 %v296
    %v1285 = vunpack.c.l.b16 %v297
    %v1286 = vunpack.c.h.b16 %v297
    %v1287 = vunpack.c.l.b16 %v298
    %v1288 = vunpack.c.l.b16 %v299
    %v1289 = vunpack.c.h.b16 %v299
    %v1290 = vunpack.c.l.b16 %v300
    %v1291 = vunpack.c.h.b16 %v300
    %v1292 = vunpack.c.l.b16 %v301
    %v1293 = vunpack.c.h.b16 %v301
    %v1294 = vunpack.c.l.b16 %v302
    %v1295 = vunpack.c.l.b16 %v303
    %v1296 = vunpack.c.h.b16 %v303
    %v1297 = vunpack.c.l.b16 %v304
    %v1298 = vunpack.c.h.b16 %v304
    %v1299 = vunpack.c.l.b16 %v305
    %v1300 = vunpack.c.h.b16 %v305
    %v1301 = vunpack.c.l.b16 %v306
    %v1302 = vunpack.c.l.b16 %v307
    %v1303 = vunpack.c.h.b16 %v307
    %v1304 = vunpack.c.l.b16 %v308
    %v1305 = vunpack.c.h.b16 %v308
    %v1306 = vunpack.c.l.b16 %v309
    %v1307 = vunpack.c.h.b16 %v309
    %v1308 = vunpack.c.l.b16 %v310
    %v1309 = vunpack.c.l.b16 %v311
    %v1310 = vunpack.c.h.b16 %v311
    %v1311 = vunpack.c.l.b16 %v312
    %v1312 = vunpack.c.h.b16 %v312
    %v1313 = vunpack.c.l.b16 %v313
    %v1314 = vunpack.c.h.b16 %v313
    %v1315 = vunpack.c.l.b16 %v314
    %v1316 = vunpack.c.l.b16 %v315
    %v1317 = vunpack.c.h.b16 %v315
    %v1318 = vunpack.c.l.b16 %v316
    %v1319 = vunpack.c.h.b16 %v316
    %v1320 = vunpack.c.l.b16 %v317
    %v1321 = vunpack.c.h.b16 %v317
    %v1322 = vunpack.c.l.b16 %v318
    %v1323 = vunpack.c.l.b16 %v319
    %v1324 = vunpack.c.h.b16 %v319
    %v1325 = vunpack.c.l.b16 %v320
    %v1326 = vunpack.c.h.b16 %v320
    %v1327 = vunpack.c.l.b16 %v321
    %v1328 = vunpack.c.h.b16 %v321
    %v1329 = vunpack.c.l.b16 %v322
    %v1330 = vunpack.c.l.b16 %v323
    %v1331 = vunpack.c.h.b16 %v323
    %v1332 = vunpack.c.l.b16 %v324
    %v1333 = vunpack.c.h.b16 %v324
    %v1334 = vunpack.c.l.b16 %v325
    %v1335 = vunpack.c.h.b16 %v325
    %v1336 = vunpack.c.l.b16 %v326
    %v1337 = vunpack.c.l.b16 %v327
    %v1338 = vunpack.c.h.b16 %v327
    %v1339 = vunpack.c.l.b16 %v328
    %v1340 = vunpack.c.h.b16 %v328
    %v1341 = vunpack.c.l.b16 %v329
    %v1342 = vunpack.c.h.b16 %v329
    %v1343 = vunpack.c.l.b16 %v330
    %v1344 = vunpack.c.l.b16 %v331
    %v1345 = vunpack.c.h.b16 %v331
    %v1346 = vunpack.c.l.b16 %v332
    %v1347 = vunpack.c.h.b16 %v332
    %v1348 = vunpack.c.l.b16 %v333
    %v1349 = vunpack.c.h.b16 %v333
    %v1350 = vunpack.c.l.b16 %v334
    %v1351 = vunpack.c.l.b16 %v335
    %v1352 = vunpack.c.h.b16 %v335
    %v1353 = vunpack.c.l.b16 %v336
    %v1354 = vunpack.c.h.b16 %v336
    %v1355 = vunpack.c.l.b16 %v337
    %v1356 = vunpack.c.h.b16 %v337
    %v1357 = vunpack.c.l.b16 %v338
    %v1358 = vunpack.c.l.b16 %v339
    %v1359 = vunpack.c.h.b16 %v339
    %v1360 = vunpack.c.l.b16 %v340
    %v1361 = vunpack.c.h.b16 %v340
    %v1362 = vunpack.c.l.b16 %v341
    %v1363 = vunpack.c.h.b16 %v341
    %v1364 = vunpack.c.l.b16 %v342
    %v1365 = vunpack.c.l.b16 %v343
    %v1366 = vunpack.c.h.b16 %v343
    %v1367 = vunpack.c.l.b16 %v344
    %v1368 = vunpack.c.h.b16 %v344
    %v1369 = vunpack.c.l.b16 %v345
    %v1370 = vunpack.c.h.b16 %v345
    %v1371 = vunpack.c.l.b16 %v346
    %v1372 = vunpack.c.l.b16 %v347
    %v1373 = vunpack.c.h.b16 %v347
    %v1374 = vunpack.c.l.b16 %v348
    %v1375 = vunpack.c.h.b16 %v348
    %v1376 = vunpack.c.l.b16 %v349
    %v1377 = vunpack.c.h.b16 %v349
    %v1378 = vunpack.c.l.b16 %v350
    %v1379 = vunpack.c.l.b16 %v351
    %v1380 = vunpack.c.h.b16 %v351
    %v1381 = vunpack.c.l.b16 %v352
    %v1382 = vunpack.c.h.b16 %v352
    %v1383 = vunpack.c.l.b16 %v353
    %v1384 = vunpack.c.h.b16 %v353
    %v1385 = vunpack.c.l.b16 %v354
    %v1386 = vunpack.c.l.b16 %v355
    %v1387 = vunpack.c.h.b16 %v355
    %v1388 = vunpack.c.l.b16 %v356
    %v1389 = vunpack.c.h.b16 %v356
    %v1390 = vunpack.c.l.b16 %v357
    %v1391 = vunpack.c.h.b16 %v357
    %v1392 = vunpack.c.l.b16 %v358
    %v1393 = vunpack.c.l.b16 %v359
    %v1394 = vunpack.c.h.b16 %v359
    %v1395 = vunpack.c.l.b16 %v360
    %v1396 = vunpack.c.h.b16 %v360
    %v1397 = vunpack.c.l.b16 %v361
    %v1398 = vunpack.c.h.b16 %v361
    %v1399 = vunpack.c.l.b16 %v362
    %v1400 = vunpack.c.l.b16 %v363
    %v1401 = vunpack.c.h.b16 %v363
    %v1402 = vunpack.c.l.b16 %v364
    %v1403 = vunpack.c.h.b16 %v364
    %v1404 = vunpack.c.l.b16 %v365
    %v1405 = vunpack.c.h.b16 %v365
    %v1406 = vunpack.c.l.b16 %v366
    %v1407 = vunpack.c.l.b16 %v367
    %v1408 = vunpack.c.h.b16 %v367
    %v1409 = vunpack.c.l.b16 %v368
    %v1410 = vunpack.c.h.b16 %v368
    %v1411 = vunpack.c.l.b16 %v369
    %v1412 = vunpack.c.h.b16 %v369
    %v1413 = vunpack.c.l.b16 %v370
    %v1414 = vunpack.c.l.b16 %v371
    %v1415 = vunpack.c.h.b16 %v371
    %v1416 = vunpack.c.l.b16 %v372
    %v1417 = vunpack.c.h.b16 %v372
    %v1418 = vunpack.c.l.b16 %v373
    %v1419 = vunpack.c.h.b16 %v373
    %v1420 = vunpack.c.l.b16 %v374
    %v1421 = vunpack.c.l.b16 %v375
    %v1422 = vunpack.c.h.b16 %v375
    %v1423 = vunpack.c.l.b16 %v376
    %v1424 = vunpack.c.h.b16 %v376
    %v1425 = vunpack.c.l.b16 %v377
    %v1426 = vunpack.c.h.b16 %v377
    %v1427 = vunpack.c.l.b16 %v378
    %v1428 = vunpack.c.l.b16 %v379
    %v1429 = vunpack.c.h.b16 %v379
    %v1430 = vunpack.c.l.b16 %v380
    %v1431 = vunpack.c.h.b16 %v380
    %v1432 = vunpack.c.l.b16 %v381
    %v1433 = vunpack.c.h.b16 %v381
    %v1434 = vunpack.c.l.b16 %v382
    %v1435 = vunpack.c.l.b16 %v383
    %v1436 = vunpack.c.h.b16 %v383
    %v1437 = vunpack.c.l.b16 %v384
    %v1438 = vunpack.c.h.b16 %v384
    %v1439 = vunpack.c.l.b16 %v385
    %v1440 = vunpack.c.h.b16 %v385
    %v1441 = vunpack.c.l.b16 %v386
    %v1442 = vunpack.c.l.b16 %v387
    %v1443 = vunpack.c.h.b16 %v387
    %v1444 = vunpack.c.l.b16 %v388
    %v1445 = vunpack.c.h.b16 %v388
    %v1446 = vunpack.c.l.b16 %v389
    %v1447 = vunpack.c.h.b16 %v389
    %v1448 = vunpack.c.l.b16 %v390
    %v1449 = vunpack.c.l.b16 %v391
    %v1450 = vunpack.c.h.b16 %v391
    %v1451 = vunpack.c.l.b16 %v392
    %v1452 = vunpack.c.h.b16 %v392
    %v1453 = vunpack.c.l.b16 %v393
    %v1454 = vunpack.c.h.b16 %v393
    %v1455 = vunpack.c.l.b16 %v394
    %v1456 = vunpack.c.l.b16 %v395
    %v1457 = vunpack.c.h.b16 %v395
    %v1458 = vunpack.c.l.b16 %v396
    %v1459 = vunpack.c.h.b16 %v396
    %v1460 = vunpack.c.l.b16 %v397
    %v1461 = vunpack.c.h.b16 %v397
    %v1462 = vunpack.c.l.b16 %v398
    %v1463 = vunpack.c.l.b16 %v399
    %v1464 = vunpack.c.h.b16 %v399
    %v1465 = vunpack.c.l.b16 %v400
    %v1466 = vunpack.c.h.b16 %v400
    %v1467 = vunpack.c.l.b16 %v401
    %v1468 = vunpack.c.h.b16 %v401
    %v1469 = vunpack.c.l.b16 %v402
    %v1470 = vunpack.c.l.b16 %v403
    %v1471 = vunpack.c.h.b16 %v403
    %v1472 = vunpack.c.l.b16 %v404
    %v1473 = vunpack.c.h.b16 %v404
    %v1474 = vunpack.c.l.b16 %v405
    %v1475 = vunpack.c.h.b16 %v405
    %v1476 = vunpack.c.l.b16 %v406
    %v1477 = vunpack.c.l.b16 %v407
    %v1478 = vunpack.c.h.b16 %v407
    %v1479 = vunpack.c.l.b16 %v408
    %v1480 = vunpack.c.h.b16 %v408
    %v1481 = vunpack.c.l.b16 %v409
    %v1482 = vunpack.c.h.b16 %v409
    %v1483 = vunpack.c.l.b16 %v410
    %v1484 = vunpack.c.l.b16 %v411
    %v1485 = vunpack.c.h.b16 %v411
    %v1486 = vunpack.c.l.b16 %v412
    %v1487 = vunpack.c.h.b16 %v412
    %v1488 = vunpack.c.l.b16 %v413
    %v1489 = vunpack.c.h.b16 %v413
    %v1490 = vunpack.c.l.b16 %v414
    %v1491 = vunpack.c.l.b16 %v415
    %v1492 = vunpack.c.h.b16 %v415
    %v1493 = vunpack.c.l.b16 %v416
    %v1494 = vunpack.c.h.b16 %v416
    %v1495 = vunpack.c.l.b16 %v417
    %v1496 = vunpack.c.h.b16 %v417
    %v1497 = vunpack.c.l.b16 %v418
    %v1498 = vunpack.c.l.b16 %v419
    %v1499 = vunpack.c.h.b16 %v419
    %v1500 = vunpack.c.l.b16 %v420
    %v1501 = vunpack.c.h.b16 %v420
    %v1502 = vunpack.c.l.b16 %v421
    %v1503 = vunpack.c.h.b16 %v421
    %v1504 = vunpack.c.l.b16 %v422
    %v1505 = vunpack.c.l.b16 %v423
    %v1506 = vunpack.c.h.b16 %v423
    %v1507 = vunpack.c.l.b16 %v424
    %v1508 = vunpack.c.h.b16 %v424
    %v1509 = vunpack.c.l.b16 %v425
    %v1510 = vunpack.c.h.b16 %v425
    %v1511 = vunpack.c.l.b16 %v426
    %v1512 = vunpack.c.l.b16 %v427
    %v1513 = vunpack.c.h.b16 %v427
    %v1514 = vunpack.c.l.b16 %v428
    %v1515 = vunpack.c.h.b16 %v428
    %v1516 = vunpack.c.l.b16 %v429
    %v1517 = vunpack.c.h.b16 %v429
    %v1518 = vunpack.c.l.b16 %v430
    %v1519 = vunpack.c.l.b16 %v431
    %v1520 = vunpack.c.h.b16 %v431
    %v1521 = vunpack.c.l.b16 %v432
    %v1522 = vunpack.c.h.b16 %v432
    %v1523 = vunpack.c.l.b16 %v433
    %v1524 = vunpack.c.h.b16 %v433
    %v1525 = vunpack.c.l.b16 %v434
    %v1526 = vunpack.c.l.b16 %v435
    %v1527 = vunpack.c.h.b16 %v435
    %v1528 = vunpack.c.l.b16 %v436
    %v1529 = vunpack.c.h.b16 %v436
    %v1530 = vunpack.c.l.b16 %v437
    %v1531 = vunpack.c.h.b16 %v437
    %v1532 = vunpack.c.l.b16 %v438
    %v1533 = vunpack.c.l.b16 %v439
    %v1534 = vunpack.c.h.b16 %v439
    %v1535 = vunpack.c.l.b16 %v440
    %v1536 = vunpack.c.h.b16 %v440
    %v1537 = vunpack.c.l.b16 %v441
    %v1538 = vunpack.c.h.b16 %v441
    %v1539 = vunpack.c.l.b16 %v442
    %v1540 = vunpack.c.l.b16 %v443
    %v1541 = vunpack.c.h.b16 %v443
    %v1542 = vunpack.c.l.b16 %v444
    %v1543 = vunpack.c.h.b16 %v444
    %v1544 = vunpack.c.l.b16 %v445
    %v1545 = vunpack.c.h.b16 %v445
    %v1546 = vunpack.c.l.b16 %v446
    %v1547 = vunpack.c.l.b16 %v447
    %v1548 = vunpack.c.h.b16 %v447
    %v1549 = vunpack.c.l.b16 %v448
    %v1550 = vunpack.c.h.b16 %v448
    %v1551 = vunpack.c.l.b16 %v449
    %v1552 = vunpack.c.h.b16 %v449
    %v1553 = vunpack.c.l.b16 %v450
    %v1554 = vunpack.c.l.b16 %v451
    %v1555 = vunpack.c.h.b16 %v451
    %v1556 = vunpack.c.l.b16 %v452
    %v1557 = vunpack.c.h.b16 %v452
    %v1558 = vunpack.c.l.b16 %v453
    %v1559 = vunpack.c.h.b16 %v453
    %v1560 = vunpack.c.l.b16 %v454
    %v1561 = vunpack.c.l.b16 %v455
    %v1562 = vunpack.c.h.b16 %v455
    %v1563 = vunpack.c.l.b16 %v456
    %v1564 = vunpack.c.h.b16 %v456
    %v1565 = vunpack.c.l.b16 %v457
    %v1566 = vunpack.c.h.b16 %v457
    %v1567 = vunpack.c.l.b16 %v458
    %v1568 = vunpack.c.l.b16 %v459
    %v1569 = vunpack.c.h.b16 %v459
    %v1570 = vunpack.c.l.b16 %v460
    %v1571 = vunpack.c.h.b16 %v460
    %v1572 = vunpack.c.l.b16 %v461
    %v1573 = vunpack.c.h.b16 %v461
    %v1574 = vunpack.c.l.b16 %v462
    %v1575 = vunpack.c.l.b16 %v463
    %v1576 = vunpack.c.h.b16 %v463
    %v1577 = vunpack.c.l.b16 %v464
    %v1578 = vunpack.c.h.b16 %v464
    %v1579 = vunpack.c.l.b16 %v465
    %v1580 = vunpack.c.h.b16 %v465
    %v1581 = vunpack.c.l.b16 %v466
    %v1582 = vunpack.c.l.b16 %v467
    %v1583 = vunpack.c.h.b16 %v467
    %v1584 = vunpack.c.l.b16 %v468
    %v1585 = vunpack.c.h.b16 %v468
    %v1586 = vunpack.c.l.b16 %v469
    %v1587 = vunpack.c.h.b16 %v469
    %v1588 = vunpack.c.l.b16 %v470
    %v1589 = vunpack.c.l.b16 %v471
    %v1590 = vunpack.c.h.b16 %v471
    %v1591 = vunpack.c.l.b16 %v472
    %v1592 = vunpack.c.h.b16 %v472
    %v1593 = vunpack.c.l.b16 %v473
    %v1594 = vunpack.c.h.b16 %v473
    %v1595 = vunpack.c.l.b16 %v474
    %v1596 = vunpack.c.l.b16 %v475
    %v1597 = vunpack.c.h.b16 %v475
    %v1598 = vunpack.c.l.b16 %v476
    %v1599 = vunpack.c.h.b16 %v476
    %v1600 = vunpack.c.l.b16 %v477
    %v1601 = vunpack.c.h.b16 %v477
    %v1602 = vunpack.c.l.b16 %v478
    %v1603 = vunpack.c.l.b16 %v479
    %v1604 = vunpack.c.h.b16 %v479
    %v1605 = vunpack.c.l.b16 %v480
    %v1606 = vunpack.c.h.b16 %v480
    %v1607 = vunpack.c.l.b16 %v481
    %v1608 = vunpack.c.h.b16 %v481
    %v1609 = vunpack.c.l.b16 %v482
    %v1610 = vunpack.c.l.b16 %v483
    %v1611 = vunpack.c.h.b16 %v483
    %v1612 = vunpack.c.l.b16 %v484
    %v1613 = vunpack.c.h.b16 %v484
    %v1614 = vunpack.c.l.b16 %v485
    %v1615 = vunpack.c.h.b16 %v485
    %v1616 = vunpack.c.l.b16 %v486
    %v1617 = vunpack.c.l.b16 %v487
    %v1618 = vunpack.c.h.b16 %v487
    %v1619 = vunpack.c.l.b16 %v488
    %v1620 = vunpack.c.h.b16 %v488
    %v1621 = vunpack.c.l.b16 %v489
    %v1622 = vunpack.c.h.b16 %v489
    %v1623 = vunpack.c.l.b16 %v490
    %v1624 = vunpack.c.l.b16 %v491
    %v1625 = vunpack.c.h.b16 %v491
    %v1626 = vunpack.c.l.b16 %v492
    %v1627 = vunpack.c.h.b16 %v492
    %v1628 = vunpack.c.l.b16 %v493
    %v1629 = vunpack.c.h.b16 %v493
    %v1630 = vunpack.c.l.b16 %v494
    %v1631 = vunpack.c.l.b16 %v495
    %v1632 = vunpack.c.h.b16 %v495
    %v1633 = vunpack.c.l.b16 %v496
    %v1634 = vunpack.c.h.b16 %v496
    %v1635 = vunpack.c.l.b16 %v497
    %v1636 = vunpack.c.h.b16 %v497
    %v1637 = vunpack.c.l.b16 %v498
    %v1638 = vpack.c.b16 %v959, %v952
    %v1639 = vpack.c.b16 %v960, %v953
    %v1640 = vpack.c.b16 %v961, %v954
    %v1641 = vpack.c.b16 %v962, %v955
    %v1642 = vpack.c.b16 %v963, %v956
    %v1643 = vpack.c.b16 %v964, %v957
    %v1644 = vpack.c.b16 %v965, %v958
    %v1645 = vpack.c.b16 %v973, %v966
    %v1646 = vpack.c.b16 %v974, %v967
    %v1647 = vpack.c.b16 %v975, %v968
    %v1648 = vpack.c.b16 %v976, %v969
    %v1649 = vpack.c.b16 %v977, %v970
    %v1650 = vpack.c.b16 %v978, %v971
    %v1651 = vpack.c.b16 %v979, %v972
    %v1652 = vpack.c.b16 %v987, %v980
    %v1653 = vpack.c.b16 %v988, %v981
    %v1654 = vpack.c.b16 %v989, %v982
    %v1655 = vpack.c.b16 %v990, %v983
    %v1656 = vpack.c.b16 %v991, %v984
    %v1657 = vpack.c.b16 %v992, %v985
    %v1658 = vpack.c.b16 %v993, %v986
    %v1659 = vpack.c.b16 %v1001, %v994
    %v1660 = vpack.c.b16 %v1002, %v995
    %v1661 = vpack.c.b16 %v1003, %v996
    %v1662 = vpack.c.b16 %v1004, %v997
    %v1663 = vpack.c.b16 %v1005, %v998
    %v1664 = vpack.c.b16 %v1006, %v999
    %v1665 = vpack.c.b16 %v1007, %v1000
    %v1666 = vpack.c.b16 %v1015, %v1008
    %v1667 = vpack.c.b16 %v1016, %v1009
    %v1668 = vpack.c.b16 %v1017, %v1010
    %v1669 = vpack.c.b16 %v1018, %v1011
    %v1670 = vpack.c.b16 %v1019, %v1012
    %v1671 = vpack.c.b16 %v1020, %v1013
    %v1672 = vpack.c.b16 %v1021, %v1014
    %v1673 = vpack.c.b16 %v1029, %v1022
    %v1674 = vpack.c.b16 %v1030, %v1023
    %v1675 = vpack.c.b16 %v1031, %v1024
    %v1676 = vpack.c.b16 %v1032, %v1025
    %v1677 = vpack.c.b16 %v1033, %v1026
    %v1678 = vpack.c.b16 %v1034, %v1027
    %v1679 = vpack.c.b16 %v1035, %v1028
    %v1680 = vpack.c.b16 %v1043, %v1036
    %v1681 = vpack.c.b16 %v1044, %v1037
    %v1682 = vpack.c.b16 %v1045, %v1038
    %v1683 = vpack.c.b16 %v1046, %v1039
    %v1684 = vpack.c.b16 %v1047, %v1040
    %v1685 = vpack.c.b16 %v1048, %v1041
    %v1686 = vpack.c.b16 %v1049, %v1042
    %v1687 = vpack.c.b16 %v1057, %v1050
    %v1688 = vpack.c.b16 %v1058, %v1051
    %v1689 = vpack.c.b16 %v1059, %v1052
    %v1690 = vpack.c.b16 %v1060, %v1053
    %v1691 = vpack.c.b16 %v1061, %v1054
    %v1692 = vpack.c.b16 %v1062, %v1055
    %v1693 = vpack.c.b16 %v1063, %v1056
    %v1694 = vpack.c.b16 %v1071, %v1064
    %v1695 = vpack.c.b16 %v1072, %v1065
    %v1696 = vpack.c.b16 %v1073, %v1066
    %v1697 = vpack.c.b16 %v1074, %v1067
    %v1698 = vpack.c.b16 %v1075, %v1068
    %v1699 = vpack.c.b16 %v1076, %v1069
    %v1700 = vpack.c.b16 %v1077, %v1070
    %v1701 = vpack.c.b16 %v1085, %v1078
    %v1702 = vpack.c.b16 %v1086, %v1079
    %v1703 = vpack.c.b16 %v1087, %v1080
    %v1704 = vpack.c.b16 %v1088, %v1081
    %v1705 = vpack.c.b16 %v1089, %v1082
    %v1706 = vpack.c.b16 %v1090, %v1083
    %v1707 = vpack.c.b16 %v1091, %v1084
    %v1708 = vpack.c.b16 %v1099, %v1092
    %v1709 = vpack.c.b16 %v1100, %v1093
    %v1710 = vpack.c.b16 %v1101, %v1094
    %v1711 = vpack.c.b16 %v1102, %v1095
    %v1712 = vpack.c.b16 %v1103, %v1096
    %v1713 = vpack.c.b16 %v1104, %v1097
    %v1714 = vpack.c.b16 %v1105, %v1098
    %v1715 = vpack.c.b16 %v1113, %v1106
    %v1716 = vpack.c.b16 %v1114, %v1107
    %v1717 = vpack.c.b16 %v1115, %v1108
    %v1718 = vpack.c.b16 %v1116, %v1109
    %v1719 = vpack.c.b16 %v1117, %v1110
    %v1720 = vpack.c.b16 %v1118, %v1111
    %v1721 = vpack.c.b16 %v1119, %v1112
    %v1722 = vpack.c.b16 %v1127, %v1120
    %v1723 = vpack.c.b16 %v1128, %v1121
    %v1724 = vpack.c.b16 %v1129, %v1122
    %v1725 = vpack.c.b16 %v1130, %v1123
    %v1726 = vpack.c.b16 %v1131, %v1124
    %v1727 = vpack.c.b16 %v1132, %v1125
    %v1728 = vpack.c.b16 %v1133, %v1126
    %v1729 = vpack.c.b16 %v1141, %v1134
    %v1730 = vpack.c.b16 %v1142, %v1135
    %v1731 = vpack.c.b16 %v1143, %v1136
    %v1732 = vpack.c.b16 %v1144, %v1137
    %v1733 = vpack.c.b16 %v1145, %v1138
    %v1734 = vpack.c.b16 %v1146, %v1139
    %v1735 = vpack.c.b16 %v1147, %v1140
    %v1736 = vpack.c.b16 %v1155, %v1148
    %v1737 = vpack.c.b16 %v1156, %v1149
    %v1738 = vpack.c.b16 %v1157, %v1150
    %v1739 = vpack.c.b16 %v1158, %v1151
    %v1740 = vpack.c.b16 %v1159, %v1152
    %v1741 = vpack.c.b16 %v1160, %v1153
    %v1742 = vpack.c.b16 %v1161, %v1154
    %v1743 = vpack.c.b16 %v1169, %v1162
    %v1744 = vpack.c.b16 %v1170, %v1163
    %v1745 = vpack.c.b16 %v1171, %v1164
    %v1746 = vpack.c.b16 %v1172, %v1165
    %v1747 = vpack.c.b16 %v1173, %v1166
    %v1748 = vpack.c.b16 %v1174, %v1167
    %v1749 = vpack.c.b16 %v1175, %v1168
    %v1750 = vpack.c.b16 %v1183, %v1176
    %v1751 = vpack.c.b16 %v1184, %v1177
    %v1752 = vpack.c.b16 %v1185, %v1178
    %v1753 = vpack.c.b16 %v1186, %v1179
    %v1754 = vpack.c.b16 %v1187, %v1180
    %v1755 = vpack.c.b16 %v1188, %v1181
    %v1756 = vpack.c.b16 %v1189, %v1182
    %v1757 = vpack.c.b16 %v1197, %v1190
    %v1758 = vpack.c.b16 %v1198, %v1191
    %v1759 = vpack.c.b16 %v1199, %v1192
    %v1760 = vpack.c.b16 %v1200, %v1193
    %v1761 = vpack.c.b16 %v1201, %v1194
    %v1762 = vpack.c.b16 %v1202, %v1195
    %v1763 = vpack.c.b16 %v1203, %v1196
    %v1764 = vpack.c.b16 %v1211, %v1204
    %v1765 = vpack.c.b16 %v1212, %v1205
    %v1766 = vpack.c.b16 %v1213, %v1206
    %v1767 = vpack.c.b16 %v1214, %v1207
    %v1768 = vpack.c.b16 %v1215, %v1208
    %v1769 = vpack.c.b16 %v1216, %v1209
    %v1770 = vpack.c.b16 %v1217, %v1210
    %v1771 = vpack.c.b16 %v1225, %v1218
    %v1772 = vpack.c.b16 %v1226, %v1219
    %v1773 = vpack.c.b16 %v1227, %v1220
    %v1774 = vpack.c.b16 %v1228, %v1221
    %v1775 = vpack.c.b16 %v1229, %v1222
    %v1776 = vpack.c.b16 %v1230, %v1223
    %v1777 = vpack.c.b16 %v1231, %v1224
    %v1778 = vpack.c.b16 %v1239, %v1232
    %v1779 = vpack.c.b16 %v1240, %v1233
    %v1780 = vpack.c.b16 %v1241, %v1234
    %v1781 = vpack.c.b16 %v1242, %v1235
    %v1782 = vpack.c.b16 %v1243, %v1236
    %v1783 = vpack.c.b16 %v1244, %v1237
    %v1784 = vpack.c.b16 %v1245, %v1238
    %v1785 = vpack.c.b16 %v1253, %v1246
    %v1786 = vpack.c.b16 %v1254, %v1247
    %v1787 = vpack.c.b16 %v1255, %v1248
    %v1788 = vpack.c.b16 %v1256, %v1249
    %v1789 = vpack.c.b16 %v1257, %v1250
    %v1790 = vpack.c.b16 %v1258, %v1251
    %v1791 = vpack.c.b16 %v1259, %v1252
    %v1792 = vpack.c.b16 %v1267, %v1260
    %v1793 = vpack.c.b16 %v1268, %v1261
    %v1794 = vpack.c.b16 %v1269, %v1262
    %v1795 = vpack.c.b16 %v1270, %v1263
    %v1796 = vpack.c.b16 %v1271, %v1264
    %v1797 = vpack.c.b16 %v1272, %v1265
    %v1798 = vpack.c.b16 %v1273, %v1266
    %v1799 = vpack.c.b16 %v1281, %v1274
    %v1800 = vpack.c.b16 %v1282, %v1275
    %v1801 = vpack.c.b16 %v1283, %v1276
    %v1802 = vpack.c.b16 %v1284, %v1277
    %v1803 = vpack.c.b16 %v1285, %v1278
    %v1804 = vpack.c.b16 %v1286, %v1279
    %v1805 = vpack.c.b16 %v1287, %v1280
    %v1806 = vpack.c.b16 %v1295, %v1288
    %v1807 = vpack.c.b16 %v1296, %v1289
    %v1808 = vpack.c.b16 %v1297, %v1290
    %v1809 = vpack.c.b16 %v1298, %v1291
    %v1810 = vpack.c.b16 %v1299, %v1292
    %v1811 = vpack.c.b16 %v1300, %v1293
    %v1812 = vpack.c.b16 %v1301, %v1294
    %v1813 = vpack.c.b16 %v1309, %v1302
    %v1814 = vpack.c.b16 %v1310, %v1303
    %v1815 = vpack.c.b16 %v1311, %v1304
    %v1816 = vpack.c.b16 %v1312, %v1305
    %v1817 = vpack.c.b16 %v1313, %v1306
    %v1818 = vpack.c.b16 %v1314, %v1307
    %v1819 = vpack.c.b16 %v1315, %v1308
    %v1820 = vpack.c.b16 %v1323, %v1316
    %v1821 = vpack.c.b16 %v1324, %v1317
    %v1822 = vpack.c.b16 %v1325, %v1318
    %v1823 = vpack.c.b16 %v1326, %v1319
    %v1824 = vpack.c.b16 %v1327, %v1320
    %v1825 = vpack.c.b16 %v1328, %v1321
    %v1826 = vpack.c.b16 %v1329, %v1322
    %v1827 = vpack.c.b16 %v1337, %v1330
    %v1828 = vpack.c.b16 %v1338, %v1331
    %v1829 = vpack.c.b16 %v1339, %v1332
    %v1830 = vpack.c.b16 %v1340, %v1333
    %v1831 = vpack.c.b16 %v1341, %v1334
    %v1832 = vpack.c.b16 %v1342, %v1335
    %v1833 = vpack.c.b16 %v1343, %v1336
    %v1834 = vpack.c.b16 %v1351, %v1344
    %v1835 = vpack.c.b16 %v1352, %v1345
    %v1836 = vpack.c.b16 %v1353, %v1346
    %v1837 = vpack.c.b16 %v1354, %v1347
    %v1838 = vpack.c.b16 %v1355, %v1348
    %v1839 = vpack.c.b16 %v1356, %v1349
    %v1840 = vpack.c.b16 %v1357, %v1350
    %v1841 = vpack.c.b16 %v1365, %v1358
    %v1842 = vpack.c.b16 %v1366, %v1359
    %v1843 = vpack.c.b16 %v1367, %v1360
    %v1844 = vpack.c.b16 %v1368, %v1361
    %v1845 = vpack.c.b16 %v1369, %v1362
    %v1846 = vpack.c.b16 %v1370, %v1363
    %v1847 = vpack.c.b16 %v1371, %v1364
    %v1848 = vpack.c.b16 %v1379, %v1372
    %v1849 = vpack.c.b16 %v1380, %v1373
    %v1850 = vpack.c.b16 %v1381, %v1374
    %v1851 = vpack.c.b16 %v1382, %v1375
    %v1852 = vpack.c.b16 %v1383, %v1376
    %v1853 = vpack.c.b16 %v1384, %v1377
    %v1854 = vpack.c.b16 %v1385, %v1378
    %v1855 = vpack.c.b16 %v1393, %v1386
    %v1856 = vpack.c.b16 %v1394, %v1387
    %v1857 = vpack.c.b16 %v1395, %v1388
    %v1858 = vpack.c.b16 %v1396, %v1389
    %v1859 = vpack.c.b16 %v1397, %v1390
    %v1860 = vpack.c.b16 %v1398, %v1391
    %v1861 = vpack.c.b16 %v1399, %v1392
    %v1862 = vpack.c.b16 %v1407, %v1400
    %v1863 = vpack.c.b16 %v1408, %v1401
    %v1864 = vpack.c.b16 %v1409, %v1402
    %v1865 = vpack.c.b16 %v1410, %v1403
    %v1866 = vpack.c.b16 %v1411, %v1404
    %v1867 = vpack.c.b16 %v1412, %v1405
    %v1868 = vpack.c.b16 %v1413, %v1406
    %v1869 = vpack.c.b16 %v1421, %v1414
    %v1870 = vpack.c.b16 %v1422, %v1415
    %v1871 = vpack.c.b16 %v1423, %v1416
    %v1872 = vpack.c.b16 %v1424, %v1417
    %v1873 = vpack.c.b16 %v1425, %v1418
    %v1874 = vpack.c.b16 %v1426, %v1419
    %v1875 = vpack.c.b16 %v1427, %v1420
    %v1876 = vpack.c.b16 %v1435, %v1428
    %v1877 = vpack.c.b16 %v1436, %v1429
    %v1878 = vpack.c.b16 %v1437, %v1430
    %v1879 = vpack.c.b16 %v1438, %v1431
    %v1880 = vpack.c.b16 %v1439, %v1432
    %v1881 = vpack.c.b16 %v1440, %v1433
    %v1882 = vpack.c.b16 %v1441, %v1434
    %v1883 = vpack.c.b16 %v1449, %v1442
    %v1884 = vpack.c.b16 %v1450, %v1443
    %v1885 = vpack.c.b16 %v1451, %v1444
    %v1886 = vpack.c.b16 %v1452, %v1445
    %v1887 = vpack.c.b16 %v1453, %v1446
    %v1888 = vpack.c.b16 %v1454, %v1447
    %v1889 = vpack.c.b16 %v1455, %v1448
    %v1890 = vpack.c.b16 %v1463, %v1456
    %v1891 = vpack.c.b16 %v1464, %v1457
    %v1892 = vpack.c.b16 %v1465, %v1458
    %v1893 = vpack.c.b16 %v1466, %v1459
    %v1894 = vpack.c.b16 %v1467, %v1460
    %v1895 = vpack.c.b16 %v1468, %v1461
    %v1896 = vpack.c.b16 %v1469, %v1462
    %v1897 = vpack.c.b16 %v1477, %v1470
    %v1898 = vpack.c.b16 %v1478, %v1471
    %v1899 = vpack.c.b16 %v1479, %v1472
    %v1900 = vpack.c.b16 %v1480, %v1473
    %v1901 = vpack.c.b16 %v1481, %v1474
    %v1902 = vpack.c.b16 %v1482, %v1475
    %v1903 = vpack.c.b16 %v1483, %v1476
    %v1904 = vpack.c.b16 %v1491, %v1484
    %v1905 = vpack.c.b16 %v1492, %v1485
    %v1906 = vpack.c.b16 %v1493, %v1486
    %v1907 = vpack.c.b16 %v1494, %v1487
    %v1908 = vpack.c.b16 %v1495, %v1488
    %v1909 = vpack.c.b16 %v1496, %v1489
    %v1910 = vpack.c.b16 %v1497, %v1490
    %v1911 = vpack.c.b16 %v1505, %v1498
    %v1912 = vpack.c.b16 %v1506, %v1499
    %v1913 = vpack.c.b16 %v1507, %v1500
    %v1914 = vpack.c.b16 %v1508, %v1501
    %v1915 = vpack.c.b16 %v1509, %v1502
    %v1916 = vpack.c.b16 %v1510, %v1503
    %v1917 = vpack.c.b16 %v1511, %v1504
    %v1918 = vpack.c.b16 %v1519, %v1512
    %v1919 = vpack.c.b16 %v1520, %v1513
    %v1920 = vpack.c.b16 %v1521, %v1514
    %v1921 = vpack.c.b16 %v1522, %v1515
    %v1922 = vpack.c.b16 %v1523, %v1516
    %v1923 = vpack.c.b16 %v1524, %v1517
    %v1924 = vpack.c.b16 %v1525, %v1518
    %v1925 = vpack.c.b16 %v1533, %v1526
    %v1926 = vpack.c.b16 %v1534, %v1527
    %v1927 = vpack.c.b16 %v1535, %v1528
    %v1928 = vpack.c.b16 %v1536, %v1529
    %v1929 = vpack.c.b16 %v1537, %v1530
    %v1930 = vpack.c.b16 %v1538, %v1531
    %v1931 = vpack.c.b16 %v1539, %v1532
    %v1932 = vpack.c.b16 %v1547, %v1540
    %v1933 = vpack.c.b16 %v1548, %v1541
    %v1934 = vpack.c.b16 %v1549, %v1542
    %v1935 = vpack.c.b16 %v1550, %v1543
    %v1936 = vpack.c.b16 %v1551, %v1544
    %v1937 = vpack.c.b16 %v1552, %v1545
    %v1938 = vpack.c.b16 %v1553, %v1546
    %v1939 = vpack.c.b16 %v1561, %v1554
    %v1940 = vpack.c.b16 %v1562, %v1555
    %v1941 = vpack.c.b16 %v1563, %v1556
    %v1942 = vpack.c.b16 %v1564, %v1557
    %v1943 = vpack.c.b16 %v1565, %v1558
    %v1944 = vpack.c.b16 %v1566, %v1559
    %v1945 = vpack.c.b16 %v1567, %v1560
    %v1946 = vpack.c.b16 %v1575, %v1568
    %v1947 = vpack.c.b16 %v1576, %v1569
    %v1948 = vpack.c.b16 %v1577, %v1570
    %v1949 = vpack.c.b16 %v1578, %v1571
    %v1950 = vpack.c.b16 %v1579, %v1572
    %v1951 = vpack.c.b16 %v1580, %v1573
    %v1952 = vpack.c.b16 %v1581, %v1574
    %v1953 = vpack.c.b16 %v1589, %v1582
    %v1954 = vpack.c.b16 %v1590, %v1583
    %v1955 = vpack.c.b16 %v1591, %v1584
    %v1956 = vpack.c.b16 %v1592, %v1585
    %v1957 = vpack.c.b16 %v1593, %v1586
    %v1958 = vpack.c.b16 %v1594, %v1587
    %v1959 = vpack.c.b16 %v1595, %v1588
    %v1960 = vpack.c.b16 %v1603, %v1596
    %v1961 = vpack.c.b16 %v1604, %v1597
    %v1962 = vpack.c.b16 %v1605, %v1598
    %v1963 = vpack.c.b16 %v1606, %v1599
    %v1964 = vpack.c.b16 %v1607, %v1600
    %v1965 = vpack.c.b16 %v1608, %v1601
    %v1966 = vpack.c.b16 %v1609, %v1602
    %v1967 = vpack.c.b16 %v1617, %v1610
    %v1968 = vpack.c.b16 %v1618, %v1611
    %v1969 = vpack.c.b16 %v1619, %v1612
    %v1970 = vpack.c.b16 %v1620, %v1613
    %v1971 = vpack.c.b16 %v1621, %v1614
    %v1972 = vpack.c.b16 %v1622, %v1615
    %v1973 = vpack.c.b16 %v1623, %v1616
    %v1974 = vpack.c.b16 %v1631, %v1624
    %v1975 = vpack.c.b16 %v1632, %v1625
    %v1976 = vpack.c.b16 %v1633, %v1626
    %v1977 = vpack.c.b16 %v1634, %v1627
    %v1978 = vpack.c.b16 %v1635, %v1628
    %v1979 = vpack.c.b16 %v1636, %v1629
    %v1980 = vpack.c.b16 %v1637, %v1630
    %vm2324 = vcmask 130048
    %v2326 = vsel %vm2324, %v553, 0
    %2328 = vmatprep.subr.bf16.mxu0 %v1688
    %2329 = vmatpush1.bf16.msra.mxu0 %v1687
    %2330 = vmatprep.subr.bf16.mxu0 %v1681
    %2331 = vmatpush1.bf16.msra.mxu0 %v1680
    %2332 = vmatprep.subr.bf16.mxu0 %v1674
    %2333 = vmatpush1.bf16.msra.mxu0 %v1673
    %2334 = vmatprep.subr.bf16.mxu0 %v1667
    %2335 = vmatpush1.bf16.msra.mxu0 %v1666
    %2336 = vmatprep.subr.bf16.mxu0 %v1660
    %2337 = vmatpush1.bf16.msra.mxu0 %v1659
    %2338 = vmatprep.subr.bf16.mxu0 %v1653
    %2339 = vmatpush1.bf16.msra.mxu0 %v1652
    %2340 = vmatprep.subr.bf16.mxu0 %v1646
    %2341 = vmatpush1.bf16.msra.mxu0 %v1645
    %2342 = vmatprep.subr.bf16.mxu0 %v1639
    %2343 = vmatpush1.bf16.msra.mxu0 %v1638
    %2344 = vmatprep.subr.bf16.mxu0 %v1744
    %2345 = vmatpush2.bf16.msra.mxu0 %v1743
    %2346 = vmatprep.subr.bf16.mxu0 %v1737
    %2347 = vmatpush2.bf16.msra.mxu0 %v1736
    %2348 = vmatprep.subr.bf16.mxu0 %v1730
    %2349 = vmatpush2.bf16.msra.mxu0 %v1729
    %2350 = vmatprep.subr.bf16.mxu0 %v1723
    %2351 = vmatpush2.bf16.msra.mxu0 %v1722
    %2352 = vmatprep.subr.bf16.mxu0 %v1716
    %2353 = vmatpush2.bf16.msra.mxu0 %v1715
    %2354 = vmatprep.subr.bf16.mxu0 %v1709
    %2355 = vmatpush2.bf16.msra.mxu0 %v1708
    %2356 = vmatprep.subr.bf16.mxu0 %v1702
    %2357 = vmatpush2.bf16.msra.mxu0 %v1701
    %2358 = vmatprep.subr.bf16.mxu0 %v1695
    %2359 = vmatpush2.bf16.msra.mxu0 %v1694
    %2360 = vmatprep.mubr.bf16.mxu0 %v548
    %2361 = vmatmul.mubr.bf16.gmra.mxu0 %v547
    %v2362 = vpop.f32.mrf.mxu0
    %v2363 = vadd.f32 %v504, %v2362
    %v2364 = vpop.f32.mrf.mxu0
    %v2365 = vadd.f32 %v508, %v2364
    %v2366 = vpop.f32.mrf.mxu0
    %v2367 = vpop.f32.mrf.mxu0
    %2368 = vdwg.mxu0
    %2369 = vmatprep.subr.bf16.mxu0 %v1800
    %2370 = vmatpush1.bf16.msra.mxu0 %v1799
    %2371 = vmatprep.subr.bf16.mxu0 %v1793
    %2372 = vmatpush1.bf16.msra.mxu0 %v1792
    %2373 = vmatprep.subr.bf16.mxu0 %v1786
    %2374 = vmatpush1.bf16.msra.mxu0 %v1785
    %2375 = vmatprep.subr.bf16.mxu0 %v1779
    %2376 = vmatpush1.bf16.msra.mxu0 %v1778
    %2377 = vmatprep.subr.bf16.mxu0 %v1772
    %2378 = vmatpush1.bf16.msra.mxu0 %v1771
    %2379 = vmatprep.subr.bf16.mxu0 %v1765
    %2380 = vmatpush1.bf16.msra.mxu0 %v1764
    %2381 = vmatprep.subr.bf16.mxu0 %v1758
    %2382 = vmatpush1.bf16.msra.mxu0 %v1757
    %2383 = vmatprep.subr.bf16.mxu0 %v1751
    %2384 = vmatpush1.bf16.msra.mxu0 %v1750
    %2385 = vmatprep.subr.bf16.mxu0 %v1856
    %2386 = vmatpush2.bf16.msra.mxu0 %v1855
    %2387 = vmatprep.subr.bf16.mxu0 %v1849
    %2388 = vmatpush2.bf16.msra.mxu0 %v1848
    %2389 = vmatprep.subr.bf16.mxu0 %v1842
    %2390 = vmatpush2.bf16.msra.mxu0 %v1841
    %2391 = vmatprep.subr.bf16.mxu0 %v1835
    %2392 = vmatpush2.bf16.msra.mxu0 %v1834
    %2393 = vmatprep.subr.bf16.mxu0 %v1828
    %2394 = vmatpush2.bf16.msra.mxu0 %v1827
    %2395 = vmatprep.subr.bf16.mxu0 %v1821
    %2396 = vmatpush2.bf16.msra.mxu0 %v1820
    %2397 = vmatprep.subr.bf16.mxu0 %v1814
    %2398 = vmatpush2.bf16.msra.mxu0 %v1813
    %2399 = vmatprep.subr.bf16.mxu0 %v1807
    %2400 = vmatpush2.bf16.msra.mxu0 %v1806
    %2401 = vmatprep.mubr.bf16.mxu0 %v550
    %2402 = vmatmul.mubr.bf16.gmra.mxu0 %v549
    %v2403 = vpop.f32.mrf.mxu0
    %v2404 = vadd.f32 %v2363, %v2403
    %v2405 = vpop.f32.mrf.mxu0
    %v2406 = vadd.f32 %v2365, %v2405
    %v2407 = vpop.f32.mrf.mxu0
    %v2408 = vpop.f32.mrf.mxu0
    %2409 = vdwg.mxu0
    %2410 = vmatprep.subr.bf16.mxu0 %v1912
    %2411 = vmatpush1.bf16.msra.mxu0 %v1911
    %2412 = vmatprep.subr.bf16.mxu0 %v1905
    %2413 = vmatpush1.bf16.msra.mxu0 %v1904
    %2414 = vmatprep.subr.bf16.mxu0 %v1898
    %2415 = vmatpush1.bf16.msra.mxu0 %v1897
    %2416 = vmatprep.subr.bf16.mxu0 %v1891
    %2417 = vmatpush1.bf16.msra.mxu0 %v1890
    %2418 = vmatprep.subr.bf16.mxu0 %v1884
    %2419 = vmatpush1.bf16.msra.mxu0 %v1883
    %2420 = vmatprep.subr.bf16.mxu0 %v1877
    %2421 = vmatpush1.bf16.msra.mxu0 %v1876
    %2422 = vmatprep.subr.bf16.mxu0 %v1870
    %2423 = vmatpush1.bf16.msra.mxu0 %v1869
    %2424 = vmatprep.subr.bf16.mxu0 %v1863
    %2425 = vmatpush1.bf16.msra.mxu0 %v1862
    %2426 = vmatprep.subr.bf16.mxu0 %v1968
    %2427 = vmatpush2.bf16.msra.mxu0 %v1967
    %2428 = vmatprep.subr.bf16.mxu0 %v1961
    %2429 = vmatpush2.bf16.msra.mxu0 %v1960
    %2430 = vmatprep.subr.bf16.mxu0 %v1954
    %2431 = vmatpush2.bf16.msra.mxu0 %v1953
    %2432 = vmatprep.subr.bf16.mxu0 %v1947
    %2433 = vmatpush2.bf16.msra.mxu0 %v1946
    %2434 = vmatprep.subr.bf16.mxu0 %v1940
    %2435 = vmatpush2.bf16.msra.mxu0 %v1939
    %2436 = vmatprep.subr.bf16.mxu0 %v1933
    %2437 = vmatpush2.bf16.msra.mxu0 %v1932
    %2438 = vmatprep.subr.bf16.mxu0 %v1926
    %2439 = vmatpush2.bf16.msra.mxu0 %v1925
    %2440 = vmatprep.subr.bf16.mxu0 %v1919
    %2441 = vmatpush2.bf16.msra.mxu0 %v1918
    %2442 = vmatprep.mubr.bf16.mxu0 %v552
    %2443 = vmatmul.mubr.bf16.gmra.mxu0 %v551
    %v2444 = vpop.f32.mrf.mxu0
    %v2445 = vadd.f32 %v2404, %v2444
    %v2446 = vpop.f32.mrf.mxu0
    %v2447 = vadd.f32 %v2406, %v2446
    %v2448 = vpop.f32.mrf.mxu0
    %v2449 = vpop.f32.mrf.mxu0
    %2450 = vdwg.mxu0
    %2451 = vmatprep.subr.bf16.mxu0 0
    %2452 = vmatpush1.bf16.msra.mxu0 0
    %2453 = vmatprep.subr.bf16.mxu0 0
    %2454 = vmatpush1.bf16.msra.mxu0 0
    %2455 = vmatprep.subr.bf16.mxu0 0
    %2456 = vmatpush1.bf16.msra.mxu0 0
    %2457 = vmatprep.subr.bf16.mxu0 0
    %2458 = vmatpush1.bf16.msra.mxu0 0
    %2459 = vmatprep.subr.bf16.mxu0 0
    %2460 = vmatpush1.bf16.msra.mxu0 0
    %2461 = vmatprep.subr.bf16.mxu0 0
    %2462 = vmatpush1.bf16.msra.mxu0 0
    %2463 = vmatprep.subr.bf16.mxu0 0
    %2464 = vmatpush1.bf16.msra.mxu0 0
    %2465 = vmatprep.subr.bf16.mxu0 %v1975
    %2466 = vmatpush1.bf16.msra.mxu0 %v1974
    %2467 = vmatprep.subr.bf16.mxu0 0
    %2468 = vmatpush2.bf16.msra.mxu0 0
    %2469 = vmatprep.subr.bf16.mxu0 0
    %2470 = vmatpush2.bf16.msra.mxu0 0
    %2471 = vmatprep.subr.bf16.mxu0 0
    %2472 = vmatpush2.bf16.msra.mxu0 0
    %2473 = vmatprep.subr.bf16.mxu0 0
    %2474 = vmatpush2.bf16.msra.mxu0 0
    %2475 = vmatprep.subr.bf16.mxu0 0
    %2476 = vmatpush2.bf16.msra.mxu0 0
    %2477 = vmatprep.subr.bf16.mxu0 0
    %2478 = vmatpush2.bf16.msra.mxu0 0
    %2479 = vmatprep.subr.bf16.mxu0 0
    %2480 = vmatpush2.bf16.msra.mxu0 0
    %2481 = vmatprep.subr.bf16.mxu0 0
    %2482 = vmatpush2.bf16.msra.mxu0 0
    %2483 = vmatprep.mubr.bf16.mxu0 0
    %2484 = vmatmul.mubr.bf16.gmra.mxu0 %v2326
    %v2485 = vpop.f32.mrf.mxu0
    %v2486 = vadd.f32 %v2445, %v2485
    %v2487 = vpop.f32.mrf.mxu0
    %v2488 = vadd.f32 %v2447, %v2487
    %v2489 = vpop.f32.mrf.mxu0
    %v2490 = vpop.f32.mrf.mxu0
    %2491 = vdwg.mxu0
    %2492 = vmatprep.subr.bf16.mxu0 %v1690
    %2493 = vmatpush1.bf16.msra.mxu0 %v1689
    %2494 = vmatprep.subr.bf16.mxu0 %v1683
    %2495 = vmatpush1.bf16.msra.mxu0 %v1682
    %2496 = vmatprep.subr.bf16.mxu0 %v1676
    %2497 = vmatpush1.bf16.msra.mxu0 %v1675
    %2498 = vmatprep.subr.bf16.mxu0 %v1669
    %2499 = vmatpush1.bf16.msra.mxu0 %v1668
    %2500 = vmatprep.subr.bf16.mxu0 %v1662
    %2501 = vmatpush1.bf16.msra.mxu0 %v1661
    %2502 = vmatprep.subr.bf16.mxu0 %v1655
    %2503 = vmatpush1.bf16.msra.mxu0 %v1654
    %2504 = vmatprep.subr.bf16.mxu0 %v1648
    %2505 = vmatpush1.bf16.msra.mxu0 %v1647
    %2506 = vmatprep.subr.bf16.mxu0 %v1641
    %2507 = vmatpush1.bf16.msra.mxu0 %v1640
    %2508 = vmatprep.subr.bf16.mxu0 %v1746
    %2509 = vmatpush2.bf16.msra.mxu0 %v1745
    %2510 = vmatprep.subr.bf16.mxu0 %v1739
    %2511 = vmatpush2.bf16.msra.mxu0 %v1738
    %2512 = vmatprep.subr.bf16.mxu0 %v1732
    %2513 = vmatpush2.bf16.msra.mxu0 %v1731
    %2514 = vmatprep.subr.bf16.mxu0 %v1725
    %2515 = vmatpush2.bf16.msra.mxu0 %v1724
    %2516 = vmatprep.subr.bf16.mxu0 %v1718
    %2517 = vmatpush2.bf16.msra.mxu0 %v1717
    %2518 = vmatprep.subr.bf16.mxu0 %v1711
    %2519 = vmatpush2.bf16.msra.mxu0 %v1710
    %2520 = vmatprep.subr.bf16.mxu0 %v1704
    %2521 = vmatpush2.bf16.msra.mxu0 %v1703
    %2522 = vmatprep.subr.bf16.mxu0 %v1697
    %2523 = vmatpush2.bf16.msra.mxu0 %v1696
    %2524 = vmatprep.mubr.bf16.mxu0 %v548
    %2525 = vmatmul.mubr.bf16.gmra.mxu0 %v547
    %v2526 = vpop.f32.mrf.mxu0
    %v2527 = vadd.f32 %v512, %v2526
    %v2528 = vpop.f32.mrf.mxu0
    %v2529 = vadd.f32 %v516, %v2528
    %v2530 = vpop.f32.mrf.mxu0
    %v2531 = vpop.f32.mrf.mxu0
    %2532 = vdwg.mxu0
    %2533 = vmatprep.subr.bf16.mxu0 %v1802
    %2534 = vmatpush1.bf16.msra.mxu0 %v1801
    %2535 = vmatprep.subr.bf16.mxu0 %v1795
    %2536 = vmatpush1.bf16.msra.mxu0 %v1794
    %2537 = vmatprep.subr.bf16.mxu0 %v1788
    %2538 = vmatpush1.bf16.msra.mxu0 %v1787
    %2539 = vmatprep.subr.bf16.mxu0 %v1781
    %2540 = vmatpush1.bf16.msra.mxu0 %v1780
    %2541 = vmatprep.subr.bf16.mxu0 %v1774
    %2542 = vmatpush1.bf16.msra.mxu0 %v1773
    %2543 = vmatprep.subr.bf16.mxu0 %v1767
    %2544 = vmatpush1.bf16.msra.mxu0 %v1766
    %2545 = vmatprep.subr.bf16.mxu0 %v1760
    %2546 = vmatpush1.bf16.msra.mxu0 %v1759
    %2547 = vmatprep.subr.bf16.mxu0 %v1753
    %2548 = vmatpush1.bf16.msra.mxu0 %v1752
    %2549 = vmatprep.subr.bf16.mxu0 %v1858
    %2550 = vmatpush2.bf16.msra.mxu0 %v1857
    %2551 = vmatprep.subr.bf16.mxu0 %v1851
    %2552 = vmatpush2.bf16.msra.mxu0 %v1850
    %2553 = vmatprep.subr.bf16.mxu0 %v1844
    %2554 = vmatpush2.bf16.msra.mxu0 %v1843
    %2555 = vmatprep.subr.bf16.mxu0 %v1837
    %2556 = vmatpush2.bf16.msra.mxu0 %v1836
    %2557 = vmatprep.subr.bf16.mxu0 %v1830
    %2558 = vmatpush2.bf16.msra.mxu0 %v1829
    %2559 = vmatprep.subr.bf16.mxu0 %v1823
    %2560 = vmatpush2.bf16.msra.mxu0 %v1822
    %2561 = vmatprep.subr.bf16.mxu0 %v1816
    %2562 = vmatpush2.bf16.msra.mxu0 %v1815
    %2563 = vmatprep.subr.bf16.mxu0 %v1809
    %2564 = vmatpush2.bf16.msra.mxu0 %v1808
    %2565 = vmatprep.mubr.bf16.mxu0 %v550
    %2566 = vmatmul.mubr.bf16.gmra.mxu0 %v549
    %v2567 = vpop.f32.mrf.mxu0
    %v2568 = vadd.f32 %v2527, %v2567
    %v2569 = vpop.f32.mrf.mxu0
    %v2570 = vadd.f32 %v2529, %v2569
    %v2571 = vpop.f32.mrf.mxu0
    %v2572 = vpop.f32.mrf.mxu0
    %2573 = vdwg.mxu0
    %2574 = vmatprep.subr.bf16.mxu0 %v1914
    %2575 = vmatpush1.bf16.msra.mxu0 %v1913
    %2576 = vmatprep.subr.bf16.mxu0 %v1907
    %2577 = vmatpush1.bf16.msra.mxu0 %v1906
    %2578 = vmatprep.subr.bf16.mxu0 %v1900
    %2579 = vmatpush1.bf16.msra.mxu0 %v1899
    %2580 = vmatprep.subr.bf16.mxu0 %v1893
    %2581 = vmatpush1.bf16.msra.mxu0 %v1892
    %2582 = vmatprep.subr.bf16.mxu0 %v1886
    %2583 = vmatpush1.bf16.msra.mxu0 %v1885
    %2584 = vmatprep.subr.bf16.mxu0 %v1879
    %2585 = vmatpush1.bf16.msra.mxu0 %v1878
    %2586 = vmatprep.subr.bf16.mxu0 %v1872
    %2587 = vmatpush1.bf16.msra.mxu0 %v1871
    %2588 = vmatprep.subr.bf16.mxu0 %v1865
    %2589 = vmatpush1.bf16.msra.mxu0 %v1864
    %2590 = vmatprep.subr.bf16.mxu0 %v1970
    %2591 = vmatpush2.bf16.msra.mxu0 %v1969
    %2592 = vmatprep.subr.bf16.mxu0 %v1963
    %2593 = vmatpush2.bf16.msra.mxu0 %v1962
    %2594 = vmatprep.subr.bf16.mxu0 %v1956
    %2595 = vmatpush2.bf16.msra.mxu0 %v1955
    %2596 = vmatprep.subr.bf16.mxu0 %v1949
    %2597 = vmatpush2.bf16.msra.mxu0 %v1948
    %2598 = vmatprep.subr.bf16.mxu0 %v1942
    %2599 = vmatpush2.bf16.msra.mxu0 %v1941
    %2600 = vmatprep.subr.bf16.mxu0 %v1935
    %2601 = vmatpush2.bf16.msra.mxu0 %v1934
    %2602 = vmatprep.subr.bf16.mxu0 %v1928
    %2603 = vmatpush2.bf16.msra.mxu0 %v1927
    %2604 = vmatprep.subr.bf16.mxu0 %v1921
    %2605 = vmatpush2.bf16.msra.mxu0 %v1920
    %2606 = vmatprep.mubr.bf16.mxu0 %v552
    %2607 = vmatmul.mubr.bf16.gmra.mxu0 %v551
    %v2608 = vpop.f32.mrf.mxu0
    %v2609 = vadd.f32 %v2568, %v2608
    %v2610 = vpop.f32.mrf.mxu0
    %v2611 = vadd.f32 %v2570, %v2610
    %v2612 = vpop.f32.mrf.mxu0
    %v2613 = vpop.f32.mrf.mxu0
    %2614 = vdwg.mxu0
    %2615 = vmatprep.subr.bf16.mxu0 0
    %2616 = vmatpush1.bf16.msra.mxu0 0
    %2617 = vmatprep.subr.bf16.mxu0 0
    %2618 = vmatpush1.bf16.msra.mxu0 0
    %2619 = vmatprep.subr.bf16.mxu0 0
    %2620 = vmatpush1.bf16.msra.mxu0 0
    %2621 = vmatprep.subr.bf16.mxu0 0
    %2622 = vmatpush1.bf16.msra.mxu0 0
    %2623 = vmatprep.subr.bf16.mxu0 0
    %2624 = vmatpush1.bf16.msra.mxu0 0
    %2625 = vmatprep.subr.bf16.mxu0 0
    %2626 = vmatpush1.bf16.msra.mxu0 0
    %2627 = vmatprep.subr.bf16.mxu0 0
    %2628 = vmatpush1.bf16.msra.mxu0 0
    %2629 = vmatprep.subr.bf16.mxu0 %v1977
    %2630 = vmatpush1.bf16.msra.mxu0 %v1976
    %2631 = vmatprep.subr.bf16.mxu0 0
    %2632 = vmatpush2.bf16.msra.mxu0 0
    %2633 = vmatprep.subr.bf16.mxu0 0
    %2634 = vmatpush2.bf16.msra.mxu0 0
    %2635 = vmatprep.subr.bf16.mxu0 0
    %2636 = vmatpush2.bf16.msra.mxu0 0
    %2637 = vmatprep.subr.bf16.mxu0 0
    %2638 = vmatpush2.bf16.msra.mxu0 0
    %2639 = vmatprep.subr.bf16.mxu0 0
    %2640 = vmatpush2.bf16.msra.mxu0 0
    %2641 = vmatprep.subr.bf16.mxu0 0
    %2642 = vmatpush2.bf16.msra.mxu0 0
    %2643 = vmatprep.subr.bf16.mxu0 0
    %2644 = vmatpush2.bf16.msra.mxu0 0
    %2645 = vmatprep.subr.bf16.mxu0 0
    %2646 = vmatpush2.bf16.msra.mxu0 0
    %2647 = vmatprep.mubr.bf16.mxu0 0
    %2648 = vmatmul.mubr.bf16.gmra.mxu0 %v2326
    %v2649 = vpop.f32.mrf.mxu0
    %v2650 = vadd.f32 %v2609, %v2649
    %v2651 = vpop.f32.mrf.mxu0
    %v2652 = vadd.f32 %v2611, %v2651
    %v2653 = vpop.f32.mrf.mxu0
    %v2654 = vpop.f32.mrf.mxu0
    %2655 = vdwg.mxu0
    %2656 = vmatprep.subr.bf16.mxu0 %v1692
    %2657 = vmatpush1.bf16.msra.mxu0 %v1691
    %2658 = vmatprep.subr.bf16.mxu0 %v1685
    %2659 = vmatpush1.bf16.msra.mxu0 %v1684
    %2660 = vmatprep.subr.bf16.mxu0 %v1678
    %2661 = vmatpush1.bf16.msra.mxu0 %v1677
    %2662 = vmatprep.subr.bf16.mxu0 %v1671
    %2663 = vmatpush1.bf16.msra.mxu0 %v1670
    %2664 = vmatprep.subr.bf16.mxu0 %v1664
    %2665 = vmatpush1.bf16.msra.mxu0 %v1663
    %2666 = vmatprep.subr.bf16.mxu0 %v1657
    %2667 = vmatpush1.bf16.msra.mxu0 %v1656
    %2668 = vmatprep.subr.bf16.mxu0 %v1650
    %2669 = vmatpush1.bf16.msra.mxu0 %v1649
    %2670 = vmatprep.subr.bf16.mxu0 %v1643
    %2671 = vmatpush1.bf16.msra.mxu0 %v1642
    %2672 = vmatprep.subr.bf16.mxu0 %v1748
    %2673 = vmatpush2.bf16.msra.mxu0 %v1747
    %2674 = vmatprep.subr.bf16.mxu0 %v1741
    %2675 = vmatpush2.bf16.msra.mxu0 %v1740
    %2676 = vmatprep.subr.bf16.mxu0 %v1734
    %2677 = vmatpush2.bf16.msra.mxu0 %v1733
    %2678 = vmatprep.subr.bf16.mxu0 %v1727
    %2679 = vmatpush2.bf16.msra.mxu0 %v1726
    %2680 = vmatprep.subr.bf16.mxu0 %v1720
    %2681 = vmatpush2.bf16.msra.mxu0 %v1719
    %2682 = vmatprep.subr.bf16.mxu0 %v1713
    %2683 = vmatpush2.bf16.msra.mxu0 %v1712
    %2684 = vmatprep.subr.bf16.mxu0 %v1706
    %2685 = vmatpush2.bf16.msra.mxu0 %v1705
    %2686 = vmatprep.subr.bf16.mxu0 %v1699
    %2687 = vmatpush2.bf16.msra.mxu0 %v1698
    %2688 = vmatprep.mubr.bf16.mxu0 %v548
    %2689 = vmatmul.mubr.bf16.gmra.mxu0 %v547
    %v2690 = vpop.f32.mrf.mxu0
    %v2691 = vadd.f32 %v520, %v2690
    %v2692 = vpop.f32.mrf.mxu0
    %v2693 = vadd.f32 %v524, %v2692
    %v2694 = vpop.f32.mrf.mxu0
    %v2695 = vpop.f32.mrf.mxu0
    %2696 = vdwg.mxu0
    %2697 = vmatprep.subr.bf16.mxu0 %v1804
    %2698 = vmatpush1.bf16.msra.mxu0 %v1803
    %2699 = vmatprep.subr.bf16.mxu0 %v1797
    %2700 = vmatpush1.bf16.msra.mxu0 %v1796
    %2701 = vmatprep.subr.bf16.mxu0 %v1790
    %2702 = vmatpush1.bf16.msra.mxu0 %v1789
    %2703 = vmatprep.subr.bf16.mxu0 %v1783
    %2704 = vmatpush1.bf16.msra.mxu0 %v1782
    %2705 = vmatprep.subr.bf16.mxu0 %v1776
    %2706 = vmatpush1.bf16.msra.mxu0 %v1775
    %2707 = vmatprep.subr.bf16.mxu0 %v1769
    %2708 = vmatpush1.bf16.msra.mxu0 %v1768
    %2709 = vmatprep.subr.bf16.mxu0 %v1762
    %2710 = vmatpush1.bf16.msra.mxu0 %v1761
    %2711 = vmatprep.subr.bf16.mxu0 %v1755
    %2712 = vmatpush1.bf16.msra.mxu0 %v1754
    %2713 = vmatprep.subr.bf16.mxu0 %v1860
    %2714 = vmatpush2.bf16.msra.mxu0 %v1859
    %2715 = vmatprep.subr.bf16.mxu0 %v1853
    %2716 = vmatpush2.bf16.msra.mxu0 %v1852
    %2717 = vmatprep.subr.bf16.mxu0 %v1846
    %2718 = vmatpush2.bf16.msra.mxu0 %v1845
    %2719 = vmatprep.subr.bf16.mxu0 %v1839
    %2720 = vmatpush2.bf16.msra.mxu0 %v1838
    %2721 = vmatprep.subr.bf16.mxu0 %v1832
    %2722 = vmatpush2.bf16.msra.mxu0 %v1831
    %2723 = vmatprep.subr.bf16.mxu0 %v1825
    %2724 = vmatpush2.bf16.msra.mxu0 %v1824
    %2725 = vmatprep.subr.bf16.mxu0 %v1818
    %2726 = vmatpush2.bf16.msra.mxu0 %v1817
    %2727 = vmatprep.subr.bf16.mxu0 %v1811
    %2728 = vmatpush2.bf16.msra.mxu0 %v1810
    %2729 = vmatprep.mubr.bf16.mxu0 %v550
    %2730 = vmatmul.mubr.bf16.gmra.mxu0 %v549
    %v2731 = vpop.f32.mrf.mxu0
    %v2732 = vadd.f32 %v2691, %v2731
    %v2733 = vpop.f32.mrf.mxu0
    %v2734 = vadd.f32 %v2693, %v2733
    %v2735 = vpop.f32.mrf.mxu0
    %v2736 = vpop.f32.mrf.mxu0
    %2737 = vdwg.mxu0
    %2738 = vmatprep.subr.bf16.mxu0 %v1916
    %2739 = vmatpush1.bf16.msra.mxu0 %v1915
    %2740 = vmatprep.subr.bf16.mxu0 %v1909
    %2741 = vmatpush1.bf16.msra.mxu0 %v1908
    %2742 = vmatprep.subr.bf16.mxu0 %v1902
    %2743 = vmatpush1.bf16.msra.mxu0 %v1901
    %2744 = vmatprep.subr.bf16.mxu0 %v1895
    %2745 = vmatpush1.bf16.msra.mxu0 %v1894
    %2746 = vmatprep.subr.bf16.mxu0 %v1888
    %2747 = vmatpush1.bf16.msra.mxu0 %v1887
    %2748 = vmatprep.subr.bf16.mxu0 %v1881
    %2749 = vmatpush1.bf16.msra.mxu0 %v1880
    %2750 = vmatprep.subr.bf16.mxu0 %v1874
    %2751 = vmatpush1.bf16.msra.mxu0 %v1873
    %2752 = vmatprep.subr.bf16.mxu0 %v1867
    %2753 = vmatpush1.bf16.msra.mxu0 %v1866
    %2754 = vmatprep.subr.bf16.mxu0 %v1972
    %2755 = vmatpush2.bf16.msra.mxu0 %v1971
    %2756 = vmatprep.subr.bf16.mxu0 %v1965
    %2757 = vmatpush2.bf16.msra.mxu0 %v1964
    %2758 = vmatprep.subr.bf16.mxu0 %v1958
    %2759 = vmatpush2.bf16.msra.mxu0 %v1957
    %2760 = vmatprep.subr.bf16.mxu0 %v1951
    %2761 = vmatpush2.bf16.msra.mxu0 %v1950
    %2762 = vmatprep.subr.bf16.mxu0 %v1944
    %2763 = vmatpush2.bf16.msra.mxu0 %v1943
    %2764 = vmatprep.subr.bf16.mxu0 %v1937
    %2765 = vmatpush2.bf16.msra.mxu0 %v1936
    %2766 = vmatprep.subr.bf16.mxu0 %v1930
    %2767 = vmatpush2.bf16.msra.mxu0 %v1929
    %2768 = vmatprep.subr.bf16.mxu0 %v1923
    %2769 = vmatpush2.bf16.msra.mxu0 %v1922
    %2770 = vmatprep.mubr.bf16.mxu0 %v552
    %2771 = vmatmul.mubr.bf16.gmra.mxu0 %v551
    %v2772 = vpop.f32.mrf.mxu0
    %v2773 = vadd.f32 %v2732, %v2772
    %v2774 = vpop.f32.mrf.mxu0
    %v2775 = vadd.f32 %v2734, %v2774
    %v2776 = vpop.f32.mrf.mxu0
    %v2777 = vpop.f32.mrf.mxu0
    %2778 = vdwg.mxu0
    %2779 = vmatprep.subr.bf16.mxu0 0
    %2780 = vmatpush1.bf16.msra.mxu0 0
    %2781 = vmatprep.subr.bf16.mxu0 0
    %2782 = vmatpush1.bf16.msra.mxu0 0
    %2783 = vmatprep.subr.bf16.mxu0 0
    %2784 = vmatpush1.bf16.msra.mxu0 0
    %2785 = vmatprep.subr.bf16.mxu0 0
    %2786 = vmatpush1.bf16.msra.mxu0 0
    %2787 = vmatprep.subr.bf16.mxu0 0
    %2788 = vmatpush1.bf16.msra.mxu0 0
    %2789 = vmatprep.subr.bf16.mxu0 0
    %2790 = vmatpush1.bf16.msra.mxu0 0
    %2791 = vmatprep.subr.bf16.mxu0 0
    %2792 = vmatpush1.bf16.msra.mxu0 0
    %2793 = vmatprep.subr.bf16.mxu0 %v1979
    %2794 = vmatpush1.bf16.msra.mxu0 %v1978
    %2795 = vmatprep.subr.bf16.mxu0 0
    %2796 = vmatpush2.bf16.msra.mxu0 0
    %2797 = vmatprep.subr.bf16.mxu0 0
    %2798 = vmatpush2.bf16.msra.mxu0 0
    %2799 = vmatprep.subr.bf16.mxu0 0
    %2800 = vmatpush2.bf16.msra.mxu0 0
    %2801 = vmatprep.subr.bf16.mxu0 0
    %2802 = vmatpush2.bf16.msra.mxu0 0
    %2803 = vmatprep.subr.bf16.mxu0 0
    %2804 = vmatpush2.bf16.msra.mxu0 0
    %2805 = vmatprep.subr.bf16.mxu0 0
    %2806 = vmatpush2.bf16.msra.mxu0 0
    %2807 = vmatprep.subr.bf16.mxu0 0
    %2808 = vmatpush2.bf16.msra.mxu0 0
    %2809 = vmatprep.subr.bf16.mxu0 0
    %2810 = vmatpush2.bf16.msra.mxu0 0
    %2811 = vmatprep.mubr.bf16.mxu0 0
    %2812 = vmatmul.mubr.bf16.gmra.mxu0 %v2326
    %v2813 = vpop.f32.mrf.mxu0
    %v2814 = vadd.f32 %v2773, %v2813
    %v2815 = vpop.f32.mrf.mxu0
    %v2816 = vadd.f32 %v2775, %v2815
    %v2817 = vpop.f32.mrf.mxu0
    %v2818 = vpop.f32.mrf.mxu0
    %2819 = vdwg.mxu0
    %2820 = vmatprep.subr.bf16.mxu0 0
    %2821 = vmatpush1.bf16.msra.mxu0 %v1693
    %2822 = vmatprep.subr.bf16.mxu0 0
    %2823 = vmatpush1.bf16.msra.mxu0 %v1686
    %2824 = vmatprep.subr.bf16.mxu0 0
    %2825 = vmatpush1.bf16.msra.mxu0 %v1679
    %2826 = vmatprep.subr.bf16.mxu0 0
    %2827 = vmatpush1.bf16.msra.mxu0 %v1672
    %2828 = vmatprep.subr.bf16.mxu0 0
    %2829 = vmatpush1.bf16.msra.mxu0 %v1665
    %2830 = vmatprep.subr.bf16.mxu0 0
    %2831 = vmatpush1.bf16.msra.mxu0 %v1658
    %2832 = vmatprep.subr.bf16.mxu0 0
    %2833 = vmatpush1.bf16.msra.mxu0 %v1651
    %2834 = vmatprep.subr.bf16.mxu0 0
    %2835 = vmatpush1.bf16.msra.mxu0 %v1644
    %2836 = vmatprep.subr.bf16.mxu0 0
    %2837 = vmatpush2.bf16.msra.mxu0 %v1749
    %2838 = vmatprep.subr.bf16.mxu0 0
    %2839 = vmatpush2.bf16.msra.mxu0 %v1742
    %2840 = vmatprep.subr.bf16.mxu0 0
    %2841 = vmatpush2.bf16.msra.mxu0 %v1735
    %2842 = vmatprep.subr.bf16.mxu0 0
    %2843 = vmatpush2.bf16.msra.mxu0 %v1728
    %2844 = vmatprep.subr.bf16.mxu0 0
    %2845 = vmatpush2.bf16.msra.mxu0 %v1721
    %2846 = vmatprep.subr.bf16.mxu0 0
    %2847 = vmatpush2.bf16.msra.mxu0 %v1714
    %2848 = vmatprep.subr.bf16.mxu0 0
    %2849 = vmatpush2.bf16.msra.mxu0 %v1707
    %2850 = vmatprep.subr.bf16.mxu0 0
    %2851 = vmatpush2.bf16.msra.mxu0 %v1700
    %2852 = vmatprep.mubr.bf16.mxu0 %v548
    %2853 = vmatmul.mubr.bf16.gmra.mxu0 %v547
    %v2854 = vpop.f32.mrf.mxu0
    %v2855 = vadd.f32 %v528, %v2854
    %v2856 = vpop.f32.mrf.mxu0
    %v2857 = vpop.f32.mrf.mxu0
    %v2858 = vpop.f32.mrf.mxu0
    %2859 = vdwg.mxu0
    %2860 = vmatprep.subr.bf16.mxu0 0
    %2861 = vmatpush1.bf16.msra.mxu0 %v1805
    %2862 = vmatprep.subr.bf16.mxu0 0
    %2863 = vmatpush1.bf16.msra.mxu0 %v1798
    %2864 = vmatprep.subr.bf16.mxu0 0
    %2865 = vmatpush1.bf16.msra.mxu0 %v1791
    %2866 = vmatprep.subr.bf16.mxu0 0
    %2867 = vmatpush1.bf16.msra.mxu0 %v1784
    %2868 = vmatprep.subr.bf16.mxu0 0
    %2869 = vmatpush1.bf16.msra.mxu0 %v1777
    %2870 = vmatprep.subr.bf16.mxu0 0
    %2871 = vmatpush1.bf16.msra.mxu0 %v1770
    %2872 = vmatprep.subr.bf16.mxu0 0
    %2873 = vmatpush1.bf16.msra.mxu0 %v1763
    %2874 = vmatprep.subr.bf16.mxu0 0
    %2875 = vmatpush1.bf16.msra.mxu0 %v1756
    %2876 = vmatprep.subr.bf16.mxu0 0
    %2877 = vmatpush2.bf16.msra.mxu0 %v1861
    %2878 = vmatprep.subr.bf16.mxu0 0
    %2879 = vmatpush2.bf16.msra.mxu0 %v1854
    %2880 = vmatprep.subr.bf16.mxu0 0
    %2881 = vmatpush2.bf16.msra.mxu0 %v1847
    %2882 = vmatprep.subr.bf16.mxu0 0
    %2883 = vmatpush2.bf16.msra.mxu0 %v1840
    %2884 = vmatprep.subr.bf16.mxu0 0
    %2885 = vmatpush2.bf16.msra.mxu0 %v1833
    %2886 = vmatprep.subr.bf16.mxu0 0
    %2887 = vmatpush2.bf16.msra.mxu0 %v1826
    %2888 = vmatprep.subr.bf16.mxu0 0
    %2889 = vmatpush2.bf16.msra.mxu0 %v1819
    %2890 = vmatprep.subr.bf16.mxu0 0
    %2891 = vmatpush2.bf16.msra.mxu0 %v1812
    %2892 = vmatprep.mubr.bf16.mxu0 %v550
    %2893 = vmatmul.mubr.bf16.gmra.mxu0 %v549
    %v2894 = vpop.f32.mrf.mxu0
    %v2895 = vadd.f32 %v2855, %v2894
    %v2896 = vpop.f32.mrf.mxu0
    %v2897 = vpop.f32.mrf.mxu0
    %v2898 = vpop.f32.mrf.mxu0
    %2899 = vdwg.mxu0
    %2900 = vmatprep.subr.bf16.mxu0 0
    %2901 = vmatpush1.bf16.msra.mxu0 %v1917
    %2902 = vmatprep.subr.bf16.mxu0 0
    %2903 = vmatpush1.bf16.msra.mxu0 %v1910
    %2904 = vmatprep.subr.bf16.mxu0 0
    %2905 = vmatpush1.bf16.msra.mxu0 %v1903
    %2906 = vmatprep.subr.bf16.mxu0 0
    %2907 = vmatpush1.bf16.msra.mxu0 %v1896
    %2908 = vmatprep.subr.bf16.mxu0 0
    %2909 = vmatpush1.bf16.msra.mxu0 %v1889
    %2910 = vmatprep.subr.bf16.mxu0 0
    %2911 = vmatpush1.bf16.msra.mxu0 %v1882
    %2912 = vmatprep.subr.bf16.mxu0 0
    %2913 = vmatpush1.bf16.msra.mxu0 %v1875
    %2914 = vmatprep.subr.bf16.mxu0 0
    %2915 = vmatpush1.bf16.msra.mxu0 %v1868
    %2916 = vmatprep.subr.bf16.mxu0 0
    %2917 = vmatpush2.bf16.msra.mxu0 %v1973
    %2918 = vmatprep.subr.bf16.mxu0 0
    %2919 = vmatpush2.bf16.msra.mxu0 %v1966
    %2920 = vmatprep.subr.bf16.mxu0 0
    %2921 = vmatpush2.bf16.msra.mxu0 %v1959
    %2922 = vmatprep.subr.bf16.mxu0 0
    %2923 = vmatpush2.bf16.msra.mxu0 %v1952
    %2924 = vmatprep.subr.bf16.mxu0 0
    %2925 = vmatpush2.bf16.msra.mxu0 %v1945
    %2926 = vmatprep.subr.bf16.mxu0 0
    %2927 = vmatpush2.bf16.msra.mxu0 %v1938
    %2928 = vmatprep.subr.bf16.mxu0 0
    %2929 = vmatpush2.bf16.msra.mxu0 %v1931
    %2930 = vmatprep.subr.bf16.mxu0 0
    %2931 = vmatpush2.bf16.msra.mxu0 %v1924
    %2932 = vmatprep.mubr.bf16.mxu0 %v552
    %2933 = vmatmul.mubr.bf16.gmra.mxu0 %v551
    %v2934 = vpop.f32.mrf.mxu0
    %v2935 = vadd.f32 %v2895, %v2934
    %v2936 = vpop.f32.mrf.mxu0
    %v2937 = vpop.f32.mrf.mxu0
    %v2938 = vpop.f32.mrf.mxu0
    %2939 = vdwg.mxu0
    %2940 = vmatprep.subr.bf16.mxu0 0
    %2941 = vmatpush1.bf16.msra.mxu0 0
    %2942 = vmatprep.subr.bf16.mxu0 0
    %2943 = vmatpush1.bf16.msra.mxu0 0
    %2944 = vmatprep.subr.bf16.mxu0 0
    %2945 = vmatpush1.bf16.msra.mxu0 0
    %2946 = vmatprep.subr.bf16.mxu0 0
    %2947 = vmatpush1.bf16.msra.mxu0 0
    %2948 = vmatprep.subr.bf16.mxu0 0
    %2949 = vmatpush1.bf16.msra.mxu0 0
    %2950 = vmatprep.subr.bf16.mxu0 0
    %2951 = vmatpush1.bf16.msra.mxu0 0
    %2952 = vmatprep.subr.bf16.mxu0 0
    %2953 = vmatpush1.bf16.msra.mxu0 0
    %2954 = vmatprep.subr.bf16.mxu0 0
    %2955 = vmatpush1.bf16.msra.mxu0 %v1980
    %2956 = vmatprep.subr.bf16.mxu0 0
    %2957 = vmatpush2.bf16.msra.mxu0 0
    %2958 = vmatprep.subr.bf16.mxu0 0
    %2959 = vmatpush2.bf16.msra.mxu0 0
    %2960 = vmatprep.subr.bf16.mxu0 0
    %2961 = vmatpush2.bf16.msra.mxu0 0
    %2962 = vmatprep.subr.bf16.mxu0 0
    %2963 = vmatpush2.bf16.msra.mxu0 0
    %2964 = vmatprep.subr.bf16.mxu0 0
    %2965 = vmatpush2.bf16.msra.mxu0 0
    %2966 = vmatprep.subr.bf16.mxu0 0
    %2967 = vmatpush2.bf16.msra.mxu0 0
    %2968 = vmatprep.subr.bf16.mxu0 0
    %2969 = vmatpush2.bf16.msra.mxu0 0
    %2970 = vmatprep.subr.bf16.mxu0 0
    %2971 = vmatpush2.bf16.msra.mxu0 0
    %2972 = vmatprep.mubr.bf16.mxu0 0
    %2973 = vmatmul.mubr.bf16.gmra.mxu0 %v2326
    %v2974 = vpop.f32.mrf.mxu0
    %v2975 = vadd.f32 %v2935, %v2974
    %v2976 = vpop.f32.mrf.mxu0
    %v2977 = vpop.f32.mrf.mxu0
    %v2978 = vpop.f32.mrf.mxu0
    %2979 = vdwg.mxu0
    %v2980 = vmax.f32 %v2486, 0.0
    %v2981 = vmax.f32 %v2488, 0.0
    %v2982 = vmax.f32 %v2650, 0.0
    %v2983 = vmax.f32 %v2652, 0.0
    %v2984 = vmax.f32 %v2814, 0.0
    %v2985 = vmax.f32 %v2816, 0.0
    %v2986 = vmax.f32 %v2975, 0.0
    %v2987 = vpack.c.bf16 %v2980, %v2980
    %v2988 = vpack.c.bf16 %v2981, %v2981
    %v2989 = vpack.c.bf16 %v2982, %v2982
    %v2990 = vpack.c.bf16 %v2983, %v2983
    %v2991 = vpack.c.bf16 %v2984, %v2984
    %v2992 = vpack.c.bf16 %v2985, %v2985
    %v2993 = vpack.c.bf16 %v2986, %v2986
    %v2994 = vld [vmem:[#allocation6] sm:$0xff]
    %v2995 = vld [vmem:[#allocation6 + $0x8] sm:$0xff]
    %v2996 = vld [vmem:[#allocation6 + $0x10] sm:$0xff]
    %v2997 = vld [vmem:[#allocation6 + $0x18] sm:$0xf]
    %v2998 = vld [vmem:[#allocation6 + $0x1c] sm:$0xff]
    %v2999 = vld [vmem:[#allocation6 + $0x24] sm:$0xff]
    %v3000 = vld [vmem:[#allocation6 + $0x2c] sm:$0xff]
    %v3001 = vld [vmem:[#allocation6 + $0x34] sm:$0xf]
    %v3002 = vld [vmem:[#allocation6 + $0x38] sm:$0xff]
    %v3003 = vld [vmem:[#allocation6 + $0x40] sm:$0xff]
    %v3004 = vld [vmem:[#allocation6 + $0x48] sm:$0xff]
    %v3005 = vld [vmem:[#allocation6 + $0x50] sm:$0xf]
    %v3006 = vld [vmem:[#allocation6 + $0x54] sm:$0xff]
    %v3007 = vld [vmem:[#allocation6 + $0x5c] sm:$0xff]
    %v3008 = vld [vmem:[#allocation6 + $0x64] sm:$0xff]
    %v3009 = vld [vmem:[#allocation6 + $0x6c] sm:$0xf]
    %v3010 = vld [vmem:[#allocation6 + $0x70] sm:$0xff]
    %v3011 = vld [vmem:[#allocation6 + $0x78] sm:$0xff]
    %v3012 = vld [vmem:[#allocation6 + $0x80] sm:$0xff]
    %v3013 = vld [vmem:[#allocation6 + $0x88] sm:$0xf]
    %v3014 = vld [vmem:[#allocation6 + $0x8c] sm:$0xff]
    %v3015 = vld [vmem:[#allocation6 + $0x94] sm:$0xff]
    %v3016 = vld [vmem:[#allocation6 + $0x9c] sm:$0xff]
    %v3017 = vld [vmem:[#allocation6 + $0xa4] sm:$0xf]
    %v3018 = vld [vmem:[#allocation6 + $0xa8] sm:$0xff]
    %v3019 = vld [vmem:[#allocation6 + $0xb0] sm:$0xff]
    %v3020 = vld [vmem:[#allocation6 + $0xb8] sm:$0xff]
    %v3021 = vld [vmem:[#allocation6 + $0xc0] sm:$0xf]
    %v3022 = vld [vmem:[#allocation6 + $0xc4] sm:$0xff]
    %v3023 = vld [vmem:[#allocation6 + $0xcc] sm:$0xff]
    %v3024 = vld [vmem:[#allocation6 + $0xd4] sm:$0xff]
    %v3025 = vld [vmem:[#allocation6 + $0xdc] sm:$0xf]
    %v3026 = vld [vmem:[#allocation6 + $0xe0] sm:$0xff]
    %v3027 = vld [vmem:[#allocation6 + $0xe8] sm:$0xff]
    %v3028 = vld [vmem:[#allocation6 + $0xf0] sm:$0xff]
    %v3029 = vld [vmem:[#allocation6 + $0xf8] sm:$0xf]
    %v3030 = vld [vmem:[#allocation6 + $0xfc] sm:$0xff]
    %v3031 = vld [vmem:[#allocation6 + $0x104] sm:$0xff]
    %v3032 = vld [vmem:[#allocation6 + $0x10c] sm:$0xff]
    %v3033 = vld [vmem:[#allocation6 + $0x114] sm:$0xf]
    %v3034 = vld [vmem:[#allocation6 + $0x118] sm:$0xff]
    %v3035 = vld [vmem:[#allocation6 + $0x120] sm:$0xff]
    %v3036 = vld [vmem:[#allocation6 + $0x128] sm:$0xff]
    %v3037 = vld [vmem:[#allocation6 + $0x130] sm:$0xf]
    %v3038 = vld [vmem:[#allocation6 + $0x134] sm:$0xff]
    %v3039 = vld [vmem:[#allocation6 + $0x13c] sm:$0xff]
    %v3040 = vld [vmem:[#allocation6 + $0x144] sm:$0xff]
    %v3041 = vld [vmem:[#allocation6 + $0x14c] sm:$0xf]
    %v3042 = vld [vmem:[#allocation6 + $0x150] sm:$0xff]
    %v3043 = vld [vmem:[#allocation6 + $0x158] sm:$0xff]
    %v3044 = vld [vmem:[#allocation6 + $0x160] sm:$0xff]
    %v3045 = vld [vmem:[#allocation6 + $0x168] sm:$0xf]
    %v3046 = vld [vmem:[#allocation6 + $0x16c] sm:$0xff]
    %v3047 = vld [vmem:[#allocation6 + $0x174] sm:$0xff]
    %v3048 = vld [vmem:[#allocation6 + $0x17c] sm:$0xff]
    %v3049 = vld [vmem:[#allocation6 + $0x184] sm:$0xf]
    %v3050 = vld [vmem:[#allocation6 + $0x188] sm:$0xff]
    %v3051 = vld [vmem:[#allocation6 + $0x190] sm:$0xff]
    %v3052 = vld [vmem:[#allocation6 + $0x198] sm:$0xff]
    %v3053 = vld [vmem:[#allocation6 + $0x1a0] sm:$0xf]
    %v3054 = vld [vmem:[#allocation6 + $0x1a4] sm:$0xff]
    %v3055 = vld [vmem:[#allocation6 + $0x1ac] sm:$0xff]
    %v3056 = vld [vmem:[#allocation6 + $0x1b4] sm:$0xff]
    %v3057 = vld [vmem:[#allocation6 + $0x1bc] sm:$0xf]
    %v3058 = vld [vmem:[#allocation6 + $0x1c0] sm:$0xff]
    %v3059 = vld [vmem:[#allocation6 + $0x1c8] sm:$0xff]
    %v3060 = vld [vmem:[#allocation6 + $0x1d0] sm:$0xff]
    %v3061 = vld [vmem:[#allocation6 + $0x1d8] sm:$0xf]
    %v3062 = vld [vmem:[#allocation6 + $0x1dc] sm:$0xff]
    %v3063 = vld [vmem:[#allocation6 + $0x1e4] sm:$0xff]
    %v3064 = vld [vmem:[#allocation6 + $0x1ec] sm:$0xff]
    %v3065 = vld [vmem:[#allocation6 + $0x1f4] sm:$0xf]
    %v3066 = vld [vmem:[#allocation6 + $0x1f8] sm:$0xff]
    %v3067 = vld [vmem:[#allocation6 + $0x200] sm:$0xff]
    %v3068 = vld [vmem:[#allocation6 + $0x208] sm:$0xff]
    %v3069 = vld [vmem:[#allocation6 + $0x210] sm:$0xf]
    %v3070 = vld [vmem:[#allocation6 + $0x214] sm:$0xff]
    %v3071 = vld [vmem:[#allocation6 + $0x21c] sm:$0xff]
    %v3072 = vld [vmem:[#allocation6 + $0x224] sm:$0xff]
    %v3073 = vld [vmem:[#allocation6 + $0x22c] sm:$0xf]
    %v3074 = vld [vmem:[#allocation6 + $0x230] sm:$0xff]
    %v3075 = vld [vmem:[#allocation6 + $0x238] sm:$0xff]
    %v3076 = vld [vmem:[#allocation6 + $0x240] sm:$0xff]
    %v3077 = vld [vmem:[#allocation6 + $0x248] sm:$0xf]
    %v3078 = vld [vmem:[#allocation6 + $0x24c] sm:$0xff]
    %v3079 = vld [vmem:[#allocation6 + $0x254] sm:$0xff]
    %v3080 = vld [vmem:[#allocation6 + $0x25c] sm:$0xff]
    %v3081 = vld [vmem:[#allocation6 + $0x264] sm:$0xf]
    %v3082 = vld [vmem:[#allocation6 + $0x268] sm:$0xff]
    %v3083 = vld [vmem:[#allocation6 + $0x270] sm:$0xff]
    %v3084 = vld [vmem:[#allocation6 + $0x278] sm:$0xff]
    %v3085 = vld [vmem:[#allocation6 + $0x280] sm:$0xf]
    %v3086 = vld [vmem:[#allocation6 + $0x284] sm:$0xff]
    %v3087 = vld [vmem:[#allocation6 + $0x28c] sm:$0xff]
    %v3088 = vld [vmem:[#allocation6 + $0x294] sm:$0xff]
    %v3089 = vld [vmem:[#allocation6 + $0x29c] sm:$0xf]
    %v3090 = vld [vmem:[#allocation6 + $0x2a0] sm:$0xff]
    %v3091 = vld [vmem:[#allocation6 + $0x2a8] sm:$0xff]
    %v3092 = vld [vmem:[#allocation6 + $0x2b0] sm:$0xff]
    %v3093 = vld [vmem:[#allocation6 + $0x2b8] sm:$0xf]
    %v3094 = vld [vmem:[#allocation6 + $0x2bc] sm:$0xff]
    %v3095 = vld [vmem:[#allocation6 + $0x2c4] sm:$0xff]
    %v3096 = vld [vmem:[#allocation6 + $0x2cc] sm:$0xff]
    %v3097 = vld [vmem:[#allocation6 + $0x2d4] sm:$0xf]
    %v3098 = vld [vmem:[#allocation6 + $0x2d8] sm:$0xff]
    %v3099 = vld [vmem:[#allocation6 + $0x2e0] sm:$0xff]
    %v3100 = vld [vmem:[#allocation6 + $0x2e8] sm:$0xff]
    %v3101 = vld [vmem:[#allocation6 + $0x2f0] sm:$0xf]
    %v3102 = vld [vmem:[#allocation6 + $0x2f4] sm:$0xff]
    %v3103 = vld [vmem:[#allocation6 + $0x2fc] sm:$0xff]
    %v3104 = vld [vmem:[#allocation6 + $0x304] sm:$0xff]
    %v3105 = vld [vmem:[#allocation6 + $0x30c] sm:$0xf]
    %v3106 = vld [vmem:[#allocation6 + $0x310] sm:$0xff]
    %v3107 = vld [vmem:[#allocation6 + $0x318] sm:$0xff]
    %v3108 = vld [vmem:[#allocation6 + $0x320] sm:$0xff]
    %v3109 = vld [vmem:[#allocation6 + $0x328] sm:$0xf]
    %v3110 = vld [vmem:[#allocation6 + $0x32c] sm:$0xff]
    %v3111 = vld [vmem:[#allocation6 + $0x334] sm:$0xff]
    %v3112 = vld [vmem:[#allocation6 + $0x33c] sm:$0xff]
    %v3113 = vld [vmem:[#allocation6 + $0x344] sm:$0xf]
    %v3114 = vld [vmem:[#allocation6 + $0x348] sm:$0xff]
    %v3115 = vld [vmem:[#allocation6 + $0x350] sm:$0xff]
    %v3116 = vld [vmem:[#allocation6 + $0x358] sm:$0xff]
    %v3117 = vld [vmem:[#allocation6 + $0x360] sm:$0xf]
    %v3118 = vld [vmem:[#allocation6 + $0x364] sm:$0xff]
    %v3119 = vld [vmem:[#allocation6 + $0x36c] sm:$0xff]
    %v3120 = vld [vmem:[#allocation6 + $0x374] sm:$0xff]
    %v3121 = vld [vmem:[#allocation6 + $0x37c] sm:$0xf]
    %v3122 = vld [vmem:[#allocation6 + $0x380] sm:$0xff]
    %v3123 = vld [vmem:[#allocation6 + $0x388] sm:$0xff]
    %v3124 = vld [vmem:[#allocation6 + $0x390] sm:$0xff]
    %v3125 = vld [vmem:[#allocation6 + $0x398] sm:$0xf]
    %v3126 = vld [vmem:[#allocation6 + $0x39c] sm:$0xff]
    %v3127 = vld [vmem:[#allocation6 + $0x3a4] sm:$0xff]
    %v3128 = vld [vmem:[#allocation6 + $0x3ac] sm:$0xff]
    %v3129 = vld [vmem:[#allocation6 + $0x3b4] sm:$0xf]
    %v3130 = vld [vmem:[#allocation6 + $0x3b8] sm:$0xff]
    %v3131 = vld [vmem:[#allocation6 + $0x3c0] sm:$0xff]
    %v3132 = vld [vmem:[#allocation6 + $0x3c8] sm:$0xff]
    %v3133 = vld [vmem:[#allocation6 + $0x3d0] sm:$0xf]
    %v3134 = vld [vmem:[#allocation6 + $0x3d4] sm:$0xff]
    %v3135 = vld [vmem:[#allocation6 + $0x3dc] sm:$0xff]
    %v3136 = vld [vmem:[#allocation6 + $0x3e4] sm:$0xff]
    %v3137 = vld [vmem:[#allocation6 + $0x3ec] sm:$0xf]
    %v3138 = vld [vmem:[#allocation6 + $0x3f0] sm:$0xff]
    %v3139 = vld [vmem:[#allocation6 + $0x3f8] sm:$0xff]
    %v3140 = vld [vmem:[#allocation6 + $0x400] sm:$0xff]
    %v3141 = vld [vmem:[#allocation6 + $0x408] sm:$0xf]
    %v3142 = vld [vmem:[#allocation6 + $0x40c] sm:$0xff]
    %v3143 = vld [vmem:[#allocation6 + $0x414] sm:$0xff]
    %v3144 = vld [vmem:[#allocation6 + $0x41c] sm:$0xff]
    %v3145 = vld [vmem:[#allocation6 + $0x424] sm:$0xf]
    %v3146 = vld [vmem:[#allocation6 + $0x428] sm:$0xff]
    %v3147 = vld [vmem:[#allocation6 + $0x430] sm:$0xff]
    %v3148 = vld [vmem:[#allocation6 + $0x438] sm:$0xff]
    %v3149 = vld [vmem:[#allocation6 + $0x440] sm:$0xf]
    %v3150 = vld [vmem:[#allocation6 + $0x444] sm:$0xff]
    %v3151 = vld [vmem:[#allocation6 + $0x44c] sm:$0xff]
    %v3152 = vld [vmem:[#allocation6 + $0x454] sm:$0xff]
    %v3153 = vld [vmem:[#allocation6 + $0x45c] sm:$0xf]
    %v3154 = vld [vmem:[#allocation6 + $0x460] sm:$0xff]
    %v3155 = vld [vmem:[#allocation6 + $0x468] sm:$0xff]
    %v3156 = vld [vmem:[#allocation6 + $0x470] sm:$0xff]
    %v3157 = vld [vmem:[#allocation6 + $0x478] sm:$0xf]
    %v3158 = vld [vmem:[#allocation6 + $0x47c] sm:$0xff]
    %v3159 = vld [vmem:[#allocation6 + $0x484] sm:$0xff]
    %v3160 = vld [vmem:[#allocation6 + $0x48c] sm:$0xff]
    %v3161 = vld [vmem:[#allocation6 + $0x494] sm:$0xf]
    %v3162 = vld [vmem:[#allocation6 + $0x498] sm:$0xff]
    %v3163 = vld [vmem:[#allocation6 + $0x4a0] sm:$0xff]
    %v3164 = vld [vmem:[#allocation6 + $0x4a8] sm:$0xff]
    %v3165 = vld [vmem:[#allocation6 + $0x4b0] sm:$0xf]
    %v3166 = vld [vmem:[#allocation6 + $0x4b4] sm:$0xff]
    %v3167 = vld [vmem:[#allocation6 + $0x4bc] sm:$0xff]
    %v3168 = vld [vmem:[#allocation6 + $0x4c4] sm:$0xff]
    %v3169 = vld [vmem:[#allocation6 + $0x4cc] sm:$0xf]
    %v3170 = vld [vmem:[#allocation6 + $0x4d0] sm:$0xff]
    %v3171 = vld [vmem:[#allocation6 + $0x4d8] sm:$0xff]
    %v3172 = vld [vmem:[#allocation6 + $0x4e0] sm:$0xff]
    %v3173 = vld [vmem:[#allocation6 + $0x4e8] sm:$0xf]
    %v3174 = vld [vmem:[#allocation6 + $0x4ec] sm:$0xff]
    %v3175 = vld [vmem:[#allocation6 + $0x4f4] sm:$0xff]
    %v3176 = vld [vmem:[#allocation6 + $0x4fc] sm:$0xff]
    %v3177 = vld [vmem:[#allocation6 + $0x504] sm:$0xf]
    %v3178 = vld [vmem:[#allocation6 + $0x508] sm:$0xff]
    %v3179 = vld [vmem:[#allocation6 + $0x510] sm:$0xff]
    %v3180 = vld [vmem:[#allocation6 + $0x518] sm:$0xff]
    %v3181 = vld [vmem:[#allocation6 + $0x520] sm:$0xf]
    %v3182 = vld [vmem:[#allocation6 + $0x524] sm:$0xff]
    %v3183 = vld [vmem:[#allocation6 + $0x52c] sm:$0xff]
    %v3184 = vld [vmem:[#allocation6 + $0x534] sm:$0xff]
    %v3185 = vld [vmem:[#allocation6 + $0x53c] sm:$0xf]
    %v3186 = vld [vmem:[#allocation6 + $0x540] sm:$0xff]
    %v3187 = vld [vmem:[#allocation6 + $0x548] sm:$0xff]
    %v3188 = vld [vmem:[#allocation6 + $0x550] sm:$0xff]
    %v3189 = vld [vmem:[#allocation6 + $0x558] sm:$0xf]
    %v3190 = vld [vmem:[#allocation6 + $0x55c] sm:$0xff]
    %v3191 = vld [vmem:[#allocation6 + $0x564] sm:$0xff]
    %v3192 = vld [vmem:[#allocation6 + $0x56c] sm:$0xff]
    %v3193 = vld [vmem:[#allocation6 + $0x574] sm:$0xf]
    %v3194 = vld [vmem:[#allocation6 + $0x578] sm:$0xff]
    %v3195 = vld [vmem:[#allocation6 + $0x580] sm:$0xff]
    %v3196 = vld [vmem:[#allocation6 + $0x588] sm:$0xff]
    %v3197 = vld [vmem:[#allocation6 + $0x590] sm:$0xf]
    %v3198 = vld [vmem:[#allocation6 + $0x594] sm:$0xff]
    %v3199 = vld [vmem:[#allocation6 + $0x59c] sm:$0xff]
    %v3200 = vld [vmem:[#allocation6 + $0x5a4] sm:$0xff]
    %v3201 = vld [vmem:[#allocation6 + $0x5ac] sm:$0xf]
    %v3202 = vld [vmem:[#allocation6 + $0x5b0] sm:$0xff]
    %v3203 = vld [vmem:[#allocation6 + $0x5b8] sm:$0xff]
    %v3204 = vld [vmem:[#allocation6 + $0x5c0] sm:$0xff]
    %v3205 = vld [vmem:[#allocation6 + $0x5c8] sm:$0xf]
    %v3206 = vld [vmem:[#allocation6 + $0x5cc] sm:$0xff]
    %v3207 = vld [vmem:[#allocation6 + $0x5d4] sm:$0xff]
    %v3208 = vld [vmem:[#allocation6 + $0x5dc] sm:$0xff]
    %v3209 = vld [vmem:[#allocation6 + $0x5e4] sm:$0xf]
    %v3210 = vld [vmem:[#allocation6 + $0x5e8] sm:$0xff]
    %v3211 = vld [vmem:[#allocation6 + $0x5f0] sm:$0xff]
    %v3212 = vld [vmem:[#allocation6 + $0x5f8] sm:$0xff]
    %v3213 = vld [vmem:[#allocation6 + $0x600] sm:$0xf]
    %v3214 = vld [vmem:[#allocation6 + $0x604] sm:$0xff]
    %v3215 = vld [vmem:[#allocation6 + $0x60c] sm:$0xff]
    %v3216 = vld [vmem:[#allocation6 + $0x614] sm:$0xff]
    %v3217 = vld [vmem:[#allocation6 + $0x61c] sm:$0xf]
    %v3218 = vld [vmem:[#allocation6 + $0x620] sm:$0xff]
    %v3219 = vld [vmem:[#allocation6 + $0x628] sm:$0xff]
    %v3220 = vld [vmem:[#allocation6 + $0x630] sm:$0xff]
    %v3221 = vld [vmem:[#allocation6 + $0x638] sm:$0xf]
    %v3222 = vld [vmem:[#allocation6 + $0x63c] sm:$0xff]
    %v3223 = vld [vmem:[#allocation6 + $0x644] sm:$0xff]
    %v3224 = vld [vmem:[#allocation6 + $0x64c] sm:$0xff]
    %v3225 = vld [vmem:[#allocation6 + $0x654] sm:$0xf]
    %v3226 = vld [vmem:[#allocation6 + $0x658] sm:$0xff]
    %v3227 = vld [vmem:[#allocation6 + $0x660] sm:$0xff]
    %v3228 = vld [vmem:[#allocation6 + $0x668] sm:$0xff]
    %v3229 = vld [vmem:[#allocation6 + $0x670] sm:$0xf]
    %v3230 = vld [vmem:[#allocation6 + $0x674] sm:$0xff]
    %v3231 = vld [vmem:[#allocation6 + $0x67c] sm:$0xff]
    %v3232 = vld [vmem:[#allocation6 + $0x684] sm:$0xff]
    %v3233 = vld [vmem:[#allocation6 + $0x68c] sm:$0xf]
    %v3234 = vld [vmem:[#allocation6 + $0x690] sm:$0xff]
    %v3235 = vld [vmem:[#allocation6 + $0x698] sm:$0xff]
    %v3236 = vld [vmem:[#allocation6 + $0x6a0] sm:$0xff]
    %v3237 = vld [vmem:[#allocation6 + $0x6a8] sm:$0xf]
    %v3238 = vld [vmem:[#allocation6 + $0x6ac] sm:$0xff]
    %v3239 = vld [vmem:[#allocation6 + $0x6b4] sm:$0xff]
    %v3240 = vld [vmem:[#allocation6 + $0x6bc] sm:$0xff]
    %v3241 = vld [vmem:[#allocation6 + $0x6c4] sm:$0xf]
    %v3242 = vld [vmem:[#allocation6 + $0x6c8] sm:$0xff]
    %v3243 = vld [vmem:[#allocation6 + $0x6d0] sm:$0xff]
    %v3244 = vld [vmem:[#allocation6 + $0x6d8] sm:$0xff]
    %v3245 = vld [vmem:[#allocation6 + $0x6e0] sm:$0xf]
    %v3246 = vld [vmem:[#allocation6 + $0x6e4] sm:$0xff]
    %v3247 = vld [vmem:[#allocation6 + $0x6ec] sm:$0xff]
    %v3248 = vld [vmem:[#allocation6 + $0x6f4] sm:$0xff]
    %v3249 = vld [vmem:[#allocation6 + $0x6fc] sm:$0xf]
    %v3250 = vld [vmem:[#allocation6 + $0x700] sm:$0xff]
    %v3251 = vld [vmem:[#allocation6 + $0x708] sm:$0xff]
    %v3252 = vld [vmem:[#allocation6 + $0x710] sm:$0xff]
    %v3253 = vld [vmem:[#allocation6 + $0x718] sm:$0xf]
    %v3254 = vld [vmem:[#allocation6 + $0x71c] sm:$0xff]
    %v3255 = vld [vmem:[#allocation6 + $0x724] sm:$0xff]
    %v3256 = vld [vmem:[#allocation6 + $0x72c] sm:$0xff]
    %v3257 = vld [vmem:[#allocation6 + $0x734] sm:$0xf]
    %v3258 = vld [vmem:[#allocation6 + $0x738] sm:$0xff]
    %v3259 = vld [vmem:[#allocation6 + $0x740] sm:$0xff]
    %v3260 = vld [vmem:[#allocation6 + $0x748] sm:$0xff]
    %v3261 = vld [vmem:[#allocation6 + $0x750] sm:$0xf]
    %v3262 = vld [vmem:[#allocation6 + $0x754] sm:$0xff]
    %v3263 = vld [vmem:[#allocation6 + $0x75c] sm:$0xff]
    %v3264 = vld [vmem:[#allocation6 + $0x764] sm:$0xff]
    %v3265 = vld [vmem:[#allocation6 + $0x76c] sm:$0xf]
    %v3266 = vld [vmem:[#allocation6 + $0x770] sm:$0xff]
    %v3267 = vld [vmem:[#allocation6 + $0x778] sm:$0xff]
    %v3268 = vld [vmem:[#allocation6 + $0x780] sm:$0xff]
    %v3269 = vld [vmem:[#allocation6 + $0x788] sm:$0xf]
    %v3270 = vld [vmem:[#allocation6 + $0x78c] sm:$0xff]
    %v3271 = vld [vmem:[#allocation6 + $0x794] sm:$0xff]
    %v3272 = vld [vmem:[#allocation6 + $0x79c] sm:$0xff]
    %v3273 = vld [vmem:[#allocation6 + $0x7a4] sm:$0xf]
    %v3274 = vld [vmem:[#allocation6 + $0x7a8] sm:$0xff]
    %v3275 = vld [vmem:[#allocation6 + $0x7b0] sm:$0xff]
    %v3276 = vld [vmem:[#allocation6 + $0x7b8] sm:$0xff]
    %v3277 = vld [vmem:[#allocation6 + $0x7c0] sm:$0xf]
    %v3278 = vld [vmem:[#allocation6 + $0x7c4] sm:$0xff]
    %v3279 = vld [vmem:[#allocation6 + $0x7cc] sm:$0xff]
    %v3280 = vld [vmem:[#allocation6 + $0x7d4] sm:$0xff]
    %v3281 = vld [vmem:[#allocation6 + $0x7dc] sm:$0xf]
    %v3282 = vld [vmem:[#allocation6 + $0x7e0] sm:$0xff]
    %v3283 = vld [vmem:[#allocation6 + $0x7e8] sm:$0xff]
    %v3284 = vld [vmem:[#allocation6 + $0x7f0] sm:$0xff]
    %v3285 = vld [vmem:[#allocation6 + $0x7f8] sm:$0xf]
    %v3286 = vld [vmem:[#allocation6 + $0x7fc] sm:$0xff]
    %v3287 = vld [vmem:[#allocation6 + $0x804] sm:$0xff]
    %v3288 = vld [vmem:[#allocation6 + $0x80c] sm:$0xff]
    %v3289 = vld [vmem:[#allocation6 + $0x814] sm:$0xf]
    %v3290 = vld [vmem:[#allocation6 + $0x818] sm:$0xff]
    %v3291 = vld [vmem:[#allocation6 + $0x820] sm:$0xff]
    %v3292 = vld [vmem:[#allocation6 + $0x828] sm:$0xff]
    %v3293 = vld [vmem:[#allocation6 + $0x830] sm:$0xf]
    %v3294 = vld [vmem:[#allocation6 + $0x834] sm:$0xff]
    %v3295 = vld [vmem:[#allocation6 + $0x83c] sm:$0xff]
    %v3296 = vld [vmem:[#allocation6 + $0x844] sm:$0xff]
    %v3297 = vld [vmem:[#allocation6 + $0x84c] sm:$0xf]
    %v3298 = vld [vmem:[#allocation6 + $0x850] sm:$0xff]
    %v3299 = vld [vmem:[#allocation6 + $0x858] sm:$0xff]
    %v3300 = vld [vmem:[#allocation6 + $0x860] sm:$0xff]
    %v3301 = vld [vmem:[#allocation6 + $0x868] sm:$0xf]
    %v3302 = vld [vmem:[#allocation6 + $0x86c] sm:$0xff]
    %v3303 = vld [vmem:[#allocation6 + $0x874] sm:$0xff]
    %v3304 = vld [vmem:[#allocation6 + $0x87c] sm:$0xff]
    %v3305 = vld [vmem:[#allocation6 + $0x884] sm:$0xf]
    %v3306 = vld [vmem:[#allocation6 + $0x888] sm:$0xff]
    %v3307 = vld [vmem:[#allocation6 + $0x890] sm:$0xff]
    %v3308 = vld [vmem:[#allocation6 + $0x898] sm:$0xff]
    %v3309 = vld [vmem:[#allocation6 + $0x8a0] sm:$0xf]
    %v3310 = vld [vmem:[#allocation6 + $0x8a4] sm:$0xff]
    %v3311 = vld [vmem:[#allocation6 + $0x8ac] sm:$0xff]
    %v3312 = vld [vmem:[#allocation6 + $0x8b4] sm:$0xff]
    %v3313 = vld [vmem:[#allocation6 + $0x8bc] sm:$0xf]
    %v3314 = vld [vmem:[#allocation6 + $0x8c0] sm:$0xff]
    %v3315 = vld [vmem:[#allocation6 + $0x8c8] sm:$0xff]
    %v3316 = vld [vmem:[#allocation6 + $0x8d0] sm:$0xff]
    %v3317 = vld [vmem:[#allocation6 + $0x8d8] sm:$0xf]
    %v3318 = vld [vmem:[#allocation6 + $0x8dc] sm:$0xff]
    %v3319 = vld [vmem:[#allocation6 + $0x8e4] sm:$0xff]
    %v3320 = vld [vmem:[#allocation6 + $0x8ec] sm:$0xff]
    %v3321 = vld [vmem:[#allocation6 + $0x8f4] sm:$0xf]
    %v3322 = vld [vmem:[#allocation6 + $0x8f8] sm:$0xff]
    %v3323 = vld [vmem:[#allocation6 + $0x900] sm:$0xff]
    %v3324 = vld [vmem:[#allocation6 + $0x908] sm:$0xff]
    %v3325 = vld [vmem:[#allocation6 + $0x910] sm:$0xf]
    %v3326 = vld [vmem:[#allocation6 + $0x914] sm:$0xff]
    %v3327 = vld [vmem:[#allocation6 + $0x91c] sm:$0xff]
    %v3328 = vld [vmem:[#allocation6 + $0x924] sm:$0xff]
    %v3329 = vld [vmem:[#allocation6 + $0x92c] sm:$0xf]
    %v3330 = vld [vmem:[#allocation6 + $0x930] sm:$0xff]
    %v3331 = vld [vmem:[#allocation6 + $0x938] sm:$0xff]
    %v3332 = vld [vmem:[#allocation6 + $0x940] sm:$0xff]
    %v3333 = vld [vmem:[#allocation6 + $0x948] sm:$0xf]
    %v3334 = vld [vmem:[#allocation6 + $0x94c] sm:$0xff]
    %v3335 = vld [vmem:[#allocation6 + $0x954] sm:$0xff]
    %v3336 = vld [vmem:[#allocation6 + $0x95c] sm:$0xff]
    %v3337 = vld [vmem:[#allocation6 + $0x964] sm:$0xf]
    %v3338 = vld [vmem:[#allocation6 + $0x968] sm:$0xff]
    %v3339 = vld [vmem:[#allocation6 + $0x970] sm:$0xff]
    %v3340 = vld [vmem:[#allocation6 + $0x978] sm:$0xff]
    %v3341 = vld [vmem:[#allocation6 + $0x980] sm:$0xf]
    %v3342 = vld [vmem:[#allocation6 + $0x984] sm:$0xff]
    %v3343 = vld [vmem:[#allocation6 + $0x98c] sm:$0xff]
    %v3344 = vld [vmem:[#allocation6 + $0x994] sm:$0xff]
    %v3345 = vld [vmem:[#allocation6 + $0x99c] sm:$0xf]
    %v3346 = vld [vmem:[#allocation6 + $0x9a0] sm:$0xff]
    %v3347 = vld [vmem:[#allocation6 + $0x9a8] sm:$0xff]
    %v3348 = vld [vmem:[#allocation6 + $0x9b0] sm:$0xff]
    %v3349 = vld [vmem:[#allocation6 + $0x9b8] sm:$0xf]
    %v3350 = vld [vmem:[#allocation6 + $0x9bc] sm:$0xff]
    %v3351 = vld [vmem:[#allocation6 + $0x9c4] sm:$0xff]
    %v3352 = vld [vmem:[#allocation6 + $0x9cc] sm:$0xff]
    %v3353 = vld [vmem:[#allocation6 + $0x9d4] sm:$0xf]
    %v3354 = vld [vmem:[#allocation6 + $0x9d8] sm:$0xff]
    %v3355 = vld [vmem:[#allocation6 + $0x9e0] sm:$0xff]
    %v3356 = vld [vmem:[#allocation6 + $0x9e8] sm:$0xff]
    %v3357 = vld [vmem:[#allocation6 + $0x9f0] sm:$0xf]
    %v3358 = vld [vmem:[#allocation6 + $0x9f4] sm:$0xff]
    %v3359 = vld [vmem:[#allocation6 + $0x9fc] sm:$0xff]
    %v3360 = vld [vmem:[#allocation6 + $0xa04] sm:$0xff]
    %v3361 = vld [vmem:[#allocation6 + $0xa0c] sm:$0xf]
    %v3362 = vld [vmem:[#allocation6 + $0xa10] sm:$0xff]
    %v3363 = vld [vmem:[#allocation6 + $0xa18] sm:$0xff]
    %v3364 = vld [vmem:[#allocation6 + $0xa20] sm:$0xff]
    %v3365 = vld [vmem:[#allocation6 + $0xa28] sm:$0xf]
    %v3366 = vld [vmem:[#allocation6 + $0xa2c] sm:$0xff]
    %v3367 = vld [vmem:[#allocation6 + $0xa34] sm:$0xff]
    %v3368 = vld [vmem:[#allocation6 + $0xa3c] sm:$0xff]
    %v3369 = vld [vmem:[#allocation6 + $0xa44] sm:$0xf]
    %v3370 = vld [vmem:[#allocation6 + $0xa48] sm:$0xff]
    %v3371 = vld [vmem:[#allocation6 + $0xa50] sm:$0xff]
    %v3372 = vld [vmem:[#allocation6 + $0xa58] sm:$0xff]
    %v3373 = vld [vmem:[#allocation6 + $0xa60] sm:$0xf]
    %v3374 = vld [vmem:[#allocation6 + $0xa64] sm:$0xff]
    %v3375 = vld [vmem:[#allocation6 + $0xa6c] sm:$0xff]
    %v3376 = vld [vmem:[#allocation6 + $0xa74] sm:$0xff]
    %v3377 = vld [vmem:[#allocation6 + $0xa7c] sm:$0xf]
    %v3378 = vld [vmem:[#allocation6 + $0xa80] sm:$0xff]
    %v3379 = vld [vmem:[#allocation6 + $0xa88] sm:$0xff]
    %v3380 = vld [vmem:[#allocation6 + $0xa90] sm:$0xff]
    %v3381 = vld [vmem:[#allocation6 + $0xa98] sm:$0xf]
    %v3382 = vld [vmem:[#allocation6 + $0xa9c] sm:$0xff]
    %v3383 = vld [vmem:[#allocation6 + $0xaa4] sm:$0xff]
    %v3384 = vld [vmem:[#allocation6 + $0xaac] sm:$0xff]
    %v3385 = vld [vmem:[#allocation6 + $0xab4] sm:$0xf]
    %v3386 = vld [vmem:[#allocation6 + $0xab8] sm:$0xff]
    %v3387 = vld [vmem:[#allocation6 + $0xac0] sm:$0xff]
    %v3388 = vld [vmem:[#allocation6 + $0xac8] sm:$0xff]
    %v3389 = vld [vmem:[#allocation6 + $0xad0] sm:$0xf]
    %v3390 = vld [vmem:[#allocation6 + $0xad4] sm:$0xff]
    %v3391 = vld [vmem:[#allocation6 + $0xadc] sm:$0xff]
    %v3392 = vld [vmem:[#allocation6 + $0xae4] sm:$0xff]
    %v3393 = vld [vmem:[#allocation6 + $0xaec] sm:$0xf]
    %v3394 = vld [vmem:[#allocation7] sm:$0x7f]
    %v3396 = vlaneseq
    %v3397 = vshrl.u32 %v3396, 7
    %v3398 = vsub.s32 0, %v3397
    %v3399 = vrot.slane %v3394, %v3398
    %v3400 = vlaneseq
    %v3401 = vshrl.u32 %v3400, 7
    %v3402 = vsub.s32 1, %v3401
    %v3403 = vrot.slane %v3394, %v3402
    %v3404 = vlaneseq
    %v3405 = vshrl.u32 %v3404, 7
    %v3406 = vsub.s32 2, %v3405
    %v3407 = vrot.slane %v3394, %v3406
    %v3408 = vlaneseq
    %v3409 = vshrl.u32 %v3408, 7
    %v3410 = vsub.s32 3, %v3409
    %v3411 = vrot.slane %v3394, %v3410
    %v3412 = vlaneseq
    %v3413 = vshrl.u32 %v3412, 7
    %v3414 = vsub.s32 4, %v3413
    %v3415 = vrot.slane %v3394, %v3414
    %v3416 = vlaneseq
    %v3417 = vshrl.u32 %v3416, 7
    %v3418 = vsub.s32 5, %v3417
    %v3419 = vrot.slane %v3394, %v3418
    %v3420 = vlaneseq
    %v3421 = vshrl.u32 %v3420, 7
    %v3422 = vsub.s32 6, %v3421
    %v3423 = vrot.slane %v3394, %v3422
    %v3831 = vunpack.c.l.b16 %v2994
    %v3832 = vunpack.c.h.b16 %v2994
    %v3833 = vunpack.c.l.b16 %v2995
    %v3834 = vunpack.c.h.b16 %v2995
    %v3835 = vunpack.c.l.b16 %v2996
    %v3836 = vunpack.c.h.b16 %v2996
    %v3837 = vunpack.c.l.b16 %v2997
    %v3838 = vunpack.c.l.b16 %v2998
    %v3839 = vunpack.c.h.b16 %v2998
    %v3840 = vunpack.c.l.b16 %v2999
    %v3841 = vunpack.c.h.b16 %v2999
    %v3842 = vunpack.c.l.b16 %v3000
    %v3843 = vunpack.c.h.b16 %v3000
    %v3844 = vunpack.c.l.b16 %v3001
    %v3845 = vunpack.c.l.b16 %v3002
    %v3846 = vunpack.c.h.b16 %v3002
    %v3847 = vunpack.c.l.b16 %v3003
    %v3848 = vunpack.c.h.b16 %v3003
    %v3849 = vunpack.c.l.b16 %v3004
    %v3850 = vunpack.c.h.b16 %v3004
    %v3851 = vunpack.c.l.b16 %v3005
    %v3852 = vunpack.c.l.b16 %v3006
    %v3853 = vunpack.c.h.b16 %v3006
    %v3854 = vunpack.c.l.b16 %v3007
    %v3855 = vunpack.c.h.b16 %v3007
    %v3856 = vunpack.c.l.b16 %v3008
    %v3857 = vunpack.c.h.b16 %v3008
    %v3858 = vunpack.c.l.b16 %v3009
    %v3859 = vunpack.c.l.b16 %v3010
    %v3860 = vunpack.c.h.b16 %v3010
    %v3861 = vunpack.c.l.b16 %v3011
    %v3862 = vunpack.c.h.b16 %v3011
    %v3863 = vunpack.c.l.b16 %v3012
    %v3864 = vunpack.c.h.b16 %v3012
    %v3865 = vunpack.c.l.b16 %v3013
    %v3866 = vunpack.c.l.b16 %v3014
    %v3867 = vunpack.c.h.b16 %v3014
    %v3868 = vunpack.c.l.b16 %v3015
    %v3869 = vunpack.c.h.b16 %v3015
    %v3870 = vunpack.c.l.b16 %v3016
    %v3871 = vunpack.c.h.b16 %v3016
    %v3872 = vunpack.c.l.b16 %v3017
    %v3873 = vunpack.c.l.b16 %v3018
    %v3874 = vunpack.c.h.b16 %v3018
    %v3875 = vunpack.c.l.b16 %v3019
    %v3876 = vunpack.c.h.b16 %v3019
    %v3877 = vunpack.c.l.b16 %v3020
    %v3878 = vunpack.c.h.b16 %v3020
    %v3879 = vunpack.c.l.b16 %v3021
    %v3880 = vunpack.c.l.b16 %v3022
    %v3881 = vunpack.c.h.b16 %v3022
    %v3882 = vunpack.c.l.b16 %v3023
    %v3883 = vunpack.c.h.b16 %v3023
    %v3884 = vunpack.c.l.b16 %v3024
    %v3885 = vunpack.c.h.b16 %v3024
    %v3886 = vunpack.c.l.b16 %v3025
    %v3887 = vunpack.c.l.b16 %v3026
    %v3888 = vunpack.c.h.b16 %v3026
    %v3889 = vunpack.c.l.b16 %v3027
    %v3890 = vunpack.c.h.b16 %v3027
    %v3891 = vunpack.c.l.b16 %v3028
    %v3892 = vunpack.c.h.b16 %v3028
    %v3893 = vunpack.c.l.b16 %v3029
    %v3894 = vunpack.c.l.b16 %v3030
    %v3895 = vunpack.c.h.b16 %v3030
    %v3896 = vunpack.c.l.b16 %v3031
    %v3897 = vunpack.c.h.b16 %v3031
    %v3898 = vunpack.c.l.b16 %v3032
    %v3899 = vunpack.c.h.b16 %v3032
    %v3900 = vunpack.c.l.b16 %v3033
    %v3901 = vunpack.c.l.b16 %v3034
    %v3902 = vunpack.c.h.b16 %v3034
    %v3903 = vunpack.c.l.b16 %v3035
    %v3904 = vunpack.c.h.b16 %v3035
    %v3905 = vunpack.c.l.b16 %v3036
    %v3906 = vunpack.c.h.b16 %v3036
    %v3907 = vunpack.c.l.b16 %v3037
    %v3908 = vunpack.c.l.b16 %v3038
    %v3909 = vunpack.c.h.b16 %v3038
    %v3910 = vunpack.c.l.b16 %v3039
    %v3911 = vunpack.c.h.b16 %v3039
    %v3912 = vunpack.c.l.b16 %v3040
    %v3913 = vunpack.c.h.b16 %v3040
    %v3914 = vunpack.c.l.b16 %v3041
    %v3915 = vunpack.c.l.b16 %v3042
    %v3916 = vunpack.c.h.b16 %v3042
    %v3917 = vunpack.c.l.b16 %v3043
    %v3918 = vunpack.c.h.b16 %v3043
    %v3919 = vunpack.c.l.b16 %v3044
    %v3920 = vunpack.c.h.b16 %v3044
    %v3921 = vunpack.c.l.b16 %v3045
    %v3922 = vunpack.c.l.b16 %v3046
    %v3923 = vunpack.c.h.b16 %v3046
    %v3924 = vunpack.c.l.b16 %v3047
    %v3925 = vunpack.c.h.b16 %v3047
    %v3926 = vunpack.c.l.b16 %v3048
    %v3927 = vunpack.c.h.b16 %v3048
    %v3928 = vunpack.c.l.b16 %v3049
    %v3929 = vunpack.c.l.b16 %v3050
    %v3930 = vunpack.c.h.b16 %v3050
    %v3931 = vunpack.c.l.b16 %v3051
    %v3932 = vunpack.c.h.b16 %v3051
    %v3933 = vunpack.c.l.b16 %v3052
    %v3934 = vunpack.c.h.b16 %v3052
    %v3935 = vunpack.c.l.b16 %v3053
    %v3936 = vunpack.c.l.b16 %v3054
    %v3937 = vunpack.c.h.b16 %v3054
    %v3938 = vunpack.c.l.b16 %v3055
    %v3939 = vunpack.c.h.b16 %v3055
    %v3940 = vunpack.c.l.b16 %v3056
    %v3941 = vunpack.c.h.b16 %v3056
    %v3942 = vunpack.c.l.b16 %v3057
    %v3943 = vunpack.c.l.b16 %v3058
    %v3944 = vunpack.c.h.b16 %v3058
    %v3945 = vunpack.c.l.b16 %v3059
    %v3946 = vunpack.c.h.b16 %v3059
    %v3947 = vunpack.c.l.b16 %v3060
    %v3948 = vunpack.c.h.b16 %v3060
    %v3949 = vunpack.c.l.b16 %v3061
    %v3950 = vunpack.c.l.b16 %v3062
    %v3951 = vunpack.c.h.b16 %v3062
    %v3952 = vunpack.c.l.b16 %v3063
    %v3953 = vunpack.c.h.b16 %v3063
    %v3954 = vunpack.c.l.b16 %v3064
    %v3955 = vunpack.c.h.b16 %v3064
    %v3956 = vunpack.c.l.b16 %v3065
    %v3957 = vunpack.c.l.b16 %v3066
    %v3958 = vunpack.c.h.b16 %v3066
    %v3959 = vunpack.c.l.b16 %v3067
    %v3960 = vunpack.c.h.b16 %v3067
    %v3961 = vunpack.c.l.b16 %v3068
    %v3962 = vunpack.c.h.b16 %v3068
    %v3963 = vunpack.c.l.b16 %v3069
    %v3964 = vunpack.c.l.b16 %v3070
    %v3965 = vunpack.c.h.b16 %v3070
    %v3966 = vunpack.c.l.b16 %v3071
    %v3967 = vunpack.c.h.b16 %v3071
    %v3968 = vunpack.c.l.b16 %v3072
    %v3969 = vunpack.c.h.b16 %v3072
    %v3970 = vunpack.c.l.b16 %v3073
    %v3971 = vunpack.c.l.b16 %v3074
    %v3972 = vunpack.c.h.b16 %v3074
    %v3973 = vunpack.c.l.b16 %v3075
    %v3974 = vunpack.c.h.b16 %v3075
    %v3975 = vunpack.c.l.b16 %v3076
    %v3976 = vunpack.c.h.b16 %v3076
    %v3977 = vunpack.c.l.b16 %v3077
    %v3978 = vunpack.c.l.b16 %v3078
    %v3979 = vunpack.c.h.b16 %v3078
    %v3980 = vunpack.c.l.b16 %v3079
    %v3981 = vunpack.c.h.b16 %v3079
    %v3982 = vunpack.c.l.b16 %v3080
    %v3983 = vunpack.c.h.b16 %v3080
    %v3984 = vunpack.c.l.b16 %v3081
    %v3985 = vunpack.c.l.b16 %v3082
    %v3986 = vunpack.c.h.b16 %v3082
    %v3987 = vunpack.c.l.b16 %v3083
    %v3988 = vunpack.c.h.b16 %v3083
    %v3989 = vunpack.c.l.b16 %v3084
    %v3990 = vunpack.c.h.b16 %v3084
    %v3991 = vunpack.c.l.b16 %v3085
    %v3992 = vunpack.c.l.b16 %v3086
    %v3993 = vunpack.c.h.b16 %v3086
    %v3994 = vunpack.c.l.b16 %v3087
    %v3995 = vunpack.c.h.b16 %v3087
    %v3996 = vunpack.c.l.b16 %v3088
    %v3997 = vunpack.c.h.b16 %v3088
    %v3998 = vunpack.c.l.b16 %v3089
    %v3999 = vunpack.c.l.b16 %v3090
    %v4000 = vunpack.c.h.b16 %v3090
    %v4001 = vunpack.c.l.b16 %v3091
    %v4002 = vunpack.c.h.b16 %v3091
    %v4003 = vunpack.c.l.b16 %v3092
    %v4004 = vunpack.c.h.b16 %v3092
    %v4005 = vunpack.c.l.b16 %v3093
    %v4006 = vunpack.c.l.b16 %v3094
    %v4007 = vunpack.c.h.b16 %v3094
    %v4008 = vunpack.c.l.b16 %v3095
    %v4009 = vunpack.c.h.b16 %v3095
    %v4010 = vunpack.c.l.b16 %v3096
    %v4011 = vunpack.c.h.b16 %v3096
    %v4012 = vunpack.c.l.b16 %v3097
    %v4013 = vunpack.c.l.b16 %v3098
    %v4014 = vunpack.c.h.b16 %v3098
    %v4015 = vunpack.c.l.b16 %v3099
    %v4016 = vunpack.c.h.b16 %v3099
    %v4017 = vunpack.c.l.b16 %v3100
    %v4018 = vunpack.c.h.b16 %v3100
    %v4019 = vunpack.c.l.b16 %v3101
    %v4020 = vunpack.c.l.b16 %v3102
    %v4021 = vunpack.c.h.b16 %v3102
    %v4022 = vunpack.c.l.b16 %v3103
    %v4023 = vunpack.c.h.b16 %v3103
    %v4024 = vunpack.c.l.b16 %v3104
    %v4025 = vunpack.c.h.b16 %v3104
    %v4026 = vunpack.c.l.b16 %v3105
    %v4027 = vunpack.c.l.b16 %v3106
    %v4028 = vunpack.c.h.b16 %v3106
    %v4029 = vunpack.c.l.b16 %v3107
    %v4030 = vunpack.c.h.b16 %v3107
    %v4031 = vunpack.c.l.b16 %v3108
    %v4032 = vunpack.c.h.b16 %v3108
    %v4033 = vunpack.c.l.b16 %v3109
    %v4034 = vunpack.c.l.b16 %v3110
    %v4035 = vunpack.c.h.b16 %v3110
    %v4036 = vunpack.c.l.b16 %v3111
    %v4037 = vunpack.c.h.b16 %v3111
    %v4038 = vunpack.c.l.b16 %v3112
    %v4039 = vunpack.c.h.b16 %v3112
    %v4040 = vunpack.c.l.b16 %v3113
    %v4041 = vunpack.c.l.b16 %v3114
    %v4042 = vunpack.c.h.b16 %v3114
    %v4043 = vunpack.c.l.b16 %v3115
    %v4044 = vunpack.c.h.b16 %v3115
    %v4045 = vunpack.c.l.b16 %v3116
    %v4046 = vunpack.c.h.b16 %v3116
    %v4047 = vunpack.c.l.b16 %v3117
    %v4048 = vunpack.c.l.b16 %v3118
    %v4049 = vunpack.c.h.b16 %v3118
    %v4050 = vunpack.c.l.b16 %v3119
    %v4051 = vunpack.c.h.b16 %v3119
    %v4052 = vunpack.c.l.b16 %v3120
    %v4053 = vunpack.c.h.b16 %v3120
    %v4054 = vunpack.c.l.b16 %v3121
    %v4055 = vunpack.c.l.b16 %v3122
    %v4056 = vunpack.c.h.b16 %v3122
    %v4057 = vunpack.c.l.b16 %v3123
    %v4058 = vunpack.c.h.b16 %v3123
    %v4059 = vunpack.c.l.b16 %v3124
    %v4060 = vunpack.c.h.b16 %v3124
    %v4061 = vunpack.c.l.b16 %v3125
    %v4062 = vunpack.c.l.b16 %v3126
    %v4063 = vunpack.c.h.b16 %v3126
    %v4064 = vunpack.c.l.b16 %v3127
    %v4065 = vunpack.c.h.b16 %v3127
    %v4066 = vunpack.c.l.b16 %v3128
    %v4067 = vunpack.c.h.b16 %v3128
    %v4068 = vunpack.c.l.b16 %v3129
    %v4069 = vunpack.c.l.b16 %v3130
    %v4070 = vunpack.c.h.b16 %v3130
    %v4071 = vunpack.c.l.b16 %v3131
    %v4072 = vunpack.c.h.b16 %v3131
    %v4073 = vunpack.c.l.b16 %v3132
    %v4074 = vunpack.c.h.b16 %v3132
    %v4075 = vunpack.c.l.b16 %v3133
    %v4076 = vunpack.c.l.b16 %v3134
    %v4077 = vunpack.c.h.b16 %v3134
    %v4078 = vunpack.c.l.b16 %v3135
    %v4079 = vunpack.c.h.b16 %v3135
    %v4080 = vunpack.c.l.b16 %v3136
    %v4081 = vunpack.c.h.b16 %v3136
    %v4082 = vunpack.c.l.b16 %v3137
    %v4083 = vunpack.c.l.b16 %v3138
    %v4084 = vunpack.c.h.b16 %v3138
    %v4085 = vunpack.c.l.b16 %v3139
    %v4086 = vunpack.c.h.b16 %v3139
    %v4087 = vunpack.c.l.b16 %v3140
    %v4088 = vunpack.c.h.b16 %v3140
    %v4089 = vunpack.c.l.b16 %v3141
    %v4090 = vunpack.c.l.b16 %v3142
    %v4091 = vunpack.c.h.b16 %v3142
    %v4092 = vunpack.c.l.b16 %v3143
    %v4093 = vunpack.c.h.b16 %v3143
    %v4094 = vunpack.c.l.b16 %v3144
    %v4095 = vunpack.c.h.b16 %v3144
    %v4096 = vunpack.c.l.b16 %v3145
    %v4097 = vunpack.c.l.b16 %v3146
    %v4098 = vunpack.c.h.b16 %v3146
    %v4099 = vunpack.c.l.b16 %v3147
    %v4100 = vunpack.c.h.b16 %v3147
    %v4101 = vunpack.c.l.b16 %v3148
    %v4102 = vunpack.c.h.b16 %v3148
    %v4103 = vunpack.c.l.b16 %v3149
    %v4104 = vunpack.c.l.b16 %v3150
    %v4105 = vunpack.c.h.b16 %v3150
    %v4106 = vunpack.c.l.b16 %v3151
    %v4107 = vunpack.c.h.b16 %v3151
    %v4108 = vunpack.c.l.b16 %v3152
    %v4109 = vunpack.c.h.b16 %v3152
    %v4110 = vunpack.c.l.b16 %v3153
    %v4111 = vunpack.c.l.b16 %v3154
    %v4112 = vunpack.c.h.b16 %v3154
    %v4113 = vunpack.c.l.b16 %v3155
    %v4114 = vunpack.c.h.b16 %v3155
    %v4115 = vunpack.c.l.b16 %v3156
    %v4116 = vunpack.c.h.b16 %v3156
    %v4117 = vunpack.c.l.b16 %v3157
    %v4118 = vunpack.c.l.b16 %v3158
    %v4119 = vunpack.c.h.b16 %v3158
    %v4120 = vunpack.c.l.b16 %v3159
    %v4121 = vunpack.c.h.b16 %v3159
    %v4122 = vunpack.c.l.b16 %v3160
    %v4123 = vunpack.c.h.b16 %v3160
    %v4124 = vunpack.c.l.b16 %v3161
    %v4125 = vunpack.c.l.b16 %v3162
    %v4126 = vunpack.c.h.b16 %v3162
    %v4127 = vunpack.c.l.b16 %v3163
    %v4128 = vunpack.c.h.b16 %v3163
    %v4129 = vunpack.c.l.b16 %v3164
    %v4130 = vunpack.c.h.b16 %v3164
    %v4131 = vunpack.c.l.b16 %v3165
    %v4132 = vunpack.c.l.b16 %v3166
    %v4133 = vunpack.c.h.b16 %v3166
    %v4134 = vunpack.c.l.b16 %v3167
    %v4135 = vunpack.c.h.b16 %v3167
    %v4136 = vunpack.c.l.b16 %v3168
    %v4137 = vunpack.c.h.b16 %v3168
    %v4138 = vunpack.c.l.b16 %v3169
    %v4139 = vunpack.c.l.b16 %v3170
    %v4140 = vunpack.c.h.b16 %v3170
    %v4141 = vunpack.c.l.b16 %v3171
    %v4142 = vunpack.c.h.b16 %v3171
    %v4143 = vunpack.c.l.b16 %v3172
    %v4144 = vunpack.c.h.b16 %v3172
    %v4145 = vunpack.c.l.b16 %v3173
    %v4146 = vunpack.c.l.b16 %v3174
    %v4147 = vunpack.c.h.b16 %v3174
    %v4148 = vunpack.c.l.b16 %v3175
    %v4149 = vunpack.c.h.b16 %v3175
    %v4150 = vunpack.c.l.b16 %v3176
    %v4151 = vunpack.c.h.b16 %v3176
    %v4152 = vunpack.c.l.b16 %v3177
    %v4153 = vunpack.c.l.b16 %v3178
    %v4154 = vunpack.c.h.b16 %v3178
    %v4155 = vunpack.c.l.b16 %v3179
    %v4156 = vunpack.c.h.b16 %v3179
    %v4157 = vunpack.c.l.b16 %v3180
    %v4158 = vunpack.c.h.b16 %v3180
    %v4159 = vunpack.c.l.b16 %v3181
    %v4160 = vunpack.c.l.b16 %v3182
    %v4161 = vunpack.c.h.b16 %v3182
    %v4162 = vunpack.c.l.b16 %v3183
    %v4163 = vunpack.c.h.b16 %v3183
    %v4164 = vunpack.c.l.b16 %v3184
    %v4165 = vunpack.c.h.b16 %v3184
    %v4166 = vunpack.c.l.b16 %v3185
    %v4167 = vunpack.c.l.b16 %v3186
    %v4168 = vunpack.c.h.b16 %v3186
    %v4169 = vunpack.c.l.b16 %v3187
    %v4170 = vunpack.c.h.b16 %v3187
    %v4171 = vunpack.c.l.b16 %v3188
    %v4172 = vunpack.c.h.b16 %v3188
    %v4173 = vunpack.c.l.b16 %v3189
    %v4174 = vunpack.c.l.b16 %v3190
    %v4175 = vunpack.c.h.b16 %v3190
    %v4176 = vunpack.c.l.b16 %v3191
    %v4177 = vunpack.c.h.b16 %v3191
    %v4178 = vunpack.c.l.b16 %v3192
    %v4179 = vunpack.c.h.b16 %v3192
    %v4180 = vunpack.c.l.b16 %v3193
    %v4181 = vunpack.c.l.b16 %v3194
    %v4182 = vunpack.c.h.b16 %v3194
    %v4183 = vunpack.c.l.b16 %v3195
    %v4184 = vunpack.c.h.b16 %v3195
    %v4185 = vunpack.c.l.b16 %v3196
    %v4186 = vunpack.c.h.b16 %v3196
    %v4187 = vunpack.c.l.b16 %v3197
    %v4188 = vunpack.c.l.b16 %v3198
    %v4189 = vunpack.c.h.b16 %v3198
    %v4190 = vunpack.c.l.b16 %v3199
    %v4191 = vunpack.c.h.b16 %v3199
    %v4192 = vunpack.c.l.b16 %v3200
    %v4193 = vunpack.c.h.b16 %v3200
    %v4194 = vunpack.c.l.b16 %v3201
    %v4195 = vunpack.c.l.b16 %v3202
    %v4196 = vunpack.c.h.b16 %v3202
    %v4197 = vunpack.c.l.b16 %v3203
    %v4198 = vunpack.c.h.b16 %v3203
    %v4199 = vunpack.c.l.b16 %v3204
    %v4200 = vunpack.c.h.b16 %v3204
    %v4201 = vunpack.c.l.b16 %v3205
    %v4202 = vunpack.c.l.b16 %v3206
    %v4203 = vunpack.c.h.b16 %v3206
    %v4204 = vunpack.c.l.b16 %v3207
    %v4205 = vunpack.c.h.b16 %v3207
    %v4206 = vunpack.c.l.b16 %v3208
    %v4207 = vunpack.c.h.b16 %v3208
    %v4208 = vunpack.c.l.b16 %v3209
    %v4209 = vunpack.c.l.b16 %v3210
    %v4210 = vunpack.c.h.b16 %v3210
    %v4211 = vunpack.c.l.b16 %v3211
    %v4212 = vunpack.c.h.b16 %v3211
    %v4213 = vunpack.c.l.b16 %v3212
    %v4214 = vunpack.c.h.b16 %v3212
    %v4215 = vunpack.c.l.b16 %v3213
    %v4216 = vunpack.c.l.b16 %v3214
    %v4217 = vunpack.c.h.b16 %v3214
    %v4218 = vunpack.c.l.b16 %v3215
    %v4219 = vunpack.c.h.b16 %v3215
    %v4220 = vunpack.c.l.b16 %v3216
    %v4221 = vunpack.c.h.b16 %v3216
    %v4222 = vunpack.c.l.b16 %v3217
    %v4223 = vunpack.c.l.b16 %v3218
    %v4224 = vunpack.c.h.b16 %v3218
    %v4225 = vunpack.c.l.b16 %v3219
    %v4226 = vunpack.c.h.b16 %v3219
    %v4227 = vunpack.c.l.b16 %v3220
    %v4228 = vunpack.c.h.b16 %v3220
    %v4229 = vunpack.c.l.b16 %v3221
    %v4230 = vunpack.c.l.b16 %v3222
    %v4231 = vunpack.c.h.b16 %v3222
    %v4232 = vunpack.c.l.b16 %v3223
    %v4233 = vunpack.c.h.b16 %v3223
    %v4234 = vunpack.c.l.b16 %v3224
    %v4235 = vunpack.c.h.b16 %v3224
    %v4236 = vunpack.c.l.b16 %v3225
    %v4237 = vunpack.c.l.b16 %v3226
    %v4238 = vunpack.c.h.b16 %v3226
    %v4239 = vunpack.c.l.b16 %v3227
    %v4240 = vunpack.c.h.b16 %v3227
    %v4241 = vunpack.c.l.b16 %v3228
    %v4242 = vunpack.c.h.b16 %v3228
    %v4243 = vunpack.c.l.b16 %v3229
    %v4244 = vunpack.c.l.b16 %v3230
    %v4245 = vunpack.c.h.b16 %v3230
    %v4246 = vunpack.c.l.b16 %v3231
    %v4247 = vunpack.c.h.b16 %v3231
    %v4248 = vunpack.c.l.b16 %v3232
    %v4249 = vunpack.c.h.b16 %v3232
    %v4250 = vunpack.c.l.b16 %v3233
    %v4251 = vunpack.c.l.b16 %v3234
    %v4252 = vunpack.c.h.b16 %v3234
    %v4253 = vunpack.c.l.b16 %v3235
    %v4254 = vunpack.c.h.b16 %v3235
    %v4255 = vunpack.c.l.b16 %v3236
    %v4256 = vunpack.c.h.b16 %v3236
    %v4257 = vunpack.c.l.b16 %v3237
    %v4258 = vunpack.c.l.b16 %v3238
    %v4259 = vunpack.c.h.b16 %v3238
    %v4260 = vunpack.c.l.b16 %v3239
    %v4261 = vunpack.c.h.b16 %v3239
    %v4262 = vunpack.c.l.b16 %v3240
    %v4263 = vunpack.c.h.b16 %v3240
    %v4264 = vunpack.c.l.b16 %v3241
    %v4265 = vunpack.c.l.b16 %v3242
    %v4266 = vunpack.c.h.b16 %v3242
    %v4267 = vunpack.c.l.b16 %v3243
    %v4268 = vunpack.c.h.b16 %v3243
    %v4269 = vunpack.c.l.b16 %v3244
    %v4270 = vunpack.c.h.b16 %v3244
    %v4271 = vunpack.c.l.b16 %v3245
    %v4272 = vunpack.c.l.b16 %v3246
    %v4273 = vunpack.c.h.b16 %v3246
    %v4274 = vunpack.c.l.b16 %v3247
    %v4275 = vunpack.c.h.b16 %v3247
    %v4276 = vunpack.c.l.b16 %v3248
    %v4277 = vunpack.c.h.b16 %v3248
    %v4278 = vunpack.c.l.b16 %v3249
    %v4279 = vunpack.c.l.b16 %v3250
    %v4280 = vunpack.c.h.b16 %v3250
    %v4281 = vunpack.c.l.b16 %v3251
    %v4282 = vunpack.c.h.b16 %v3251
    %v4283 = vunpack.c.l.b16 %v3252
    %v4284 = vunpack.c.h.b16 %v3252
    %v4285 = vunpack.c.l.b16 %v3253
    %v4286 = vunpack.c.l.b16 %v3254
    %v4287 = vunpack.c.h.b16 %v3254
    %v4288 = vunpack.c.l.b16 %v3255
    %v4289 = vunpack.c.h.b16 %v3255
    %v4290 = vunpack.c.l.b16 %v3256
    %v4291 = vunpack.c.h.b16 %v3256
    %v4292 = vunpack.c.l.b16 %v3257
    %v4293 = vunpack.c.l.b16 %v3258
    %v4294 = vunpack.c.h.b16 %v3258
    %v4295 = vunpack.c.l.b16 %v3259
    %v4296 = vunpack.c.h.b16 %v3259
    %v4297 = vunpack.c.l.b16 %v3260
    %v4298 = vunpack.c.h.b16 %v3260
    %v4299 = vunpack.c.l.b16 %v3261
    %v4300 = vunpack.c.l.b16 %v3262
    %v4301 = vunpack.c.h.b16 %v3262
    %v4302 = vunpack.c.l.b16 %v3263
    %v4303 = vunpack.c.h.b16 %v3263
    %v4304 = vunpack.c.l.b16 %v3264
    %v4305 = vunpack.c.h.b16 %v3264
    %v4306 = vunpack.c.l.b16 %v3265
    %v4307 = vunpack.c.l.b16 %v3266
    %v4308 = vunpack.c.h.b16 %v3266
    %v4309 = vunpack.c.l.b16 %v3267
    %v4310 = vunpack.c.h.b16 %v3267
    %v4311 = vunpack.c.l.b16 %v3268
    %v4312 = vunpack.c.h.b16 %v3268
    %v4313 = vunpack.c.l.b16 %v3269
    %v4314 = vunpack.c.l.b16 %v3270
    %v4315 = vunpack.c.h.b16 %v3270
    %v4316 = vunpack.c.l.b16 %v3271
    %v4317 = vunpack.c.h.b16 %v3271
    %v4318 = vunpack.c.l.b16 %v3272
    %v4319 = vunpack.c.h.b16 %v3272
    %v4320 = vunpack.c.l.b16 %v3273
    %v4321 = vunpack.c.l.b16 %v3274
    %v4322 = vunpack.c.h.b16 %v3274
    %v4323 = vunpack.c.l.b16 %v3275
    %v4324 = vunpack.c.h.b16 %v3275
    %v4325 = vunpack.c.l.b16 %v3276
    %v4326 = vunpack.c.h.b16 %v3276
    %v4327 = vunpack.c.l.b16 %v3277
    %v4328 = vunpack.c.l.b16 %v3278
    %v4329 = vunpack.c.h.b16 %v3278
    %v4330 = vunpack.c.l.b16 %v3279
    %v4331 = vunpack.c.h.b16 %v3279
    %v4332 = vunpack.c.l.b16 %v3280
    %v4333 = vunpack.c.h.b16 %v3280
    %v4334 = vunpack.c.l.b16 %v3281
    %v4335 = vunpack.c.l.b16 %v3282
    %v4336 = vunpack.c.h.b16 %v3282
    %v4337 = vunpack.c.l.b16 %v3283
    %v4338 = vunpack.c.h.b16 %v3283
    %v4339 = vunpack.c.l.b16 %v3284
    %v4340 = vunpack.c.h.b16 %v3284
    %v4341 = vunpack.c.l.b16 %v3285
    %v4342 = vunpack.c.l.b16 %v3286
    %v4343 = vunpack.c.h.b16 %v3286
    %v4344 = vunpack.c.l.b16 %v3287
    %v4345 = vunpack.c.h.b16 %v3287
    %v4346 = vunpack.c.l.b16 %v3288
    %v4347 = vunpack.c.h.b16 %v3288
    %v4348 = vunpack.c.l.b16 %v3289
    %v4349 = vunpack.c.l.b16 %v3290
    %v4350 = vunpack.c.h.b16 %v3290
    %v4351 = vunpack.c.l.b16 %v3291
    %v4352 = vunpack.c.h.b16 %v3291
    %v4353 = vunpack.c.l.b16 %v3292
    %v4354 = vunpack.c.h.b16 %v3292
    %v4355 = vunpack.c.l.b16 %v3293
    %v4356 = vunpack.c.l.b16 %v3294
    %v4357 = vunpack.c.h.b16 %v3294
    %v4358 = vunpack.c.l.b16 %v3295
    %v4359 = vunpack.c.h.b16 %v3295
    %v4360 = vunpack.c.l.b16 %v3296
    %v4361 = vunpack.c.h.b16 %v3296
    %v4362 = vunpack.c.l.b16 %v3297
    %v4363 = vunpack.c.l.b16 %v3298
    %v4364 = vunpack.c.h.b16 %v3298
    %v4365 = vunpack.c.l.b16 %v3299
    %v4366 = vunpack.c.h.b16 %v3299
    %v4367 = vunpack.c.l.b16 %v3300
    %v4368 = vunpack.c.h.b16 %v3300
    %v4369 = vunpack.c.l.b16 %v3301
    %v4370 = vunpack.c.l.b16 %v3302
    %v4371 = vunpack.c.h.b16 %v3302
    %v4372 = vunpack.c.l.b16 %v3303
    %v4373 = vunpack.c.h.b16 %v3303
    %v4374 = vunpack.c.l.b16 %v3304
    %v4375 = vunpack.c.h.b16 %v3304
    %v4376 = vunpack.c.l.b16 %v3305
    %v4377 = vunpack.c.l.b16 %v3306
    %v4378 = vunpack.c.h.b16 %v3306
    %v4379 = vunpack.c.l.b16 %v3307
    %v4380 = vunpack.c.h.b16 %v3307
    %v4381 = vunpack.c.l.b16 %v3308
    %v4382 = vunpack.c.h.b16 %v3308
    %v4383 = vunpack.c.l.b16 %v3309
    %v4384 = vunpack.c.l.b16 %v3310
    %v4385 = vunpack.c.h.b16 %v3310
    %v4386 = vunpack.c.l.b16 %v3311
    %v4387 = vunpack.c.h.b16 %v3311
    %v4388 = vunpack.c.l.b16 %v3312
    %v4389 = vunpack.c.h.b16 %v3312
    %v4390 = vunpack.c.l.b16 %v3313
    %v4391 = vunpack.c.l.b16 %v3314
    %v4392 = vunpack.c.h.b16 %v3314
    %v4393 = vunpack.c.l.b16 %v3315
    %v4394 = vunpack.c.h.b16 %v3315
    %v4395 = vunpack.c.l.b16 %v3316
    %v4396 = vunpack.c.h.b16 %v3316
    %v4397 = vunpack.c.l.b16 %v3317
    %v4398 = vunpack.c.l.b16 %v3318
    %v4399 = vunpack.c.h.b16 %v3318
    %v4400 = vunpack.c.l.b16 %v3319
    %v4401 = vunpack.c.h.b16 %v3319
    %v4402 = vunpack.c.l.b16 %v3320
    %v4403 = vunpack.c.h.b16 %v3320
    %v4404 = vunpack.c.l.b16 %v3321
    %v4405 = vunpack.c.l.b16 %v3322
    %v4406 = vunpack.c.h.b16 %v3322
    %v4407 = vunpack.c.l.b16 %v3323
    %v4408 = vunpack.c.h.b16 %v3323
    %v4409 = vunpack.c.l.b16 %v3324
    %v4410 = vunpack.c.h.b16 %v3324
    %v4411 = vunpack.c.l.b16 %v3325
    %v4412 = vunpack.c.l.b16 %v3326
    %v4413 = vunpack.c.h.b16 %v3326
    %v4414 = vunpack.c.l.b16 %v3327
    %v4415 = vunpack.c.h.b16 %v3327
    %v4416 = vunpack.c.l.b16 %v3328
    %v4417 = vunpack.c.h.b16 %v3328
    %v4418 = vunpack.c.l.b16 %v3329
    %v4419 = vunpack.c.l.b16 %v3330
    %v4420 = vunpack.c.h.b16 %v3330
    %v4421 = vunpack.c.l.b16 %v3331
    %v4422 = vunpack.c.h.b16 %v3331
    %v4423 = vunpack.c.l.b16 %v3332
    %v4424 = vunpack.c.h.b16 %v3332
    %v4425 = vunpack.c.l.b16 %v3333
    %v4426 = vunpack.c.l.b16 %v3334
    %v4427 = vunpack.c.h.b16 %v3334
    %v4428 = vunpack.c.l.b16 %v3335
    %v4429 = vunpack.c.h.b16 %v3335
    %v4430 = vunpack.c.l.b16 %v3336
    %v4431 = vunpack.c.h.b16 %v3336
    %v4432 = vunpack.c.l.b16 %v3337
    %v4433 = vunpack.c.l.b16 %v3338
    %v4434 = vunpack.c.h.b16 %v3338
    %v4435 = vunpack.c.l.b16 %v3339
    %v4436 = vunpack.c.h.b16 %v3339
    %v4437 = vunpack.c.l.b16 %v3340
    %v4438 = vunpack.c.h.b16 %v3340
    %v4439 = vunpack.c.l.b16 %v3341
    %v4440 = vunpack.c.l.b16 %v3342
    %v4441 = vunpack.c.h.b16 %v3342
    %v4442 = vunpack.c.l.b16 %v3343
    %v4443 = vunpack.c.h.b16 %v3343
    %v4444 = vunpack.c.l.b16 %v3344
    %v4445 = vunpack.c.h.b16 %v3344
    %v4446 = vunpack.c.l.b16 %v3345
    %v4447 = vunpack.c.l.b16 %v3346
    %v4448 = vunpack.c.h.b16 %v3346
    %v4449 = vunpack.c.l.b16 %v3347
    %v4450 = vunpack.c.h.b16 %v3347
    %v4451 = vunpack.c.l.b16 %v3348
    %v4452 = vunpack.c.h.b16 %v3348
    %v4453 = vunpack.c.l.b16 %v3349
    %v4454 = vunpack.c.l.b16 %v3350
    %v4455 = vunpack.c.h.b16 %v3350
    %v4456 = vunpack.c.l.b16 %v3351
    %v4457 = vunpack.c.h.b16 %v3351
    %v4458 = vunpack.c.l.b16 %v3352
    %v4459 = vunpack.c.h.b16 %v3352
    %v4460 = vunpack.c.l.b16 %v3353
    %v4461 = vunpack.c.l.b16 %v3354
    %v4462 = vunpack.c.h.b16 %v3354
    %v4463 = vunpack.c.l.b16 %v3355
    %v4464 = vunpack.c.h.b16 %v3355
    %v4465 = vunpack.c.l.b16 %v3356
    %v4466 = vunpack.c.h.b16 %v3356
    %v4467 = vunpack.c.l.b16 %v3357
    %v4468 = vunpack.c.l.b16 %v3358
    %v4469 = vunpack.c.h.b16 %v3358
    %v4470 = vunpack.c.l.b16 %v3359
    %v4471 = vunpack.c.h.b16 %v3359
    %v4472 = vunpack.c.l.b16 %v3360
    %v4473 = vunpack.c.h.b16 %v3360
    %v4474 = vunpack.c.l.b16 %v3361
    %v4475 = vunpack.c.l.b16 %v3362
    %v4476 = vunpack.c.h.b16 %v3362
    %v4477 = vunpack.c.l.b16 %v3363
    %v4478 = vunpack.c.h.b16 %v3363
    %v4479 = vunpack.c.l.b16 %v3364
    %v4480 = vunpack.c.h.b16 %v3364
    %v4481 = vunpack.c.l.b16 %v3365
    %v4482 = vunpack.c.l.b16 %v3366
    %v4483 = vunpack.c.h.b16 %v3366
    %v4484 = vunpack.c.l.b16 %v3367
    %v4485 = vunpack.c.h.b16 %v3367
    %v4486 = vunpack.c.l.b16 %v3368
    %v4487 = vunpack.c.h.b16 %v3368
    %v4488 = vunpack.c.l.b16 %v3369
    %v4489 = vunpack.c.l.b16 %v3370
    %v4490 = vunpack.c.h.b16 %v3370
    %v4491 = vunpack.c.l.b16 %v3371
    %v4492 = vunpack.c.h.b16 %v3371
    %v4493 = vunpack.c.l.b16 %v3372
    %v4494 = vunpack.c.h.b16 %v3372
    %v4495 = vunpack.c.l.b16 %v3373
    %v4496 = vunpack.c.l.b16 %v3374
    %v4497 = vunpack.c.h.b16 %v3374
    %v4498 = vunpack.c.l.b16 %v3375
    %v4499 = vunpack.c.h.b16 %v3375
    %v4500 = vunpack.c.l.b16 %v3376
    %v4501 = vunpack.c.h.b16 %v3376
    %v4502 = vunpack.c.l.b16 %v3377
    %v4503 = vunpack.c.l.b16 %v3378
    %v4504 = vunpack.c.h.b16 %v3378
    %v4505 = vunpack.c.l.b16 %v3379
    %v4506 = vunpack.c.h.b16 %v3379
    %v4507 = vunpack.c.l.b16 %v3380
    %v4508 = vunpack.c.h.b16 %v3380
    %v4509 = vunpack.c.l.b16 %v3381
    %v4510 = vunpack.c.l.b16 %v3382
    %v4511 = vunpack.c.h.b16 %v3382
    %v4512 = vunpack.c.l.b16 %v3383
    %v4513 = vunpack.c.h.b16 %v3383
    %v4514 = vunpack.c.l.b16 %v3384
    %v4515 = vunpack.c.h.b16 %v3384
    %v4516 = vunpack.c.l.b16 %v3385
    %v4517 = vunpack.c.l.b16 %v3386
    %v4518 = vunpack.c.h.b16 %v3386
    %v4519 = vunpack.c.l.b16 %v3387
    %v4520 = vunpack.c.h.b16 %v3387
    %v4521 = vunpack.c.l.b16 %v3388
    %v4522 = vunpack.c.h.b16 %v3388
    %v4523 = vunpack.c.l.b16 %v3389
    %v4524 = vunpack.c.l.b16 %v3390
    %v4525 = vunpack.c.h.b16 %v3390
    %v4526 = vunpack.c.l.b16 %v3391
    %v4527 = vunpack.c.h.b16 %v3391
    %v4528 = vunpack.c.l.b16 %v3392
    %v4529 = vunpack.c.h.b16 %v3392
    %v4530 = vunpack.c.l.b16 %v3393
    %v4531 = vpack.c.b16 %v3838, %v3831
    %v4532 = vpack.c.b16 %v3839, %v3832
    %v4533 = vpack.c.b16 %v3840, %v3833
    %v4534 = vpack.c.b16 %v3841, %v3834
    %v4535 = vpack.c.b16 %v3842, %v3835
    %v4536 = vpack.c.b16 %v3843, %v3836
    %v4537 = vpack.c.b16 %v3844, %v3837
    %v4538 = vpack.c.b16 %v3852, %v3845
    %v4539 = vpack.c.b16 %v3853, %v3846
    %v4540 = vpack.c.b16 %v3854, %v3847
    %v4541 = vpack.c.b16 %v3855, %v3848
    %v4542 = vpack.c.b16 %v3856, %v3849
    %v4543 = vpack.c.b16 %v3857, %v3850
    %v4544 = vpack.c.b16 %v3858, %v3851
    %v4545 = vpack.c.b16 %v3866, %v3859
    %v4546 = vpack.c.b16 %v3867, %v3860
    %v4547 = vpack.c.b16 %v3868, %v3861
    %v4548 = vpack.c.b16 %v3869, %v3862
    %v4549 = vpack.c.b16 %v3870, %v3863
    %v4550 = vpack.c.b16 %v3871, %v3864
    %v4551 = vpack.c.b16 %v3872, %v3865
    %v4552 = vpack.c.b16 %v3880, %v3873
    %v4553 = vpack.c.b16 %v3881, %v3874
    %v4554 = vpack.c.b16 %v3882, %v3875
    %v4555 = vpack.c.b16 %v3883, %v3876
    %v4556 = vpack.c.b16 %v3884, %v3877
    %v4557 = vpack.c.b16 %v3885, %v3878
    %v4558 = vpack.c.b16 %v3886, %v3879
    %v4559 = vpack.c.b16 %v3894, %v3887
    %v4560 = vpack.c.b16 %v3895, %v3888
    %v4561 = vpack.c.b16 %v3896, %v3889
    %v4562 = vpack.c.b16 %v3897, %v3890
    %v4563 = vpack.c.b16 %v3898, %v3891
    %v4564 = vpack.c.b16 %v3899, %v3892
    %v4565 = vpack.c.b16 %v3900, %v3893
    %v4566 = vpack.c.b16 %v3908, %v3901
    %v4567 = vpack.c.b16 %v3909, %v3902
    %v4568 = vpack.c.b16 %v3910, %v3903
    %v4569 = vpack.c.b16 %v3911, %v3904
    %v4570 = vpack.c.b16 %v3912, %v3905
    %v4571 = vpack.c.b16 %v3913, %v3906
    %v4572 = vpack.c.b16 %v3914, %v3907
    %v4573 = vpack.c.b16 %v3922, %v3915
    %v4574 = vpack.c.b16 %v3923, %v3916
    %v4575 = vpack.c.b16 %v3924, %v3917
    %v4576 = vpack.c.b16 %v3925, %v3918
    %v4577 = vpack.c.b16 %v3926, %v3919
    %v4578 = vpack.c.b16 %v3927, %v3920
    %v4579 = vpack.c.b16 %v3928, %v3921
    %v4580 = vpack.c.b16 %v3936, %v3929
    %v4581 = vpack.c.b16 %v3937, %v3930
    %v4582 = vpack.c.b16 %v3938, %v3931
    %v4583 = vpack.c.b16 %v3939, %v3932
    %v4584 = vpack.c.b16 %v3940, %v3933
    %v4585 = vpack.c.b16 %v3941, %v3934
    %v4586 = vpack.c.b16 %v3942, %v3935
    %v4587 = vpack.c.b16 %v3950, %v3943
    %v4588 = vpack.c.b16 %v3951, %v3944
    %v4589 = vpack.c.b16 %v3952, %v3945
    %v4590 = vpack.c.b16 %v3953, %v3946
    %v4591 = vpack.c.b16 %v3954, %v3947
    %v4592 = vpack.c.b16 %v3955, %v3948
    %v4593 = vpack.c.b16 %v3956, %v3949
    %v4594 = vpack.c.b16 %v3964, %v3957
    %v4595 = vpack.c.b16 %v3965, %v3958
    %v4596 = vpack.c.b16 %v3966, %v3959
    %v4597 = vpack.c.b16 %v3967, %v3960
    %v4598 = vpack.c.b16 %v3968, %v3961
    %v4599 = vpack.c.b16 %v3969, %v3962
    %v4600 = vpack.c.b16 %v3970, %v3963
    %v4601 = vpack.c.b16 %v3978, %v3971
    %v4602 = vpack.c.b16 %v3979, %v3972
    %v4603 = vpack.c.b16 %v3980, %v3973
    %v4604 = vpack.c.b16 %v3981, %v3974
    %v4605 = vpack.c.b16 %v3982, %v3975
    %v4606 = vpack.c.b16 %v3983, %v3976
    %v4607 = vpack.c.b16 %v3984, %v3977
    %v4608 = vpack.c.b16 %v3992, %v3985
    %v4609 = vpack.c.b16 %v3993, %v3986
    %v4610 = vpack.c.b16 %v3994, %v3987
    %v4611 = vpack.c.b16 %v3995, %v3988
    %v4612 = vpack.c.b16 %v3996, %v3989
    %v4613 = vpack.c.b16 %v3997, %v3990
    %v4614 = vpack.c.b16 %v3998, %v3991
    %v4615 = vpack.c.b16 %v4006, %v3999
    %v4616 = vpack.c.b16 %v4007, %v4000
    %v4617 = vpack.c.b16 %v4008, %v4001
    %v4618 = vpack.c.b16 %v4009, %v4002
    %v4619 = vpack.c.b16 %v4010, %v4003
    %v4620 = vpack.c.b16 %v4011, %v4004
    %v4621 = vpack.c.b16 %v4012, %v4005
    %v4622 = vpack.c.b16 %v4020, %v4013
    %v4623 = vpack.c.b16 %v4021, %v4014
    %v4624 = vpack.c.b16 %v4022, %v4015
    %v4625 = vpack.c.b16 %v4023, %v4016
    %v4626 = vpack.c.b16 %v4024, %v4017
    %v4627 = vpack.c.b16 %v4025, %v4018
    %v4628 = vpack.c.b16 %v4026, %v4019
    %v4629 = vpack.c.b16 %v4034, %v4027
    %v4630 = vpack.c.b16 %v4035, %v4028
    %v4631 = vpack.c.b16 %v4036, %v4029
    %v4632 = vpack.c.b16 %v4037, %v4030
    %v4633 = vpack.c.b16 %v4038, %v4031
    %v4634 = vpack.c.b16 %v4039, %v4032
    %v4635 = vpack.c.b16 %v4040, %v4033
    %v4636 = vpack.c.b16 %v4048, %v4041
    %v4637 = vpack.c.b16 %v4049, %v4042
    %v4638 = vpack.c.b16 %v4050, %v4043
    %v4639 = vpack.c.b16 %v4051, %v4044
    %v4640 = vpack.c.b16 %v4052, %v4045
    %v4641 = vpack.c.b16 %v4053, %v4046
    %v4642 = vpack.c.b16 %v4054, %v4047
    %v4643 = vpack.c.b16 %v4062, %v4055
    %v4644 = vpack.c.b16 %v4063, %v4056
    %v4645 = vpack.c.b16 %v4064, %v4057
    %v4646 = vpack.c.b16 %v4065, %v4058
    %v4647 = vpack.c.b16 %v4066, %v4059
    %v4648 = vpack.c.b16 %v4067, %v4060
    %v4649 = vpack.c.b16 %v4068, %v4061
    %v4650 = vpack.c.b16 %v4076, %v4069
    %v4651 = vpack.c.b16 %v4077, %v4070
    %v4652 = vpack.c.b16 %v4078, %v4071
    %v4653 = vpack.c.b16 %v4079, %v4072
    %v4654 = vpack.c.b16 %v4080, %v4073
    %v4655 = vpack.c.b16 %v4081, %v4074
    %v4656 = vpack.c.b16 %v4082, %v4075
    %v4657 = vpack.c.b16 %v4090, %v4083
    %v4658 = vpack.c.b16 %v4091, %v4084
    %v4659 = vpack.c.b16 %v4092, %v4085
    %v4660 = vpack.c.b16 %v4093, %v4086
    %v4661 = vpack.c.b16 %v4094, %v4087
    %v4662 = vpack.c.b16 %v4095, %v4088
    %v4663 = vpack.c.b16 %v4096, %v4089
    %v4664 = vpack.c.b16 %v4104, %v4097
    %v4665 = vpack.c.b16 %v4105, %v4098
    %v4666 = vpack.c.b16 %v4106, %v4099
    %v4667 = vpack.c.b16 %v4107, %v4100
    %v4668 = vpack.c.b16 %v4108, %v4101
    %v4669 = vpack.c.b16 %v4109, %v4102
    %v4670 = vpack.c.b16 %v4110, %v4103
    %v4671 = vpack.c.b16 %v4118, %v4111
    %v4672 = vpack.c.b16 %v4119, %v4112
    %v4673 = vpack.c.b16 %v4120, %v4113
    %v4674 = vpack.c.b16 %v4121, %v4114
    %v4675 = vpack.c.b16 %v4122, %v4115
    %v4676 = vpack.c.b16 %v4123, %v4116
    %v4677 = vpack.c.b16 %v4124, %v4117
    %v4678 = vpack.c.b16 %v4132, %v4125
    %v4679 = vpack.c.b16 %v4133, %v4126
    %v4680 = vpack.c.b16 %v4134, %v4127
    %v4681 = vpack.c.b16 %v4135, %v4128
    %v4682 = vpack.c.b16 %v4136, %v4129
    %v4683 = vpack.c.b16 %v4137, %v4130
    %v4684 = vpack.c.b16 %v4138, %v4131
    %v4685 = vpack.c.b16 %v4146, %v4139
    %v4686 = vpack.c.b16 %v4147, %v4140
    %v4687 = vpack.c.b16 %v4148, %v4141
    %v4688 = vpack.c.b16 %v4149, %v4142
    %v4689 = vpack.c.b16 %v4150, %v4143
    %v4690 = vpack.c.b16 %v4151, %v4144
    %v4691 = vpack.c.b16 %v4152, %v4145
    %v4692 = vpack.c.b16 %v4160, %v4153
    %v4693 = vpack.c.b16 %v4161, %v4154
    %v4694 = vpack.c.b16 %v4162, %v4155
    %v4695 = vpack.c.b16 %v4163, %v4156
    %v4696 = vpack.c.b16 %v4164, %v4157
    %v4697 = vpack.c.b16 %v4165, %v4158
    %v4698 = vpack.c.b16 %v4166, %v4159
    %v4699 = vpack.c.b16 %v4174, %v4167
    %v4700 = vpack.c.b16 %v4175, %v4168
    %v4701 = vpack.c.b16 %v4176, %v4169
    %v4702 = vpack.c.b16 %v4177, %v4170
    %v4703 = vpack.c.b16 %v4178, %v4171
    %v4704 = vpack.c.b16 %v4179, %v4172
    %v4705 = vpack.c.b16 %v4180, %v4173
    %v4706 = vpack.c.b16 %v4188, %v4181
    %v4707 = vpack.c.b16 %v4189, %v4182
    %v4708 = vpack.c.b16 %v4190, %v4183
    %v4709 = vpack.c.b16 %v4191, %v4184
    %v4710 = vpack.c.b16 %v4192, %v4185
    %v4711 = vpack.c.b16 %v4193, %v4186
    %v4712 = vpack.c.b16 %v4194, %v4187
    %v4713 = vpack.c.b16 %v4202, %v4195
    %v4714 = vpack.c.b16 %v4203, %v4196
    %v4715 = vpack.c.b16 %v4204, %v4197
    %v4716 = vpack.c.b16 %v4205, %v4198
    %v4717 = vpack.c.b16 %v4206, %v4199
    %v4718 = vpack.c.b16 %v4207, %v4200
    %v4719 = vpack.c.b16 %v4208, %v4201
    %v4720 = vpack.c.b16 %v4216, %v4209
    %v4721 = vpack.c.b16 %v4217, %v4210
    %v4722 = vpack.c.b16 %v4218, %v4211
    %v4723 = vpack.c.b16 %v4219, %v4212
    %v4724 = vpack.c.b16 %v4220, %v4213
    %v4725 = vpack.c.b16 %v4221, %v4214
    %v4726 = vpack.c.b16 %v4222, %v4215
    %v4727 = vpack.c.b16 %v4230, %v4223
    %v4728 = vpack.c.b16 %v4231, %v4224
    %v4729 = vpack.c.b16 %v4232, %v4225
    %v4730 = vpack.c.b16 %v4233, %v4226
    %v4731 = vpack.c.b16 %v4234, %v4227
    %v4732 = vpack.c.b16 %v4235, %v4228
    %v4733 = vpack.c.b16 %v4236, %v4229
    %v4734 = vpack.c.b16 %v4244, %v4237
    %v4735 = vpack.c.b16 %v4245, %v4238
    %v4736 = vpack.c.b16 %v4246, %v4239
    %v4737 = vpack.c.b16 %v4247, %v4240
    %v4738 = vpack.c.b16 %v4248, %v4241
    %v4739 = vpack.c.b16 %v4249, %v4242
    %v4740 = vpack.c.b16 %v4250, %v4243
    %v4741 = vpack.c.b16 %v4258, %v4251
    %v4742 = vpack.c.b16 %v4259, %v4252
    %v4743 = vpack.c.b16 %v4260, %v4253
    %v4744 = vpack.c.b16 %v4261, %v4254
    %v4745 = vpack.c.b16 %v4262, %v4255
    %v4746 = vpack.c.b16 %v4263, %v4256
    %v4747 = vpack.c.b16 %v4264, %v4257
    %v4748 = vpack.c.b16 %v4272, %v4265
    %v4749 = vpack.c.b16 %v4273, %v4266
    %v4750 = vpack.c.b16 %v4274, %v4267
    %v4751 = vpack.c.b16 %v4275, %v4268
    %v4752 = vpack.c.b16 %v4276, %v4269
    %v4753 = vpack.c.b16 %v4277, %v4270
    %v4754 = vpack.c.b16 %v4278, %v4271
    %v4755 = vpack.c.b16 %v4286, %v4279
    %v4756 = vpack.c.b16 %v4287, %v4280
    %v4757 = vpack.c.b16 %v4288, %v4281
    %v4758 = vpack.c.b16 %v4289, %v4282
    %v4759 = vpack.c.b16 %v4290, %v4283
    %v4760 = vpack.c.b16 %v4291, %v4284
    %v4761 = vpack.c.b16 %v4292, %v4285
    %v4762 = vpack.c.b16 %v4300, %v4293
    %v4763 = vpack.c.b16 %v4301, %v4294
    %v4764 = vpack.c.b16 %v4302, %v4295
    %v4765 = vpack.c.b16 %v4303, %v4296
    %v4766 = vpack.c.b16 %v4304, %v4297
    %v4767 = vpack.c.b16 %v4305, %v4298
    %v4768 = vpack.c.b16 %v4306, %v4299
    %v4769 = vpack.c.b16 %v4314, %v4307
    %v4770 = vpack.c.b16 %v4315, %v4308
    %v4771 = vpack.c.b16 %v4316, %v4309
    %v4772 = vpack.c.b16 %v4317, %v4310
    %v4773 = vpack.c.b16 %v4318, %v4311
    %v4774 = vpack.c.b16 %v4319, %v4312
    %v4775 = vpack.c.b16 %v4320, %v4313
    %v4776 = vpack.c.b16 %v4328, %v4321
    %v4777 = vpack.c.b16 %v4329, %v4322
    %v4778 = vpack.c.b16 %v4330, %v4323
    %v4779 = vpack.c.b16 %v4331, %v4324
    %v4780 = vpack.c.b16 %v4332, %v4325
    %v4781 = vpack.c.b16 %v4333, %v4326
    %v4782 = vpack.c.b16 %v4334, %v4327
    %v4783 = vpack.c.b16 %v4342, %v4335
    %v4784 = vpack.c.b16 %v4343, %v4336
    %v4785 = vpack.c.b16 %v4344, %v4337
    %v4786 = vpack.c.b16 %v4345, %v4338
    %v4787 = vpack.c.b16 %v4346, %v4339
    %v4788 = vpack.c.b16 %v4347, %v4340
    %v4789 = vpack.c.b16 %v4348, %v4341
    %v4790 = vpack.c.b16 %v4356, %v4349
    %v4791 = vpack.c.b16 %v4357, %v4350
    %v4792 = vpack.c.b16 %v4358, %v4351
    %v4793 = vpack.c.b16 %v4359, %v4352
    %v4794 = vpack.c.b16 %v4360, %v4353
    %v4795 = vpack.c.b16 %v4361, %v4354
    %v4796 = vpack.c.b16 %v4362, %v4355
    %v4797 = vpack.c.b16 %v4370, %v4363
    %v4798 = vpack.c.b16 %v4371, %v4364
    %v4799 = vpack.c.b16 %v4372, %v4365
    %v4800 = vpack.c.b16 %v4373, %v4366
    %v4801 = vpack.c.b16 %v4374, %v4367
    %v4802 = vpack.c.b16 %v4375, %v4368
    %v4803 = vpack.c.b16 %v4376, %v4369
    %v4804 = vpack.c.b16 %v4384, %v4377
    %v4805 = vpack.c.b16 %v4385, %v4378
    %v4806 = vpack.c.b16 %v4386, %v4379
    %v4807 = vpack.c.b16 %v4387, %v4380
    %v4808 = vpack.c.b16 %v4388, %v4381
    %v4809 = vpack.c.b16 %v4389, %v4382
    %v4810 = vpack.c.b16 %v4390, %v4383
    %v4811 = vpack.c.b16 %v4398, %v4391
    %v4812 = vpack.c.b16 %v4399, %v4392
    %v4813 = vpack.c.b16 %v4400, %v4393
    %v4814 = vpack.c.b16 %v4401, %v4394
    %v4815 = vpack.c.b16 %v4402, %v4395
    %v4816 = vpack.c.b16 %v4403, %v4396
    %v4817 = vpack.c.b16 %v4404, %v4397
    %v4818 = vpack.c.b16 %v4412, %v4405
    %v4819 = vpack.c.b16 %v4413, %v4406
    %v4820 = vpack.c.b16 %v4414, %v4407
    %v4821 = vpack.c.b16 %v4415, %v4408
    %v4822 = vpack.c.b16 %v4416, %v4409
    %v4823 = vpack.c.b16 %v4417, %v4410
    %v4824 = vpack.c.b16 %v4418, %v4411
    %v4825 = vpack.c.b16 %v4426, %v4419
    %v4826 = vpack.c.b16 %v4427, %v4420
    %v4827 = vpack.c.b16 %v4428, %v4421
    %v4828 = vpack.c.b16 %v4429, %v4422
    %v4829 = vpack.c.b16 %v4430, %v4423
    %v4830 = vpack.c.b16 %v4431, %v4424
    %v4831 = vpack.c.b16 %v4432, %v4425
    %v4832 = vpack.c.b16 %v4440, %v4433
    %v4833 = vpack.c.b16 %v4441, %v4434
    %v4834 = vpack.c.b16 %v4442, %v4435
    %v4835 = vpack.c.b16 %v4443, %v4436
    %v4836 = vpack.c.b16 %v4444, %v4437
    %v4837 = vpack.c.b16 %v4445, %v4438
    %v4838 = vpack.c.b16 %v4446, %v4439
    %v4839 = vpack.c.b16 %v4454, %v4447
    %v4840 = vpack.c.b16 %v4455, %v4448
    %v4841 = vpack.c.b16 %v4456, %v4449
    %v4842 = vpack.c.b16 %v4457, %v4450
    %v4843 = vpack.c.b16 %v4458, %v4451
    %v4844 = vpack.c.b16 %v4459, %v4452
    %v4845 = vpack.c.b16 %v4460, %v4453
    %v4846 = vpack.c.b16 %v4468, %v4461
    %v4847 = vpack.c.b16 %v4469, %v4462
    %v4848 = vpack.c.b16 %v4470, %v4463
    %v4849 = vpack.c.b16 %v4471, %v4464
    %v4850 = vpack.c.b16 %v4472, %v4465
    %v4851 = vpack.c.b16 %v4473, %v4466
    %v4852 = vpack.c.b16 %v4474, %v4467
    %v4853 = vpack.c.b16 %v4482, %v4475
    %v4854 = vpack.c.b16 %v4483, %v4476
    %v4855 = vpack.c.b16 %v4484, %v4477
    %v4856 = vpack.c.b16 %v4485, %v4478
    %v4857 = vpack.c.b16 %v4486, %v4479
    %v4858 = vpack.c.b16 %v4487, %v4480
    %v4859 = vpack.c.b16 %v4488, %v4481
    %v4860 = vpack.c.b16 %v4496, %v4489
    %v4861 = vpack.c.b16 %v4497, %v4490
    %v4862 = vpack.c.b16 %v4498, %v4491
    %v4863 = vpack.c.b16 %v4499, %v4492
    %v4864 = vpack.c.b16 %v4500, %v4493
    %v4865 = vpack.c.b16 %v4501, %v4494
    %v4866 = vpack.c.b16 %v4502, %v4495
    %v4867 = vpack.c.b16 %v4510, %v4503
    %v4868 = vpack.c.b16 %v4511, %v4504
    %v4869 = vpack.c.b16 %v4512, %v4505
    %v4870 = vpack.c.b16 %v4513, %v4506
    %v4871 = vpack.c.b16 %v4514, %v4507
    %v4872 = vpack.c.b16 %v4515, %v4508
    %v4873 = vpack.c.b16 %v4516, %v4509
    %v4874 = vpack.c.b16 %v4524, %v4517
    %v4875 = vpack.c.b16 %v4525, %v4518
    %v4876 = vpack.c.b16 %v4526, %v4519
    %v4877 = vpack.c.b16 %v4527, %v4520
    %v4878 = vpack.c.b16 %v4528, %v4521
    %v4879 = vpack.c.b16 %v4529, %v4522
    %v4880 = vpack.c.b16 %v4530, %v4523
    %vm5231 = vcmask 261120
    %v5233 = vsel %vm5231, %v2993, 0
    %5235 = vmatprep.subr.bf16.mxu0 %v4581
    %5236 = vmatpush1.bf16.msra.mxu0 %v4580
    %5237 = vmatprep.subr.bf16.mxu0 %v4574
    %5238 = vmatpush1.bf16.msra.mxu0 %v4573
    %5239 = vmatprep.subr.bf16.mxu0 %v4567
    %5240 = vmatpush1.bf16.msra.mxu0 %v4566
    %5241 = vmatprep.subr.bf16.mxu0 %v4560
    %5242 = vmatpush1.bf16.msra.mxu0 %v4559
    %5243 = vmatprep.subr.bf16.mxu0 %v4553
    %5244 = vmatpush1.bf16.msra.mxu0 %v4552
    %5245 = vmatprep.subr.bf16.mxu0 %v4546
    %5246 = vmatpush1.bf16.msra.mxu0 %v4545
    %5247 = vmatprep.subr.bf16.mxu0 %v4539
    %5248 = vmatpush1.bf16.msra.mxu0 %v4538
    %5249 = vmatprep.subr.bf16.mxu0 %v4532
    %5250 = vmatpush1.bf16.msra.mxu0 %v4531
    %5251 = vmatprep.subr.bf16.mxu0 %v4637
    %5252 = vmatpush2.bf16.msra.mxu0 %v4636
    %5253 = vmatprep.subr.bf16.mxu0 %v4630
    %5254 = vmatpush2.bf16.msra.mxu0 %v4629
    %5255 = vmatprep.subr.bf16.mxu0 %v4623
    %5256 = vmatpush2.bf16.msra.mxu0 %v4622
    %5257 = vmatprep.subr.bf16.mxu0 %v4616
    %5258 = vmatpush2.bf16.msra.mxu0 %v4615
    %5259 = vmatprep.subr.bf16.mxu0 %v4609
    %5260 = vmatpush2.bf16.msra.mxu0 %v4608
    %5261 = vmatprep.subr.bf16.mxu0 %v4602
    %5262 = vmatpush2.bf16.msra.mxu0 %v4601
    %5263 = vmatprep.subr.bf16.mxu0 %v4595
    %5264 = vmatpush2.bf16.msra.mxu0 %v4594
    %5265 = vmatprep.subr.bf16.mxu0 %v4588
    %5266 = vmatpush2.bf16.msra.mxu0 %v4587
    %5267 = vmatprep.mubr.bf16.mxu0 %v2988
    %5268 = vmatmul.mubr.bf16.gmra.mxu0 %v2987
    %v5269 = vpop.f32.mrf.mxu0
    %v5270 = vadd.f32 %v3399, %v5269
    %v5271 = vpop.f32.mrf.mxu0
    %v5272 = vadd.f32 %v3403, %v5271
    %v5273 = vpop.f32.mrf.mxu0
    %v5274 = vpop.f32.mrf.mxu0
    %5275 = vdwg.mxu0
    %5276 = vmatprep.subr.bf16.mxu0 %v4693
    %5277 = vmatpush1.bf16.msra.mxu0 %v4692
    %5278 = vmatprep.subr.bf16.mxu0 %v4686
    %5279 = vmatpush1.bf16.msra.mxu0 %v4685
    %5280 = vmatprep.subr.bf16.mxu0 %v4679
    %5281 = vmatpush1.bf16.msra.mxu0 %v4678
    %5282 = vmatprep.subr.bf16.mxu0 %v4672
    %5283 = vmatpush1.bf16.msra.mxu0 %v4671
    %5284 = vmatprep.subr.bf16.mxu0 %v4665
    %5285 = vmatpush1.bf16.msra.mxu0 %v4664
    %5286 = vmatprep.subr.bf16.mxu0 %v4658
    %5287 = vmatpush1.bf16.msra.mxu0 %v4657
    %5288 = vmatprep.subr.bf16.mxu0 %v4651
    %5289 = vmatpush1.bf16.msra.mxu0 %v4650
    %5290 = vmatprep.subr.bf16.mxu0 %v4644
    %5291 = vmatpush1.bf16.msra.mxu0 %v4643
    %5292 = vmatprep.subr.bf16.mxu0 %v4749
    %5293 = vmatpush2.bf16.msra.mxu0 %v4748
    %5294 = vmatprep.subr.bf16.mxu0 %v4742
    %5295 = vmatpush2.bf16.msra.mxu0 %v4741
    %5296 = vmatprep.subr.bf16.mxu0 %v4735
    %5297 = vmatpush2.bf16.msra.mxu0 %v4734
    %5298 = vmatprep.subr.bf16.mxu0 %v4728
    %5299 = vmatpush2.bf16.msra.mxu0 %v4727
    %5300 = vmatprep.subr.bf16.mxu0 %v4721
    %5301 = vmatpush2.bf16.msra.mxu0 %v4720
    %5302 = vmatprep.subr.bf16.mxu0 %v4714
    %5303 = vmatpush2.bf16.msra.mxu0 %v4713
    %5304 = vmatprep.subr.bf16.mxu0 %v4707
    %5305 = vmatpush2.bf16.msra.mxu0 %v4706
    %5306 = vmatprep.subr.bf16.mxu0 %v4700
    %5307 = vmatpush2.bf16.msra.mxu0 %v4699
    %5308 = vmatprep.mubr.bf16.mxu0 %v2990
    %5309 = vmatmul.mubr.bf16.gmra.mxu0 %v2989
    %v5310 = vpop.f32.mrf.mxu0
    %v5311 = vadd.f32 %v5270, %v5310
    %v5312 = vpop.f32.mrf.mxu0
    %v5313 = vadd.f32 %v5272, %v5312
    %v5314 = vpop.f32.mrf.mxu0
    %v5315 = vpop.f32.mrf.mxu0
    %5316 = vdwg.mxu0
    %5317 = vmatprep.subr.bf16.mxu0 %v4805
    %5318 = vmatpush1.bf16.msra.mxu0 %v4804
    %5319 = vmatprep.subr.bf16.mxu0 %v4798
    %5320 = vmatpush1.bf16.msra.mxu0 %v4797
    %5321 = vmatprep.subr.bf16.mxu0 %v4791
    %5322 = vmatpush1.bf16.msra.mxu0 %v4790
    %5323 = vmatprep.subr.bf16.mxu0 %v4784
    %5324 = vmatpush1.bf16.msra.mxu0 %v4783
    %5325 = vmatprep.subr.bf16.mxu0 %v4777
    %5326 = vmatpush1.bf16.msra.mxu0 %v4776
    %5327 = vmatprep.subr.bf16.mxu0 %v4770
    %5328 = vmatpush1.bf16.msra.mxu0 %v4769
    %5329 = vmatprep.subr.bf16.mxu0 %v4763
    %5330 = vmatpush1.bf16.msra.mxu0 %v4762
    %5331 = vmatprep.subr.bf16.mxu0 %v4756
    %5332 = vmatpush1.bf16.msra.mxu0 %v4755
    %5333 = vmatprep.subr.bf16.mxu0 %v4861
    %5334 = vmatpush2.bf16.msra.mxu0 %v4860
    %5335 = vmatprep.subr.bf16.mxu0 %v4854
    %5336 = vmatpush2.bf16.msra.mxu0 %v4853
    %5337 = vmatprep.subr.bf16.mxu0 %v4847
    %5338 = vmatpush2.bf16.msra.mxu0 %v4846
    %5339 = vmatprep.subr.bf16.mxu0 %v4840
    %5340 = vmatpush2.bf16.msra.mxu0 %v4839
    %5341 = vmatprep.subr.bf16.mxu0 %v4833
    %5342 = vmatpush2.bf16.msra.mxu0 %v4832
    %5343 = vmatprep.subr.bf16.mxu0 %v4826
    %5344 = vmatpush2.bf16.msra.mxu0 %v4825
    %5345 = vmatprep.subr.bf16.mxu0 %v4819
    %5346 = vmatpush2.bf16.msra.mxu0 %v4818
    %5347 = vmatprep.subr.bf16.mxu0 %v4812
    %5348 = vmatpush2.bf16.msra.mxu0 %v4811
    %5349 = vmatprep.mubr.bf16.mxu0 %v2992
    %5350 = vmatmul.mubr.bf16.gmra.mxu0 %v2991
    %v5351 = vpop.f32.mrf.mxu0
    %v5352 = vadd.f32 %v5311, %v5351
    %v5353 = vpop.f32.mrf.mxu0
    %v5354 = vadd.f32 %v5313, %v5353
    %v5355 = vpop.f32.mrf.mxu0
    %v5356 = vpop.f32.mrf.mxu0
    %5357 = vdwg.mxu0
    %5358 = vmatprep.subr.bf16.mxu0 0
    %5359 = vmatpush1.bf16.msra.mxu0 0
    %5360 = vmatprep.subr.bf16.mxu0 0
    %5361 = vmatpush1.bf16.msra.mxu0 0
    %5362 = vmatprep.subr.bf16.mxu0 0
    %5363 = vmatpush1.bf16.msra.mxu0 0
    %5364 = vmatprep.subr.bf16.mxu0 0
    %5365 = vmatpush1.bf16.msra.mxu0 0
    %5366 = vmatprep.subr.bf16.mxu0 0
    %5367 = vmatpush1.bf16.msra.mxu0 0
    %5368 = vmatprep.subr.bf16.mxu0 0
    %5369 = vmatpush1.bf16.msra.mxu0 0
    %5370 = vmatprep.subr.bf16.mxu0 %v4875
    %5371 = vmatpush1.bf16.msra.mxu0 %v4874
    %5372 = vmatprep.subr.bf16.mxu0 %v4868
    %5373 = vmatpush1.bf16.msra.mxu0 %v4867
    %5374 = vmatprep.subr.bf16.mxu0 0
    %5375 = vmatpush2.bf16.msra.mxu0 0
    %5376 = vmatprep.subr.bf16.mxu0 0
    %5377 = vmatpush2.bf16.msra.mxu0 0
    %5378 = vmatprep.subr.bf16.mxu0 0
    %5379 = vmatpush2.bf16.msra.mxu0 0
    %5380 = vmatprep.subr.bf16.mxu0 0
    %5381 = vmatpush2.bf16.msra.mxu0 0
    %5382 = vmatprep.subr.bf16.mxu0 0
    %5383 = vmatpush2.bf16.msra.mxu0 0
    %5384 = vmatprep.subr.bf16.mxu0 0
    %5385 = vmatpush2.bf16.msra.mxu0 0
    %5386 = vmatprep.subr.bf16.mxu0 0
    %5387 = vmatpush2.bf16.msra.mxu0 0
    %5388 = vmatprep.subr.bf16.mxu0 0
    %5389 = vmatpush2.bf16.msra.mxu0 0
    %5390 = vmatprep.mubr.bf16.mxu0 0
    %5391 = vmatmul.mubr.bf16.gmra.mxu0 %v5233
    %v5392 = vpop.f32.mrf.mxu0
    %v5393 = vadd.f32 %v5352, %v5392
    %v5394 = vpop.f32.mrf.mxu0
    %v5395 = vadd.f32 %v5354, %v5394
    %v5396 = vpop.f32.mrf.mxu0
    %v5397 = vpop.f32.mrf.mxu0
    %5398 = vdwg.mxu0
    %5399 = vmatprep.subr.bf16.mxu0 %v4583
    %5400 = vmatpush1.bf16.msra.mxu0 %v4582
    %5401 = vmatprep.subr.bf16.mxu0 %v4576
    %5402 = vmatpush1.bf16.msra.mxu0 %v4575
    %5403 = vmatprep.subr.bf16.mxu0 %v4569
    %5404 = vmatpush1.bf16.msra.mxu0 %v4568
    %5405 = vmatprep.subr.bf16.mxu0 %v4562
    %5406 = vmatpush1.bf16.msra.mxu0 %v4561
    %5407 = vmatprep.subr.bf16.mxu0 %v4555
    %5408 = vmatpush1.bf16.msra.mxu0 %v4554
    %5409 = vmatprep.subr.bf16.mxu0 %v4548
    %5410 = vmatpush1.bf16.msra.mxu0 %v4547
    %5411 = vmatprep.subr.bf16.mxu0 %v4541
    %5412 = vmatpush1.bf16.msra.mxu0 %v4540
    %5413 = vmatprep.subr.bf16.mxu0 %v4534
    %5414 = vmatpush1.bf16.msra.mxu0 %v4533
    %5415 = vmatprep.subr.bf16.mxu0 %v4639
    %5416 = vmatpush2.bf16.msra.mxu0 %v4638
    %5417 = vmatprep.subr.bf16.mxu0 %v4632
    %5418 = vmatpush2.bf16.msra.mxu0 %v4631
    %5419 = vmatprep.subr.bf16.mxu0 %v4625
    %5420 = vmatpush2.bf16.msra.mxu0 %v4624
    %5421 = vmatprep.subr.bf16.mxu0 %v4618
    %5422 = vmatpush2.bf16.msra.mxu0 %v4617
    %5423 = vmatprep.subr.bf16.mxu0 %v4611
    %5424 = vmatpush2.bf16.msra.mxu0 %v4610
    %5425 = vmatprep.subr.bf16.mxu0 %v4604
    %5426 = vmatpush2.bf16.msra.mxu0 %v4603
    %5427 = vmatprep.subr.bf16.mxu0 %v4597
    %5428 = vmatpush2.bf16.msra.mxu0 %v4596
    %5429 = vmatprep.subr.bf16.mxu0 %v4590
    %5430 = vmatpush2.bf16.msra.mxu0 %v4589
    %5431 = vmatprep.mubr.bf16.mxu0 %v2988
    %5432 = vmatmul.mubr.bf16.gmra.mxu0 %v2987
    %v5433 = vpop.f32.mrf.mxu0
    %v5434 = vadd.f32 %v3407, %v5433
    %v5435 = vpop.f32.mrf.mxu0
    %v5436 = vadd.f32 %v3411, %v5435
    %v5437 = vpop.f32.mrf.mxu0
    %v5438 = vpop.f32.mrf.mxu0
    %5439 = vdwg.mxu0
    %5440 = vmatprep.subr.bf16.mxu0 %v4695
    %5441 = vmatpush1.bf16.msra.mxu0 %v4694
    %5442 = vmatprep.subr.bf16.mxu0 %v4688
    %5443 = vmatpush1.bf16.msra.mxu0 %v4687
    %5444 = vmatprep.subr.bf16.mxu0 %v4681
    %5445 = vmatpush1.bf16.msra.mxu0 %v4680
    %5446 = vmatprep.subr.bf16.mxu0 %v4674
    %5447 = vmatpush1.bf16.msra.mxu0 %v4673
    %5448 = vmatprep.subr.bf16.mxu0 %v4667
    %5449 = vmatpush1.bf16.msra.mxu0 %v4666
    %5450 = vmatprep.subr.bf16.mxu0 %v4660
    %5451 = vmatpush1.bf16.msra.mxu0 %v4659
    %5452 = vmatprep.subr.bf16.mxu0 %v4653
    %5453 = vmatpush1.bf16.msra.mxu0 %v4652
    %5454 = vmatprep.subr.bf16.mxu0 %v4646
    %5455 = vmatpush1.bf16.msra.mxu0 %v4645
    %5456 = vmatprep.subr.bf16.mxu0 %v4751
    %5457 = vmatpush2.bf16.msra.mxu0 %v4750
    %5458 = vmatprep.subr.bf16.mxu0 %v4744
    %5459 = vmatpush2.bf16.msra.mxu0 %v4743
    %5460 = vmatprep.subr.bf16.mxu0 %v4737
    %5461 = vmatpush2.bf16.msra.mxu0 %v4736
    %5462 = vmatprep.subr.bf16.mxu0 %v4730
    %5463 = vmatpush2.bf16.msra.mxu0 %v4729
    %5464 = vmatprep.subr.bf16.mxu0 %v4723
    %5465 = vmatpush2.bf16.msra.mxu0 %v4722
    %5466 = vmatprep.subr.bf16.mxu0 %v4716
    %5467 = vmatpush2.bf16.msra.mxu0 %v4715
    %5468 = vmatprep.subr.bf16.mxu0 %v4709
    %5469 = vmatpush2.bf16.msra.mxu0 %v4708
    %5470 = vmatprep.subr.bf16.mxu0 %v4702
    %5471 = vmatpush2.bf16.msra.mxu0 %v4701
    %5472 = vmatprep.mubr.bf16.mxu0 %v2990
    %5473 = vmatmul.mubr.bf16.gmra.mxu0 %v2989
    %v5474 = vpop.f32.mrf.mxu0
    %v5475 = vadd.f32 %v5434, %v5474
    %v5476 = vpop.f32.mrf.mxu0
    %v5477 = vadd.f32 %v5436, %v5476
    %v5478 = vpop.f32.mrf.mxu0
    %v5479 = vpop.f32.mrf.mxu0
    %5480 = vdwg.mxu0
    %5481 = vmatprep.subr.bf16.mxu0 %v4807
    %5482 = vmatpush1.bf16.msra.mxu0 %v4806
    %5483 = vmatprep.subr.bf16.mxu0 %v4800
    %5484 = vmatpush1.bf16.msra.mxu0 %v4799
    %5485 = vmatprep.subr.bf16.mxu0 %v4793
    %5486 = vmatpush1.bf16.msra.mxu0 %v4792
    %5487 = vmatprep.subr.bf16.mxu0 %v4786
    %5488 = vmatpush1.bf16.msra.mxu0 %v4785
    %5489 = vmatprep.subr.bf16.mxu0 %v4779
    %5490 = vmatpush1.bf16.msra.mxu0 %v4778
    %5491 = vmatprep.subr.bf16.mxu0 %v4772
    %5492 = vmatpush1.bf16.msra.mxu0 %v4771
    %5493 = vmatprep.subr.bf16.mxu0 %v4765
    %5494 = vmatpush1.bf16.msra.mxu0 %v4764
    %5495 = vmatprep.subr.bf16.mxu0 %v4758
    %5496 = vmatpush1.bf16.msra.mxu0 %v4757
    %5497 = vmatprep.subr.bf16.mxu0 %v4863
    %5498 = vmatpush2.bf16.msra.mxu0 %v4862
    %5499 = vmatprep.subr.bf16.mxu0 %v4856
    %5500 = vmatpush2.bf16.msra.mxu0 %v4855
    %5501 = vmatprep.subr.bf16.mxu0 %v4849
    %5502 = vmatpush2.bf16.msra.mxu0 %v4848
    %5503 = vmatprep.subr.bf16.mxu0 %v4842
    %5504 = vmatpush2.bf16.msra.mxu0 %v4841
    %5505 = vmatprep.subr.bf16.mxu0 %v4835
    %5506 = vmatpush2.bf16.msra.mxu0 %v4834
    %5507 = vmatprep.subr.bf16.mxu0 %v4828
    %5508 = vmatpush2.bf16.msra.mxu0 %v4827
    %5509 = vmatprep.subr.bf16.mxu0 %v4821
    %5510 = vmatpush2.bf16.msra.mxu0 %v4820
    %5511 = vmatprep.subr.bf16.mxu0 %v4814
    %5512 = vmatpush2.bf16.msra.mxu0 %v4813
    %5513 = vmatprep.mubr.bf16.mxu0 %v2992
    %5514 = vmatmul.mubr.bf16.gmra.mxu0 %v2991
    %v5515 = vpop.f32.mrf.mxu0
    %v5516 = vadd.f32 %v5475, %v5515
    %v5517 = vpop.f32.mrf.mxu0
    %v5518 = vadd.f32 %v5477, %v5517
    %v5519 = vpop.f32.mrf.mxu0
    %v5520 = vpop.f32.mrf.mxu0
    %5521 = vdwg.mxu0
    %5522 = vmatprep.subr.bf16.mxu0 0
    %5523 = vmatpush1.bf16.msra.mxu0 0
    %5524 = vmatprep.subr.bf16.mxu0 0
    %5525 = vmatpush1.bf16.msra.mxu0 0
    %5526 = vmatprep.subr.bf16.mxu0 0
    %5527 = vmatpush1.bf16.msra.mxu0 0
    %5528 = vmatprep.subr.bf16.mxu0 0
    %5529 = vmatpush1.bf16.msra.mxu0 0
    %5530 = vmatprep.subr.bf16.mxu0 0
    %5531 = vmatpush1.bf16.msra.mxu0 0
    %5532 = vmatprep.subr.bf16.mxu0 0
    %5533 = vmatpush1.bf16.msra.mxu0 0
    %5534 = vmatprep.subr.bf16.mxu0 %v4877
    %5535 = vmatpush1.bf16.msra.mxu0 %v4876
    %5536 = vmatprep.subr.bf16.mxu0 %v4870
    %5537 = vmatpush1.bf16.msra.mxu0 %v4869
    %5538 = vmatprep.subr.bf16.mxu0 0
    %5539 = vmatpush2.bf16.msra.mxu0 0
    %5540 = vmatprep.subr.bf16.mxu0 0
    %5541 = vmatpush2.bf16.msra.mxu0 0
    %5542 = vmatprep.subr.bf16.mxu0 0
    %5543 = vmatpush2.bf16.msra.mxu0 0
    %5544 = vmatprep.subr.bf16.mxu0 0
    %5545 = vmatpush2.bf16.msra.mxu0 0
    %5546 = vmatprep.subr.bf16.mxu0 0
    %5547 = vmatpush2.bf16.msra.mxu0 0
    %5548 = vmatprep.subr.bf16.mxu0 0
    %5549 = vmatpush2.bf16.msra.mxu0 0
    %5550 = vmatprep.subr.bf16.mxu0 0
    %5551 = vmatpush2.bf16.msra.mxu0 0
    %5552 = vmatprep.subr.bf16.mxu0 0
    %5553 = vmatpush2.bf16.msra.mxu0 0
    %5554 = vmatprep.mubr.bf16.mxu0 0
    %5555 = vmatmul.mubr.bf16.gmra.mxu0 %v5233
    %v5556 = vpop.f32.mrf.mxu0
    %v5557 = vadd.f32 %v5516, %v5556
    %v5558 = vpop.f32.mrf.mxu0
    %v5559 = vadd.f32 %v5518, %v5558
    %v5560 = vpop.f32.mrf.mxu0
    %v5561 = vpop.f32.mrf.mxu0
    %5562 = vdwg.mxu0
    %5563 = vmatprep.subr.bf16.mxu0 %v4585
    %5564 = vmatpush1.bf16.msra.mxu0 %v4584
    %5565 = vmatprep.subr.bf16.mxu0 %v4578
    %5566 = vmatpush1.bf16.msra.mxu0 %v4577
    %5567 = vmatprep.subr.bf16.mxu0 %v4571
    %5568 = vmatpush1.bf16.msra.mxu0 %v4570
    %5569 = vmatprep.subr.bf16.mxu0 %v4564
    %5570 = vmatpush1.bf16.msra.mxu0 %v4563
    %5571 = vmatprep.subr.bf16.mxu0 %v4557
    %5572 = vmatpush1.bf16.msra.mxu0 %v4556
    %5573 = vmatprep.subr.bf16.mxu0 %v4550
    %5574 = vmatpush1.bf16.msra.mxu0 %v4549
    %5575 = vmatprep.subr.bf16.mxu0 %v4543
    %5576 = vmatpush1.bf16.msra.mxu0 %v4542
    %5577 = vmatprep.subr.bf16.mxu0 %v4536
    %5578 = vmatpush1.bf16.msra.mxu0 %v4535
    %5579 = vmatprep.subr.bf16.mxu0 %v4641
    %5580 = vmatpush2.bf16.msra.mxu0 %v4640
    %5581 = vmatprep.subr.bf16.mxu0 %v4634
    %5582 = vmatpush2.bf16.msra.mxu0 %v4633
    %5583 = vmatprep.subr.bf16.mxu0 %v4627
    %5584 = vmatpush2.bf16.msra.mxu0 %v4626
    %5585 = vmatprep.subr.bf16.mxu0 %v4620
    %5586 = vmatpush2.bf16.msra.mxu0 %v4619
    %5587 = vmatprep.subr.bf16.mxu0 %v4613
    %5588 = vmatpush2.bf16.msra.mxu0 %v4612
    %5589 = vmatprep.subr.bf16.mxu0 %v4606
    %5590 = vmatpush2.bf16.msra.mxu0 %v4605
    %5591 = vmatprep.subr.bf16.mxu0 %v4599
    %5592 = vmatpush2.bf16.msra.mxu0 %v4598
    %5593 = vmatprep.subr.bf16.mxu0 %v4592
    %5594 = vmatpush2.bf16.msra.mxu0 %v4591
    %5595 = vmatprep.mubr.bf16.mxu0 %v2988
    %5596 = vmatmul.mubr.bf16.gmra.mxu0 %v2987
    %v5597 = vpop.f32.mrf.mxu0
    %v5598 = vadd.f32 %v3415, %v5597
    %v5599 = vpop.f32.mrf.mxu0
    %v5600 = vadd.f32 %v3419, %v5599
    %v5601 = vpop.f32.mrf.mxu0
    %v5602 = vpop.f32.mrf.mxu0
    %5603 = vdwg.mxu0
    %5604 = vmatprep.subr.bf16.mxu0 %v4697
    %5605 = vmatpush1.bf16.msra.mxu0 %v4696
    %5606 = vmatprep.subr.bf16.mxu0 %v4690
    %5607 = vmatpush1.bf16.msra.mxu0 %v4689
    %5608 = vmatprep.subr.bf16.mxu0 %v4683
    %5609 = vmatpush1.bf16.msra.mxu0 %v4682
    %5610 = vmatprep.subr.bf16.mxu0 %v4676
    %5611 = vmatpush1.bf16.msra.mxu0 %v4675
    %5612 = vmatprep.subr.bf16.mxu0 %v4669
    %5613 = vmatpush1.bf16.msra.mxu0 %v4668
    %5614 = vmatprep.subr.bf16.mxu0 %v4662
    %5615 = vmatpush1.bf16.msra.mxu0 %v4661
    %5616 = vmatprep.subr.bf16.mxu0 %v4655
    %5617 = vmatpush1.bf16.msra.mxu0 %v4654
    %5618 = vmatprep.subr.bf16.mxu0 %v4648
    %5619 = vmatpush1.bf16.msra.mxu0 %v4647
    %5620 = vmatprep.subr.bf16.mxu0 %v4753
    %5621 = vmatpush2.bf16.msra.mxu0 %v4752
    %5622 = vmatprep.subr.bf16.mxu0 %v4746
    %5623 = vmatpush2.bf16.msra.mxu0 %v4745
    %5624 = vmatprep.subr.bf16.mxu0 %v4739
    %5625 = vmatpush2.bf16.msra.mxu0 %v4738
    %5626 = vmatprep.subr.bf16.mxu0 %v4732
    %5627 = vmatpush2.bf16.msra.mxu0 %v4731
    %5628 = vmatprep.subr.bf16.mxu0 %v4725
    %5629 = vmatpush2.bf16.msra.mxu0 %v4724
    %5630 = vmatprep.subr.bf16.mxu0 %v4718
    %5631 = vmatpush2.bf16.msra.mxu0 %v4717
    %5632 = vmatprep.subr.bf16.mxu0 %v4711
    %5633 = vmatpush2.bf16.msra.mxu0 %v4710
    %5634 = vmatprep.subr.bf16.mxu0 %v4704
    %5635 = vmatpush2.bf16.msra.mxu0 %v4703
    %5636 = vmatprep.mubr.bf16.mxu0 %v2990
    %5637 = vmatmul.mubr.bf16.gmra.mxu0 %v2989
    %v5638 = vpop.f32.mrf.mxu0
    %v5639 = vadd.f32 %v5598, %v5638
    %v5640 = vpop.f32.mrf.mxu0
    %v5641 = vadd.f32 %v5600, %v5640
    %v5642 = vpop.f32.mrf.mxu0
    %v5643 = vpop.f32.mrf.mxu0
    %5644 = vdwg.mxu0
    %5645 = vmatprep.subr.bf16.mxu0 %v4809
    %5646 = vmatpush1.bf16.msra.mxu0 %v4808
    %5647 = vmatprep.subr.bf16.mxu0 %v4802
    %5648 = vmatpush1.bf16.msra.mxu0 %v4801
    %5649 = vmatprep.subr.bf16.mxu0 %v4795
    %5650 = vmatpush1.bf16.msra.mxu0 %v4794
    %5651 = vmatprep.subr.bf16.mxu0 %v4788
    %5652 = vmatpush1.bf16.msra.mxu0 %v4787
    %5653 = vmatprep.subr.bf16.mxu0 %v4781
    %5654 = vmatpush1.bf16.msra.mxu0 %v4780
    %5655 = vmatprep.subr.bf16.mxu0 %v4774
    %5656 = vmatpush1.bf16.msra.mxu0 %v4773
    %5657 = vmatprep.subr.bf16.mxu0 %v4767
    %5658 = vmatpush1.bf16.msra.mxu0 %v4766
    %5659 = vmatprep.subr.bf16.mxu0 %v4760
    %5660 = vmatpush1.bf16.msra.mxu0 %v4759
    %5661 = vmatprep.subr.bf16.mxu0 %v4865
    %5662 = vmatpush2.bf16.msra.mxu0 %v4864
    %5663 = vmatprep.subr.bf16.mxu0 %v4858
    %5664 = vmatpush2.bf16.msra.mxu0 %v4857
    %5665 = vmatprep.subr.bf16.mxu0 %v4851
    %5666 = vmatpush2.bf16.msra.mxu0 %v4850
    %5667 = vmatprep.subr.bf16.mxu0 %v4844
    %5668 = vmatpush2.bf16.msra.mxu0 %v4843
    %5669 = vmatprep.subr.bf16.mxu0 %v4837
    %5670 = vmatpush2.bf16.msra.mxu0 %v4836
    %5671 = vmatprep.subr.bf16.mxu0 %v4830
    %5672 = vmatpush2.bf16.msra.mxu0 %v4829
    %5673 = vmatprep.subr.bf16.mxu0 %v4823
    %5674 = vmatpush2.bf16.msra.mxu0 %v4822
    %5675 = vmatprep.subr.bf16.mxu0 %v4816
    %5676 = vmatpush2.bf16.msra.mxu0 %v4815
    %5677 = vmatprep.mubr.bf16.mxu0 %v2992
    %5678 = vmatmul.mubr.bf16.gmra.mxu0 %v2991
    %v5679 = vpop.f32.mrf.mxu0
    %v5680 = vadd.f32 %v5639, %v5679
    %v5681 = vpop.f32.mrf.mxu0
    %v5682 = vadd.f32 %v5641, %v5681
    %v5683 = vpop.f32.mrf.mxu0
    %v5684 = vpop.f32.mrf.mxu0
    %5685 = vdwg.mxu0
    %5686 = vmatprep.subr.bf16.mxu0 0
    %5687 = vmatpush1.bf16.msra.mxu0 0
    %5688 = vmatprep.subr.bf16.mxu0 0
    %5689 = vmatpush1.bf16.msra.mxu0 0
    %5690 = vmatprep.subr.bf16.mxu0 0
    %5691 = vmatpush1.bf16.msra.mxu0 0
    %5692 = vmatprep.subr.bf16.mxu0 0
    %5693 = vmatpush1.bf16.msra.mxu0 0
    %5694 = vmatprep.subr.bf16.mxu0 0
    %5695 = vmatpush1.bf16.msra.mxu0 0
    %5696 = vmatprep.subr.bf16.mxu0 0
    %5697 = vmatpush1.bf16.msra.mxu0 0
    %5698 = vmatprep.subr.bf16.mxu0 %v4879
    %5699 = vmatpush1.bf16.msra.mxu0 %v4878
    %5700 = vmatprep.subr.bf16.mxu0 %v4872
    %5701 = vmatpush1.bf16.msra.mxu0 %v4871
    %5702 = vmatprep.subr.bf16.mxu0 0
    %5703 = vmatpush2.bf16.msra.mxu0 0
    %5704 = vmatprep.subr.bf16.mxu0 0
    %5705 = vmatpush2.bf16.msra.mxu0 0
    %5706 = vmatprep.subr.bf16.mxu0 0
    %5707 = vmatpush2.bf16.msra.mxu0 0
    %5708 = vmatprep.subr.bf16.mxu0 0
    %5709 = vmatpush2.bf16.msra.mxu0 0
    %5710 = vmatprep.subr.bf16.mxu0 0
    %5711 = vmatpush2.bf16.msra.mxu0 0
    %5712 = vmatprep.subr.bf16.mxu0 0
    %5713 = vmatpush2.bf16.msra.mxu0 0
    %5714 = vmatprep.subr.bf16.mxu0 0
    %5715 = vmatpush2.bf16.msra.mxu0 0
    %5716 = vmatprep.subr.bf16.mxu0 0
    %5717 = vmatpush2.bf16.msra.mxu0 0
    %5718 = vmatprep.mubr.bf16.mxu0 0
    %5719 = vmatmul.mubr.bf16.gmra.mxu0 %v5233
    %v5720 = vpop.f32.mrf.mxu0
    %v5721 = vadd.f32 %v5680, %v5720
    %v5722 = vpop.f32.mrf.mxu0
    %v5723 = vadd.f32 %v5682, %v5722
    %v5724 = vpop.f32.mrf.mxu0
    %v5725 = vpop.f32.mrf.mxu0
    %5726 = vdwg.mxu0
    %5727 = vmatprep.subr.bf16.mxu0 0
    %5728 = vmatpush1.bf16.msra.mxu0 %v4586
    %5729 = vmatprep.subr.bf16.mxu0 0
    %5730 = vmatpush1.bf16.msra.mxu0 %v4579
    %5731 = vmatprep.subr.bf16.mxu0 0
    %5732 = vmatpush1.bf16.msra.mxu0 %v4572
    %5733 = vmatprep.subr.bf16.mxu0 0
    %5734 = vmatpush1.bf16.msra.mxu0 %v4565
    %5735 = vmatprep.subr.bf16.mxu0 0
    %5736 = vmatpush1.bf16.msra.mxu0 %v4558
    %5737 = vmatprep.subr.bf16.mxu0 0
    %5738 = vmatpush1.bf16.msra.mxu0 %v4551
    %5739 = vmatprep.subr.bf16.mxu0 0
    %5740 = vmatpush1.bf16.msra.mxu0 %v4544
    %5741 = vmatprep.subr.bf16.mxu0 0
    %5742 = vmatpush1.bf16.msra.mxu0 %v4537
    %5743 = vmatprep.subr.bf16.mxu0 0
    %5744 = vmatpush2.bf16.msra.mxu0 %v4642
    %5745 = vmatprep.subr.bf16.mxu0 0
    %5746 = vmatpush2.bf16.msra.mxu0 %v4635
    %5747 = vmatprep.subr.bf16.mxu0 0
    %5748 = vmatpush2.bf16.msra.mxu0 %v4628
    %5749 = vmatprep.subr.bf16.mxu0 0
    %5750 = vmatpush2.bf16.msra.mxu0 %v4621
    %5751 = vmatprep.subr.bf16.mxu0 0
    %5752 = vmatpush2.bf16.msra.mxu0 %v4614
    %5753 = vmatprep.subr.bf16.mxu0 0
    %5754 = vmatpush2.bf16.msra.mxu0 %v4607
    %5755 = vmatprep.subr.bf16.mxu0 0
    %5756 = vmatpush2.bf16.msra.mxu0 %v4600
    %5757 = vmatprep.subr.bf16.mxu0 0
    %5758 = vmatpush2.bf16.msra.mxu0 %v4593
    %5759 = vmatprep.mubr.bf16.mxu0 %v2988
    %5760 = vmatmul.mubr.bf16.gmra.mxu0 %v2987
    %v5761 = vpop.f32.mrf.mxu0
    %v5762 = vadd.f32 %v3423, %v5761
    %v5763 = vpop.f32.mrf.mxu0
    %v5764 = vpop.f32.mrf.mxu0
    %v5765 = vpop.f32.mrf.mxu0
    %5766 = vdwg.mxu0
    %5767 = vmatprep.subr.bf16.mxu0 0
    %5768 = vmatpush1.bf16.msra.mxu0 %v4698
    %5769 = vmatprep.subr.bf16.mxu0 0
    %5770 = vmatpush1.bf16.msra.mxu0 %v4691
    %5771 = vmatprep.subr.bf16.mxu0 0
    %5772 = vmatpush1.bf16.msra.mxu0 %v4684
    %5773 = vmatprep.subr.bf16.mxu0 0
    %5774 = vmatpush1.bf16.msra.mxu0 %v4677
    %5775 = vmatprep.subr.bf16.mxu0 0
    %5776 = vmatpush1.bf16.msra.mxu0 %v4670
    %5777 = vmatprep.subr.bf16.mxu0 0
    %5778 = vmatpush1.bf16.msra.mxu0 %v4663
    %5779 = vmatprep.subr.bf16.mxu0 0
    %5780 = vmatpush1.bf16.msra.mxu0 %v4656
    %5781 = vmatprep.subr.bf16.mxu0 0
    %5782 = vmatpush1.bf16.msra.mxu0 %v4649
    %5783 = vmatprep.subr.bf16.mxu0 0
    %5784 = vmatpush2.bf16.msra.mxu0 %v4754
    %5785 = vmatprep.subr.bf16.mxu0 0
    %5786 = vmatpush2.bf16.msra.mxu0 %v4747
    %5787 = vmatprep.subr.bf16.mxu0 0
    %5788 = vmatpush2.bf16.msra.mxu0 %v4740
    %5789 = vmatprep.subr.bf16.mxu0 0
    %5790 = vmatpush2.bf16.msra.mxu0 %v4733
    %5791 = vmatprep.subr.bf16.mxu0 0
    %5792 = vmatpush2.bf16.msra.mxu0 %v4726
    %5793 = vmatprep.subr.bf16.mxu0 0
    %5794 = vmatpush2.bf16.msra.mxu0 %v4719
    %5795 = vmatprep.subr.bf16.mxu0 0
    %5796 = vmatpush2.bf16.msra.mxu0 %v4712
    %5797 = vmatprep.subr.bf16.mxu0 0
    %5798 = vmatpush2.bf16.msra.mxu0 %v4705
    %5799 = vmatprep.mubr.bf16.mxu0 %v2990
    %5800 = vmatmul.mubr.bf16.gmra.mxu0 %v2989
    %v5801 = vpop.f32.mrf.mxu0
    %v5802 = vadd.f32 %v5762, %v5801
    %v5803 = vpop.f32.mrf.mxu0
    %v5804 = vpop.f32.mrf.mxu0
    %v5805 = vpop.f32.mrf.mxu0
    %5806 = vdwg.mxu0
    %5807 = vmatprep.subr.bf16.mxu0 0
    %5808 = vmatpush1.bf16.msra.mxu0 %v4810
    %5809 = vmatprep.subr.bf16.mxu0 0
    %5810 = vmatpush1.bf16.msra.mxu0 %v4803
    %5811 = vmatprep.subr.bf16.mxu0 0
    %5812 = vmatpush1.bf16.msra.mxu0 %v4796
    %5813 = vmatprep.subr.bf16.mxu0 0
    %5814 = vmatpush1.bf16.msra.mxu0 %v4789
    %5815 = vmatprep.subr.bf16.mxu0 0
    %5816 = vmatpush1.bf16.msra.mxu0 %v4782
    %5817 = vmatprep.subr.bf16.mxu0 0
    %5818 = vmatpush1.bf16.msra.mxu0 %v4775
    %5819 = vmatprep.subr.bf16.mxu0 0
    %5820 = vmatpush1.bf16.msra.mxu0 %v4768
    %5821 = vmatprep.subr.bf16.mxu0 0
    %5822 = vmatpush1.bf16.msra.mxu0 %v4761
    %5823 = vmatprep.subr.bf16.mxu0 0
    %5824 = vmatpush2.bf16.msra.mxu0 %v4866
    %5825 = vmatprep.subr.bf16.mxu0 0
    %5826 = vmatpush2.bf16.msra.mxu0 %v4859
    %5827 = vmatprep.subr.bf16.mxu0 0
    %5828 = vmatpush2.bf16.msra.mxu0 %v4852
    %5829 = vmatprep.subr.bf16.mxu0 0
    %5830 = vmatpush2.bf16.msra.mxu0 %v4845
    %5831 = vmatprep.subr.bf16.mxu0 0
    %5832 = vmatpush2.bf16.msra.mxu0 %v4838
    %5833 = vmatprep.subr.bf16.mxu0 0
    %5834 = vmatpush2.bf16.msra.mxu0 %v4831
    %5835 = vmatprep.subr.bf16.mxu0 0
    %5836 = vmatpush2.bf16.msra.mxu0 %v4824
    %5837 = vmatprep.subr.bf16.mxu0 0
    %5838 = vmatpush2.bf16.msra.mxu0 %v4817
    %5839 = vmatprep.mubr.bf16.mxu0 %v2992
    %5840 = vmatmul.mubr.bf16.gmra.mxu0 %v2991
    %v5841 = vpop.f32.mrf.mxu0
    %v5842 = vadd.f32 %v5802, %v5841
    %v5843 = vpop.f32.mrf.mxu0
    %v5844 = vpop.f32.mrf.mxu0
    %v5845 = vpop.f32.mrf.mxu0
    %5846 = vdwg.mxu0
    %5847 = vmatprep.subr.bf16.mxu0 0
    %5848 = vmatpush1.bf16.msra.mxu0 0
    %5849 = vmatprep.subr.bf16.mxu0 0
    %5850 = vmatpush1.bf16.msra.mxu0 0
    %5851 = vmatprep.subr.bf16.mxu0 0
    %5852 = vmatpush1.bf16.msra.mxu0 0
    %5853 = vmatprep.subr.bf16.mxu0 0
    %5854 = vmatpush1.bf16.msra.mxu0 0
    %5855 = vmatprep.subr.bf16.mxu0 0
    %5856 = vmatpush1.bf16.msra.mxu0 0
    %5857 = vmatprep.subr.bf16.mxu0 0
    %5858 = vmatpush1.bf16.msra.mxu0 0
    %5859 = vmatprep.subr.bf16.mxu0 0
    %5860 = vmatpush1.bf16.msra.mxu0 %v4880
    %5861 = vmatprep.subr.bf16.mxu0 0
    %5862 = vmatpush1.bf16.msra.mxu0 %v4873
    %5863 = vmatprep.subr.bf16.mxu0 0
    %5864 = vmatpush2.bf16.msra.mxu0 0
    %5865 = vmatprep.subr.bf16.mxu0 0
    %5866 = vmatpush2.bf16.msra.mxu0 0
    %5867 = vmatprep.subr.bf16.mxu0 0
    %5868 = vmatpush2.bf16.msra.mxu0 0
    %5869 = vmatprep.subr.bf16.mxu0 0
    %5870 = vmatpush2.bf16.msra.mxu0 0
    %5871 = vmatprep.subr.bf16.mxu0 0
    %5872 = vmatpush2.bf16.msra.mxu0 0
    %5873 = vmatprep.subr.bf16.mxu0 0
    %5874 = vmatpush2.bf16.msra.mxu0 0
    %5875 = vmatprep.subr.bf16.mxu0 0
    %5876 = vmatpush2.bf16.msra.mxu0 0
    %5877 = vmatprep.subr.bf16.mxu0 0
    %5878 = vmatpush2.bf16.msra.mxu0 0
    %5879 = vmatprep.mubr.bf16.mxu0 0
    %5880 = vmatmul.mubr.bf16.gmra.mxu0 %v5233
    %v5881 = vpop.f32.mrf.mxu0
    %v5882 = vadd.f32 %v5842, %v5881
    %v5883 = vpop.f32.mrf.mxu0
    %v5884 = vpop.f32.mrf.mxu0
    %v5885 = vpop.f32.mrf.mxu0
    %5886 = vdwg.mxu0
    %v5887 = vmax.f32 %v5393, 0.0
    %v5888 = vmax.f32 %v5395, 0.0
    %v5889 = vmax.f32 %v5557, 0.0
    %v5890 = vmax.f32 %v5559, 0.0
    %v5891 = vmax.f32 %v5721, 0.0
    %v5892 = vmax.f32 %v5723, 0.0
    %v5893 = vmax.f32 %v5882, 0.0
    %v5894 = vpack.c.bf16 %v5887, %v5887
    %v5895 = vpack.c.bf16 %v5888, %v5888
    %v5896 = vpack.c.bf16 %v5889, %v5889
    %v5897 = vpack.c.bf16 %v5890, %v5890
    %v5898 = vpack.c.bf16 %v5891, %v5891
    %v5899 = vpack.c.bf16 %v5892, %v5892
    %v5900 = vpack.c.bf16 %v5893, %v5893
    %v5901 = vld [vmem:[#allocation9] sm:$0xf]
    %v5902 = vld [vmem:[#allocation9 + $0x4] sm:$0xf]
    %v5903 = vld [vmem:[#allocation9 + $0x8] sm:$0xf]
    %v5904 = vld [vmem:[#allocation9 + $0xc] sm:$0xf]
    %v5905 = vld [vmem:[#allocation9 + $0x10] sm:$0xf]
    %v5906 = vld [vmem:[#allocation9 + $0x14] sm:$0xf]
    %v5907 = vld [vmem:[#allocation9 + $0x18] sm:$0xf]
    %v5908 = vld [vmem:[#allocation9 + $0x1c] sm:$0xf]
    %v5909 = vld [vmem:[#allocation9 + $0x20] sm:$0xf]
    %v5910 = vld [vmem:[#allocation9 + $0x24] sm:$0xf]
    %v5911 = vld [vmem:[#allocation9 + $0x28] sm:$0xf]
    %v5912 = vld [vmem:[#allocation9 + $0x2c] sm:$0xf]
    %v5913 = vld [vmem:[#allocation9 + $0x30] sm:$0xf]
    %v5914 = vld [vmem:[#allocation9 + $0x34] sm:$0xf]
    %v5915 = vld [vmem:[#allocation9 + $0x38] sm:$0xf]
    %v5916 = vld [vmem:[#allocation9 + $0x3c] sm:$0xf]
    %v5917 = vld [vmem:[#allocation9 + $0x40] sm:$0xf]
    %v5918 = vld [vmem:[#allocation9 + $0x44] sm:$0xf]
    %v5919 = vld [vmem:[#allocation9 + $0x48] sm:$0xf]
    %v5920 = vld [vmem:[#allocation9 + $0x4c] sm:$0xf]
    %v5921 = vld [vmem:[#allocation9 + $0x50] sm:$0xf]
    %v5922 = vld [vmem:[#allocation9 + $0x54] sm:$0xf]
    %v5923 = vld [vmem:[#allocation9 + $0x58] sm:$0xf]
    %v5924 = vld [vmem:[#allocation9 + $0x5c] sm:$0xf]
    %v5925 = vld [vmem:[#allocation9 + $0x60] sm:$0xf]
    %v5926 = vld [vmem:[#allocation9 + $0x64] sm:$0xf]
    %v5927 = vld [vmem:[#allocation9 + $0x68] sm:$0xf]
    %v5928 = vld [vmem:[#allocation9 + $0x6c] sm:$0xf]
    %v5929 = vld [vmem:[#allocation9 + $0x70] sm:$0xf]
    %v5930 = vld [vmem:[#allocation9 + $0x74] sm:$0xf]
    %v5931 = vld [vmem:[#allocation9 + $0x78] sm:$0xf]
    %v5932 = vld [vmem:[#allocation9 + $0x7c] sm:$0xf]
    %v5933 = vld [vmem:[#allocation9 + $0x80] sm:$0xf]
    %v5934 = vld [vmem:[#allocation9 + $0x84] sm:$0xf]
    %v5935 = vld [vmem:[#allocation9 + $0x88] sm:$0xf]
    %v5936 = vld [vmem:[#allocation9 + $0x8c] sm:$0xf]
    %v5937 = vld [vmem:[#allocation9 + $0x90] sm:$0xf]
    %v5938 = vld [vmem:[#allocation9 + $0x94] sm:$0xf]
    %v5939 = vld [vmem:[#allocation9 + $0x98] sm:$0xf]
    %v5940 = vld [vmem:[#allocation9 + $0x9c] sm:$0xf]
    %v5941 = vld [vmem:[#allocation9 + $0xa0] sm:$0xf]
    %v5942 = vld [vmem:[#allocation9 + $0xa4] sm:$0xf]
    %v5943 = vld [vmem:[#allocation9 + $0xa8] sm:$0xf]
    %v5944 = vld [vmem:[#allocation9 + $0xac] sm:$0xf]
    %v5945 = vld [vmem:[#allocation9 + $0xb0] sm:$0xf]
    %v5946 = vld [vmem:[#allocation9 + $0xb4] sm:$0xf]
    %v5947 = vld [vmem:[#allocation9 + $0xb8] sm:$0xf]
    %v5948 = vld [vmem:[#allocation9 + $0xbc] sm:$0xf]
    %v5949 = vld [vmem:[#allocation9 + $0xc0] sm:$0xf]
    %v5950 = vld [vmem:[#allocation9 + $0xc4] sm:$0xf]
    %v5951 = vld [vmem:[#allocation9 + $0xc8] sm:$0xf]
    %v5952 = vld [vmem:[#allocation9 + $0xcc] sm:$0xf]
    %v5953 = vld [vmem:[#allocation9 + $0xd0] sm:$0xf]
    %v5954 = vld [vmem:[#allocation9 + $0xd4] sm:$0xf]
    %v5955 = vld [vmem:[#allocation9 + $0xd8] sm:$0xf]
    %v5956 = vld [vmem:[#allocation9 + $0xdc] sm:$0xf]
    %v5957 = vld [vmem:[#allocation9 + $0xe0] sm:$0xf]
    %v5958 = vld [vmem:[#allocation9 + $0xe4] sm:$0xf]
    %v5959 = vld [vmem:[#allocation9 + $0xe8] sm:$0xf]
    %v5960 = vld [vmem:[#allocation9 + $0xec] sm:$0xf]
    %v5961 = vld [vmem:[#allocation9 + $0xf0] sm:$0xf]
    %v5962 = vld [vmem:[#allocation9 + $0xf4] sm:$0xf]
    %v5963 = vld [vmem:[#allocation9 + $0xf8] sm:$0xf]
    %v5964 = vld [vmem:[#allocation9 + $0xfc] sm:$0xf]
    %v5965 = vld [vmem:[#allocation9 + $0x100] sm:$0xf]
    %v5966 = vld [vmem:[#allocation9 + $0x104] sm:$0xf]
    %v5967 = vld [vmem:[#allocation9 + $0x108] sm:$0xf]
    %v5968 = vld [vmem:[#allocation9 + $0x10c] sm:$0xf]
    %v5969 = vld [vmem:[#allocation9 + $0x110] sm:$0xf]
    %v5970 = vld [vmem:[#allocation9 + $0x114] sm:$0xf]
    %v5971 = vld [vmem:[#allocation9 + $0x118] sm:$0xf]
    %v5972 = vld [vmem:[#allocation9 + $0x11c] sm:$0xf]
    %v5973 = vld [vmem:[#allocation9 + $0x120] sm:$0xf]
    %v5974 = vld [vmem:[#allocation9 + $0x124] sm:$0xf]
    %v5975 = vld [vmem:[#allocation9 + $0x128] sm:$0xf]
    %v5976 = vld [vmem:[#allocation9 + $0x12c] sm:$0xf]
    %v5977 = vld [vmem:[#allocation9 + $0x130] sm:$0xf]
    %v5978 = vld [vmem:[#allocation9 + $0x134] sm:$0xf]
    %v5979 = vld [vmem:[#allocation9 + $0x138] sm:$0xf]
    %v5980 = vld [vmem:[#allocation9 + $0x13c] sm:$0xf]
    %v5981 = vld [vmem:[#allocation9 + $0x140] sm:$0xf]
    %v5982 = vld [vmem:[#allocation9 + $0x144] sm:$0xf]
    %v5983 = vld [vmem:[#allocation9 + $0x148] sm:$0xf]
    %v5984 = vld [vmem:[#allocation9 + $0x14c] sm:$0xf]
    %v5985 = vld [vmem:[#allocation9 + $0x150] sm:$0xf]
    %v5986 = vld [vmem:[#allocation9 + $0x154] sm:$0xf]
    %v5987 = vld [vmem:[#allocation9 + $0x158] sm:$0xf]
    %v5988 = vld [vmem:[#allocation9 + $0x15c] sm:$0xf]
    %v5989 = vld [vmem:[#allocation9 + $0x160] sm:$0xf]
    %v5990 = vld [vmem:[#allocation9 + $0x164] sm:$0xf]
    %v5991 = vld [vmem:[#allocation9 + $0x168] sm:$0xf]
    %v5992 = vld [vmem:[#allocation9 + $0x16c] sm:$0xf]
    %v5993 = vld [vmem:[#allocation9 + $0x170] sm:$0xf]
    %v5994 = vld [vmem:[#allocation9 + $0x174] sm:$0xf]
    %v5995 = vld [vmem:[#allocation9 + $0x178] sm:$0xf]
    %v5996 = vld [vmem:[#allocation9 + $0x17c] sm:$0xf]
    %v5997 = vld [vmem:[#allocation9 + $0x180] sm:$0xf]
    %v5998 = vld [vmem:[#allocation9 + $0x184] sm:$0xf]
    %v5999 = vld [vmem:[#allocation9 + $0x188] sm:$0xf]
    %v6000 = vld [vmem:[#allocation9 + $0x18c] sm:$0xf]
    %v6001 = vld [vmem:[#allocation10] sm:$0x1]
    %v6003 = vlaneseq
    %v6004 = vshrl.u32 %v6003, 7
    %v6005 = vsub.s32 0, %v6004
    %v6006 = vrot.slane %v6001, %v6005
    %v6108 = vunpack.c.l.b16 %v5901
    %v6109 = vunpack.c.l.b16 %v5902
    %v6110 = vunpack.c.l.b16 %v5903
    %v6111 = vunpack.c.l.b16 %v5904
    %v6112 = vunpack.c.l.b16 %v5905
    %v6113 = vunpack.c.l.b16 %v5906
    %v6114 = vunpack.c.l.b16 %v5907
    %v6115 = vunpack.c.l.b16 %v5908
    %v6116 = vunpack.c.l.b16 %v5909
    %v6117 = vunpack.c.l.b16 %v5910
    %v6118 = vunpack.c.l.b16 %v5911
    %v6119 = vunpack.c.l.b16 %v5912
    %v6120 = vunpack.c.l.b16 %v5913
    %v6121 = vunpack.c.l.b16 %v5914
    %v6122 = vunpack.c.l.b16 %v5915
    %v6123 = vunpack.c.l.b16 %v5916
    %v6124 = vunpack.c.l.b16 %v5917
    %v6125 = vunpack.c.l.b16 %v5918
    %v6126 = vunpack.c.l.b16 %v5919
    %v6127 = vunpack.c.l.b16 %v5920
    %v6128 = vunpack.c.l.b16 %v5921
    %v6129 = vunpack.c.l.b16 %v5922
    %v6130 = vunpack.c.l.b16 %v5923
    %v6131 = vunpack.c.l.b16 %v5924
    %v6132 = vunpack.c.l.b16 %v5925
    %v6133 = vunpack.c.l.b16 %v5926
    %v6134 = vunpack.c.l.b16 %v5927
    %v6135 = vunpack.c.l.b16 %v5928
    %v6136 = vunpack.c.l.b16 %v5929
    %v6137 = vunpack.c.l.b16 %v5930
    %v6138 = vunpack.c.l.b16 %v5931
    %v6139 = vunpack.c.l.b16 %v5932
    %v6140 = vunpack.c.l.b16 %v5933
    %v6141 = vunpack.c.l.b16 %v5934
    %v6142 = vunpack.c.l.b16 %v5935
    %v6143 = vunpack.c.l.b16 %v5936
    %v6144 = vunpack.c.l.b16 %v5937
    %v6145 = vunpack.c.l.b16 %v5938
    %v6146 = vunpack.c.l.b16 %v5939
    %v6147 = vunpack.c.l.b16 %v5940
    %v6148 = vunpack.c.l.b16 %v5941
    %v6149 = vunpack.c.l.b16 %v5942
    %v6150 = vunpack.c.l.b16 %v5943
    %v6151 = vunpack.c.l.b16 %v5944
    %v6152 = vunpack.c.l.b16 %v5945
    %v6153 = vunpack.c.l.b16 %v5946
    %v6154 = vunpack.c.l.b16 %v5947
    %v6155 = vunpack.c.l.b16 %v5948
    %v6156 = vunpack.c.l.b16 %v5949
    %v6157 = vunpack.c.l.b16 %v5950
    %v6158 = vunpack.c.l.b16 %v5951
    %v6159 = vunpack.c.l.b16 %v5952
    %v6160 = vunpack.c.l.b16 %v5953
    %v6161 = vunpack.c.l.b16 %v5954
    %v6162 = vunpack.c.l.b16 %v5955
    %v6163 = vunpack.c.l.b16 %v5956
    %v6164 = vunpack.c.l.b16 %v5957
    %v6165 = vunpack.c.l.b16 %v5958
    %v6166 = vunpack.c.l.b16 %v5959
    %v6167 = vunpack.c.l.b16 %v5960
    %v6168 = vunpack.c.l.b16 %v5961
    %v6169 = vunpack.c.l.b16 %v5962
    %v6170 = vunpack.c.l.b16 %v5963
    %v6171 = vunpack.c.l.b16 %v5964
    %v6172 = vunpack.c.l.b16 %v5965
    %v6173 = vunpack.c.l.b16 %v5966
    %v6174 = vunpack.c.l.b16 %v5967
    %v6175 = vunpack.c.l.b16 %v5968
    %v6176 = vunpack.c.l.b16 %v5969
    %v6177 = vunpack.c.l.b16 %v5970
    %v6178 = vunpack.c.l.b16 %v5971
    %v6179 = vunpack.c.l.b16 %v5972
    %v6180 = vunpack.c.l.b16 %v5973
    %v6181 = vunpack.c.l.b16 %v5974
    %v6182 = vunpack.c.l.b16 %v5975
    %v6183 = vunpack.c.l.b16 %v5976
    %v6184 = vunpack.c.l.b16 %v5977
    %v6185 = vunpack.c.l.b16 %v5978
    %v6186 = vunpack.c.l.b16 %v5979
    %v6187 = vunpack.c.l.b16 %v5980
    %v6188 = vunpack.c.l.b16 %v5981
    %v6189 = vunpack.c.l.b16 %v5982
    %v6190 = vunpack.c.l.b16 %v5983
    %v6191 = vunpack.c.l.b16 %v5984
    %v6192 = vunpack.c.l.b16 %v5985
    %v6193 = vunpack.c.l.b16 %v5986
    %v6194 = vunpack.c.l.b16 %v5987
    %v6195 = vunpack.c.l.b16 %v5988
    %v6196 = vunpack.c.l.b16 %v5989
    %v6197 = vunpack.c.l.b16 %v5990
    %v6198 = vunpack.c.l.b16 %v5991
    %v6199 = vunpack.c.l.b16 %v5992
    %v6200 = vunpack.c.l.b16 %v5993
    %v6201 = vunpack.c.l.b16 %v5994
    %v6202 = vunpack.c.l.b16 %v5995
    %v6203 = vunpack.c.l.b16 %v5996
    %v6204 = vunpack.c.l.b16 %v5997
    %v6205 = vunpack.c.l.b16 %v5998
    %v6206 = vunpack.c.l.b16 %v5999
    %v6207 = vunpack.c.l.b16 %v6000
    %v6208 = vpack.c.b16 %v6109, %v6108
    %v6209 = vpack.c.b16 %v6111, %v6110
    %v6210 = vpack.c.b16 %v6113, %v6112
    %v6211 = vpack.c.b16 %v6115, %v6114
    %v6212 = vpack.c.b16 %v6117, %v6116
    %v6213 = vpack.c.b16 %v6119, %v6118
    %v6214 = vpack.c.b16 %v6121, %v6120
    %v6215 = vpack.c.b16 %v6123, %v6122
    %v6216 = vpack.c.b16 %v6125, %v6124
    %v6217 = vpack.c.b16 %v6127, %v6126
    %v6218 = vpack.c.b16 %v6129, %v6128
    %v6219 = vpack.c.b16 %v6131, %v6130
    %v6220 = vpack.c.b16 %v6133, %v6132
    %v6221 = vpack.c.b16 %v6135, %v6134
    %v6222 = vpack.c.b16 %v6137, %v6136
    %v6223 = vpack.c.b16 %v6139, %v6138
    %v6224 = vpack.c.b16 %v6141, %v6140
    %v6225 = vpack.c.b16 %v6143, %v6142
    %v6226 = vpack.c.b16 %v6145, %v6144
    %v6227 = vpack.c.b16 %v6147, %v6146
    %v6228 = vpack.c.b16 %v6149, %v6148
    %v6229 = vpack.c.b16 %v6151, %v6150
    %v6230 = vpack.c.b16 %v6153, %v6152
    %v6231 = vpack.c.b16 %v6155, %v6154
    %v6232 = vpack.c.b16 %v6157, %v6156
    %v6233 = vpack.c.b16 %v6159, %v6158
    %v6234 = vpack.c.b16 %v6161, %v6160
    %v6235 = vpack.c.b16 %v6163, %v6162
    %v6236 = vpack.c.b16 %v6165, %v6164
    %v6237 = vpack.c.b16 %v6167, %v6166
    %v6238 = vpack.c.b16 %v6169, %v6168
    %v6239 = vpack.c.b16 %v6171, %v6170
    %v6240 = vpack.c.b16 %v6173, %v6172
    %v6241 = vpack.c.b16 %v6175, %v6174
    %v6242 = vpack.c.b16 %v6177, %v6176
    %v6243 = vpack.c.b16 %v6179, %v6178
    %v6244 = vpack.c.b16 %v6181, %v6180
    %v6245 = vpack.c.b16 %v6183, %v6182
    %v6246 = vpack.c.b16 %v6185, %v6184
    %v6247 = vpack.c.b16 %v6187, %v6186
    %v6248 = vpack.c.b16 %v6189, %v6188
    %v6249 = vpack.c.b16 %v6191, %v6190
    %v6250 = vpack.c.b16 %v6193, %v6192
    %v6251 = vpack.c.b16 %v6195, %v6194
    %v6252 = vpack.c.b16 %v6197, %v6196
    %v6253 = vpack.c.b16 %v6199, %v6198
    %v6254 = vpack.c.b16 %v6201, %v6200
    %v6255 = vpack.c.b16 %v6203, %v6202
    %v6256 = vpack.c.b16 %v6205, %v6204
    %v6257 = vpack.c.b16 %v6207, %v6206
    %v6309 = vsel %vm5231, %v5900, 0
    %6311 = vmatprep.subr.bf16.mxu0 0
    %6312 = vmatpush1.bf16.msra.mxu0 %v6215
    %6313 = vmatprep.subr.bf16.mxu0 0
    %6314 = vmatpush1.bf16.msra.mxu0 %v6214
    %6315 = vmatprep.subr.bf16.mxu0 0
    %6316 = vmatpush1.bf16.msra.mxu0 %v6213
    %6317 = vmatprep.subr.bf16.mxu0 0
    %6318 = vmatpush1.bf16.msra.mxu0 %v6212
    %6319 = vmatprep.subr.bf16.mxu0 0
    %6320 = vmatpush1.bf16.msra.mxu0 %v6211
    %6321 = vmatprep.subr.bf16.mxu0 0
    %6322 = vmatpush1.bf16.msra.mxu0 %v6210
    %6323 = vmatprep.subr.bf16.mxu0 0
    %6324 = vmatpush1.bf16.msra.mxu0 %v6209
    %6325 = vmatprep.subr.bf16.mxu0 0
    %6326 = vmatpush1.bf16.msra.mxu0 %v6208
    %6327 = vmatprep.subr.bf16.mxu0 0
    %6328 = vmatpush2.bf16.msra.mxu0 %v6223
    %6329 = vmatprep.subr.bf16.mxu0 0
    %6330 = vmatpush2.bf16.msra.mxu0 %v6222
    %6331 = vmatprep.subr.bf16.mxu0 0
    %6332 = vmatpush2.bf16.msra.mxu0 %v6221
    %6333 = vmatprep.subr.bf16.mxu0 0
    %6334 = vmatpush2.bf16.msra.mxu0 %v6220
    %6335 = vmatprep.subr.bf16.mxu0 0
    %6336 = vmatpush2.bf16.msra.mxu0 %v6219
    %6337 = vmatprep.subr.bf16.mxu0 0
    %6338 = vmatpush2.bf16.msra.mxu0 %v6218
    %6339 = vmatprep.subr.bf16.mxu0 0
    %6340 = vmatpush2.bf16.msra.mxu0 %v6217
    %6341 = vmatprep.subr.bf16.mxu0 0
    %6342 = vmatpush2.bf16.msra.mxu0 %v6216
    %6343 = vmatprep.mubr.bf16.mxu0 %v5895
    %6344 = vmatmul.mubr.bf16.gmra.mxu0 %v5894
    %v6345 = vpop.f32.mrf.mxu0
    %v6346 = vadd.f32 %v6006, %v6345
    %v6347 = vpop.f32.mrf.mxu0
    %v6348 = vpop.f32.mrf.mxu0
    %v6349 = vpop.f32.mrf.mxu0
    %6350 = vdwg.mxu0
    %6351 = vmatprep.subr.bf16.mxu0 0
    %6352 = vmatpush1.bf16.msra.mxu0 %v6231
    %6353 = vmatprep.subr.bf16.mxu0 0
    %6354 = vmatpush1.bf16.msra.mxu0 %v6230
    %6355 = vmatprep.subr.bf16.mxu0 0
    %6356 = vmatpush1.bf16.msra.mxu0 %v6229
    %6357 = vmatprep.subr.bf16.mxu0 0
    %6358 = vmatpush1.bf16.msra.mxu0 %v6228
    %6359 = vmatprep.subr.bf16.mxu0 0
    %6360 = vmatpush1.bf16.msra.mxu0 %v6227
    %6361 = vmatprep.subr.bf16.mxu0 0
    %6362 = vmatpush1.bf16.msra.mxu0 %v6226
    %6363 = vmatprep.subr.bf16.mxu0 0
    %6364 = vmatpush1.bf16.msra.mxu0 %v6225
    %6365 = vmatprep.subr.bf16.mxu0 0
    %6366 = vmatpush1.bf16.msra.mxu0 %v6224
    %6367 = vmatprep.subr.bf16.mxu0 0
    %6368 = vmatpush2.bf16.msra.mxu0 %v6239
    %6369 = vmatprep.subr.bf16.mxu0 0
    %6370 = vmatpush2.bf16.msra.mxu0 %v6238
    %6371 = vmatprep.subr.bf16.mxu0 0
    %6372 = vmatpush2.bf16.msra.mxu0 %v6237
    %6373 = vmatprep.subr.bf16.mxu0 0
    %6374 = vmatpush2.bf16.msra.mxu0 %v6236
    %6375 = vmatprep.subr.bf16.mxu0 0
    %6376 = vmatpush2.bf16.msra.mxu0 %v6235
    %6377 = vmatprep.subr.bf16.mxu0 0
    %6378 = vmatpush2.bf16.msra.mxu0 %v6234
    %6379 = vmatprep.subr.bf16.mxu0 0
    %6380 = vmatpush2.bf16.msra.mxu0 %v6233
    %6381 = vmatprep.subr.bf16.mxu0 0
    %6382 = vmatpush2.bf16.msra.mxu0 %v6232
    %6383 = vmatprep.mubr.bf16.mxu0 %v5897
    %6384 = vmatmul.mubr.bf16.gmra.mxu0 %v5896
    %v6385 = vpop.f32.mrf.mxu0
    %v6386 = vadd.f32 %v6346, %v6385
    %v6387 = vpop.f32.mrf.mxu0
    %v6388 = vpop.f32.mrf.mxu0
    %v6389 = vpop.f32.mrf.mxu0
    %6390 = vdwg.mxu0
    %6391 = vmatprep.subr.bf16.mxu0 0
    %6392 = vmatpush1.bf16.msra.mxu0 %v6247
    %6393 = vmatprep.subr.bf16.mxu0 0
    %6394 = vmatpush1.bf16.msra.mxu0 %v6246
    %6395 = vmatprep.subr.bf16.mxu0 0
    %6396 = vmatpush1.bf16.msra.mxu0 %v6245
    %6397 = vmatprep.subr.bf16.mxu0 0
    %6398 = vmatpush1.bf16.msra.mxu0 %v6244
    %6399 = vmatprep.subr.bf16.mxu0 0
    %6400 = vmatpush1.bf16.msra.mxu0 %v6243
    %6401 = vmatprep.subr.bf16.mxu0 0
    %6402 = vmatpush1.bf16.msra.mxu0 %v6242
    %6403 = vmatprep.subr.bf16.mxu0 0
    %6404 = vmatpush1.bf16.msra.mxu0 %v6241
    %6405 = vmatprep.subr.bf16.mxu0 0
    %6406 = vmatpush1.bf16.msra.mxu0 %v6240
    %6407 = vmatprep.subr.bf16.mxu0 0
    %6408 = vmatpush2.bf16.msra.mxu0 %v6255
    %6409 = vmatprep.subr.bf16.mxu0 0
    %6410 = vmatpush2.bf16.msra.mxu0 %v6254
    %6411 = vmatprep.subr.bf16.mxu0 0
    %6412 = vmatpush2.bf16.msra.mxu0 %v6253
    %6413 = vmatprep.subr.bf16.mxu0 0
    %6414 = vmatpush2.bf16.msra.mxu0 %v6252
    %6415 = vmatprep.subr.bf16.mxu0 0
    %6416 = vmatpush2.bf16.msra.mxu0 %v6251
    %6417 = vmatprep.subr.bf16.mxu0 0
    %6418 = vmatpush2.bf16.msra.mxu0 %v6250
    %6419 = vmatprep.subr.bf16.mxu0 0
    %6420 = vmatpush2.bf16.msra.mxu0 %v6249
    %6421 = vmatprep.subr.bf16.mxu0 0
    %6422 = vmatpush2.bf16.msra.mxu0 %v6248
    %6423 = vmatprep.mubr.bf16.mxu0 %v5899
    %6424 = vmatmul.mubr.bf16.gmra.mxu0 %v5898
    %v6425 = vpop.f32.mrf.mxu0
    %v6426 = vadd.f32 %v6386, %v6425
    %v6427 = vpop.f32.mrf.mxu0
    %v6428 = vpop.f32.mrf.mxu0
    %v6429 = vpop.f32.mrf.mxu0
    %6430 = vdwg.mxu0
    %6431 = vmatprep.subr.bf16.mxu0 0
    %6432 = vmatpush1.bf16.msra.mxu0 0
    %6433 = vmatprep.subr.bf16.mxu0 0
    %6434 = vmatpush1.bf16.msra.mxu0 0
    %6435 = vmatprep.subr.bf16.mxu0 0
    %6436 = vmatpush1.bf16.msra.mxu0 0
    %6437 = vmatprep.subr.bf16.mxu0 0
    %6438 = vmatpush1.bf16.msra.mxu0 0
    %6439 = vmatprep.subr.bf16.mxu0 0
    %6440 = vmatpush1.bf16.msra.mxu0 0
    %6441 = vmatprep.subr.bf16.mxu0 0
    %6442 = vmatpush1.bf16.msra.mxu0 0
    %6443 = vmatprep.subr.bf16.mxu0 0
    %6444 = vmatpush1.bf16.msra.mxu0 %v6257
    %6445 = vmatprep.subr.bf16.mxu0 0
    %6446 = vmatpush1.bf16.msra.mxu0 %v6256
    %6447 = vmatprep.subr.bf16.mxu0 0
    %6448 = vmatpush2.bf16.msra.mxu0 0
    %6449 = vmatprep.subr.bf16.mxu0 0
    %6450 = vmatpush2.bf16.msra.mxu0 0
    %6451 = vmatprep.subr.bf16.mxu0 0
    %6452 = vmatpush2.bf16.msra.mxu0 0
    %6453 = vmatprep.subr.bf16.mxu0 0
    %6454 = vmatpush2.bf16.msra.mxu0 0
    %6455 = vmatprep.subr.bf16.mxu0 0
    %6456 = vmatpush2.bf16.msra.mxu0 0
    %6457 = vmatprep.subr.bf16.mxu0 0
    %6458 = vmatpush2.bf16.msra.mxu0 0
    %6459 = vmatprep.subr.bf16.mxu0 0
    %6460 = vmatpush2.bf16.msra.mxu0 0
    %6461 = vmatprep.subr.bf16.mxu0 0
    %6462 = vmatpush2.bf16.msra.mxu0 0
    %6463 = vmatprep.mubr.bf16.mxu0 0
    %6464 = vmatmul.mubr.bf16.gmra.mxu0 %v6309
    %v6465 = vpop.f32.mrf.mxu0
    %v6466 = vadd.f32 %v6426, %v6465
    %v6467 = vpop.f32.mrf.mxu0
    %v6468 = vpop.f32.mrf.mxu0
    %v6469 = vpop.f32.mrf.mxu0
    %6470 = vdwg.mxu0
    %v6471 = vpack.c.bf16 %v6466, %v6466
    %6472 = vst [vmem:[%s7] sm:$0xf] %v6471
    // Predicated region
    $region54: #{_forward_impl.1} parent=1 // pred_check
      _
    $region55: #{_forward_impl.1} parent=1 // pred_check_branch
      %6474 = sbr.rel (0) target = $region57
    $region56: #{_forward_impl.1} parent=1 // pred_region
      _
    $region57: #{_forward_impl.1} parent=1 // pred_fallthru
      _
    // Predicated region
    $region58: #{_forward_impl.1} parent=1 // pred_check
      _
    $region59: #{_forward_impl.1} parent=1 // pred_check_branch
      %6476 = sbr.rel (0) target = $region61
    $region60: #{_forward_impl.1} parent=1 // pred_region
      _
    $region61: #{_forward_impl.1} parent=1 // pred_fallthru
      _
    %6477 = vsyncpa [#allocation3], 1
    %6478 = vsyncpa [#allocation5], 1
    %6479 = vsyncpa [#allocation8], 1
    %6480 = vsyncpa [#allocation11], 1

</llo_original>
